<compile_context>
chip_gen: v7x
topology: tpu7x:2x2x1
jax: 0.10.0
libtpu: 0.0.40
codegen_flags: <defaults>
</compile_context>

<pallas_src>
import jax
import jax.numpy as jnp
import numpy as np
from jax import lax
from jax.experimental import pallas as pl
from jax.experimental.pallas import tpu as pltpu


def _zero_halo(ref, W):
    """Zero only the halo actually read by the 3x3 taps of a (n, H+2, Wp, C)
    staging scratch: rows 0 and H+1, columns 0 and W+1."""
    n, hp, wp, c = ref.shape
    ref[:, 0:1, :, :] = jnp.zeros((n, 1, wp, c), ref.dtype)
    ref[:, hp - 1:hp, :, :] = jnp.zeros((n, 1, wp, c), ref.dtype)
    ref[:, :, 0:1, :] = jnp.zeros((n, hp, 1, c), ref.dtype)
    ref[:, :, W + 1:W + 2, :] = jnp.zeros((n, hp, 1, c), ref.dtype)


def resblk_kernel(x_ref, w1_ref, st1_ref, w2_ref, st2_ref, we_ref, ste_ref,
                  out_ref, pad1_ref, pad2_ref):
    n, H, W, Cin = x_ref.shape
    Cout = out_ref.shape[-1]
    M = n * H * W
    bf16 = jnp.bfloat16

    x = x_ref[...]

    # ---- conv1: stage x with a zero halo, im2col built in registers --------
    _zero_halo(pad1_ref, W)
    pad1_ref[:, 1:H + 1, 1:W + 1, :] = x
    p1 = pad1_ref[...]
    col1 = jnp.concatenate(
        [p1[:, dy:dy + H, dx:dx + W, :] for dy in range(3) for dx in range(3)],
        axis=-1).reshape(M, 9 * Cin).astype(bf16)
    y1 = jnp.dot(col1, w1_ref[...], preferred_element_type=jnp.float32)
    y1 = jnp.maximum(y1 * st1_ref[0:1, :] + st1_ref[1:2, :], 0.0)   # folded bias+bn1, relu

    # ---- conv2 on the relu output (real Cout on the contraction axis) ------
    _zero_halo(pad2_ref, W)
    pad2_ref[:, 1:H + 1, 1:W + 1, :] = y1.reshape(n, H, W, Cout)
    p2 = pad2_ref[...]
    col2 = jnp.concatenate(
        [p2[:, dy:dy + H, dx:dx + W, :] for dy in range(3) for dx in range(3)],
        axis=-1).reshape(M, 9 * Cout).astype(bf16)
    y2 = jnp.dot(col2, w2_ref[...], preferred_element_type=jnp.float32)
    y2 = y2 * st2_ref[0:1, :] + st2_ref[1:2, :]                     # folded bias+bn2

    # ---- 1x1 projection shortcut reuses x (the conv centre tap) directly ---
    sc = jnp.dot(x.reshape(M, Cin).astype(bf16), we_ref[...],
                 preferred_element_type=jnp.float32)
    sc = sc * ste_ref[0:1, :] + ste_ref[1:2, :]

    # ---- residual add, no final relu (matches the PyTorch module) ----------
    out_ref[...] = (sc + y2).reshape(n, H, W, Cout).astype(out_ref.dtype)


def _fold_bn(bn, conv_bias):
    gamma, beta, mean, var, eps = bn
    scale = gamma / jnp.sqrt(var + eps)
    bias = beta - mean * scale + conv_bias * scale   # conv bias folded into BN
    return scale, bias


def _pick_tile_n(N, H, W, target_m=1024):
    """Images per grid step: aim for ~1024 matmul rows, prefer an even grid."""
    tn = max(1, min(N, target_m // (H * W)))
    if tn > 1 and pl.cdiv(N, tn) % 2 == 1:          # v7x has 2 TensorCores
        half = max(1, tn // 2)
        if pl.cdiv(N, half) % 2 == 0:
            tn = half
    return tn


@jax.jit
def resblk_forward(x_nchw, params):
    # NCHW (PyTorch) -> NHWC (kernel layout).
    x = jnp.transpose(x_nchw, (0, 2, 3, 1)).astype(jnp.float32)
    N, H, W, Cin = x.shape
    Cout = params["w1"].shape[-1]

    # Weights reshaped for the im2col matmuls; contraction axes are UNPADDED,
    # operands pre-cast to bf16 (MXU native), BN scale/bias kept in f32.
    w1 = params["w1"].reshape(9 * Cin, Cout).astype(jnp.bfloat16)
    w2 = params["w2"].reshape(9 * Cout, Cout).astype(jnp.bfloat16)
    we = params["we"].astype(jnp.bfloat16)                         # (Cin, Cout)

    s1, t1 = _fold_bn(params["bn1"], params["b1"])
    s2, t2 = _fold_bn(params["bn2"], params["b2"])
    se, te = _fold_bn(params["bne"], params["be"])
    st1 = jnp.stack([s1, t1])                                      # (2, Cout) f32
    st2 = jnp.stack([s2, t2])
    ste = jnp.stack([se, te])

    tile_n = _pick_tile_n(N, H, W)
    n_steps = pl.cdiv(N, tile_n)
    Np = n_steps * tile_n
    if Np != N:                                   # handle batch remainder
        x = jnp.pad(x, ((0, Np - N), (0, 0), (0, 0), (0, 0)))
    Wp = ((W + 2 + 7) // 8) * 8                   # tile-aligned sublane dim

    def full_spec(shape):
        nd = len(shape)
        return pl.BlockSpec(shape, lambda i, _nd=nd: (0,) * _nd)

    out = pl.pallas_call(
        resblk_kernel,
        out_shape=jax.ShapeDtypeStruct((Np, H, W, Cout), jnp.float32),
        grid=(n_steps,),
        in_specs=[
            pl.BlockSpec((tile_n, H, W, Cin), lambda i: (i, 0, 0, 0)),   # x tile
            full_spec(w1.shape), full_spec(st1.shape),
            full_spec(w2.shape), full_spec(st2.shape),
            full_spec(we.shape), full_spec(ste.shape),
        ],
        # Real-Cout output block (no 16x padded HBM writeback).  Further knob:
        # a (Np, H, W*Cout) lane-dense layout would also unmask the final vst.
        out_specs=pl.BlockSpec((tile_n, H, W, Cout), lambda i: (i, 0, 0, 0)),
        scratch_shapes=[
            pltpu.VMEM((tile_n, H + 2, Wp, Cin), jnp.float32),    # conv1 halo
            pltpu.VMEM((tile_n, H + 2, Wp, Cout), jnp.float32),   # conv2 halo
        ],
        compiler_params=pltpu.CompilerParams(
            dimension_semantics=("parallel",)),
    )(x, w1, st1, w2, st2, we, ste)

    out = out[:N]                                 # drop padded batch images
    return jnp.transpose(out, (0, 3, 1, 2))       # NHWC -> NCHW


# ------------------------- pure-JAX reference (for checking) -----------------
def _conv_nhwc(x, w_hwio, b):
    y = lax.conv_general_dilated(
        x, w_hwio, window_strides=(1, 1), padding="SAME",
        dimension_numbers=("NHWC", "HWIO", "NHWC"))
    return y + b.reshape(1, 1, 1, -1)


def resblk_reference(x_nchw, params):
    x = jnp.transpose(x_nchw, (0, 2, 3, 1)).astype(jnp.float32)

    def bn(y, p):
        gamma, beta, mean, var, eps = p
        return (y - mean) / jnp.sqrt(var + eps) * gamma + beta

    out = jax.nn.relu(bn(_conv_nhwc(x, params["w1"], params["b1"]), params["bn1"]))
    out = bn(_conv_nhwc(out, params["w2"], params["b2"]), params["bn2"])
    we = params["we"].reshape(1, 1, *params["we"].shape)
    sc = bn(_conv_nhwc(x, we, params["be"]), params["bne"])
    return jnp.transpose(sc + out, (0, 3, 1, 2))


# ------------------------------ parameter init --------------------------------
def init_params(key, ch_in, ch_out):
    ks = jax.random.split(key, 12)
    eps = jnp.float32(1e-5)

    def bn_params(k):
        k1, k2, k3, k4 = jax.random.split(k, 4)
        gamma = 1.0 + 0.1 * jax.random.normal(k1, (ch_out,), jnp.float32)
        beta = 0.1 * jax.random.normal(k2, (ch_out,), jnp.float32)
        mean = 0.1 * jax.random.normal(k3, (ch_out,), jnp.float32)
        var = jnp.abs(jax.random.normal(k4, (ch_out,), jnp.float32)) + 0.5
        return (gamma, beta, mean, var, eps)

    return {
        # conv weights stored in HWIO
        "w1": 0.1 * jax.random.normal(ks[0], (3, 3, ch_in, ch_out), jnp.float32),
        "b1": 0.05 * jax.random.normal(ks[1], (ch_out,), jnp.float32),
        "bn1": bn_params(ks[2]),
        "w2": 0.1 * jax.random.normal(ks[3], (3, 3, ch_out, ch_out), jnp.float32),
        "b2": 0.05 * jax.random.normal(ks[4], (ch_out,), jnp.float32),
        "bn2": bn_params(ks[5]),
        "we": 0.1 * jax.random.normal(ks[6], (ch_in, ch_out), jnp.float32),
        "be": 0.05 * jax.random.normal(ks[7], (ch_out,), jnp.float32),
        "bne": bn_params(ks[8]),
    }


if __name__ == "__main__":
    key = jax.random.PRNGKey(0)
    k_x, k_p = jax.random.split(key)

    N, CH_IN, CH_OUT, HW = 2, 4, 8, 16
    x = jax.random.normal(k_x, (N, CH_IN, HW, HW), jnp.float32)   # NCHW, like PyTorch
    params = init_params(k_p, CH_IN, CH_OUT)

    out = resblk_forward(x, params)
    out = jax.block_until_ready(out)

    ref = jax.block_until_ready(resblk_reference(x, params))
    assert out.shape == (N, CH_OUT, HW, HW), out.shape
    # bf16 MXU operands vs. f32 reference -> loosened tolerance.
    np.testing.assert_allclose(np.asarray(out), np.asarray(ref), rtol=2e-2, atol=2e-2)

    print("KERNEL_OK")
</pallas_src>

<mosaic_0001>
module attributes {stable_mosaic.version = 11 : i64} {
  func.func @resblk_kernel(%arg0: i32, %arg1: memref<1x16x16x4xf32, #tpu.memory_space<vmem>>, %arg2: memref<36x8xbf16, #tpu.memory_space<vmem>>, %arg3: memref<2x8xf32, #tpu.memory_space<vmem>>, %arg4: memref<72x8xbf16, #tpu.memory_space<vmem>>, %arg5: memref<2x8xf32, #tpu.memory_space<vmem>>, %arg6: memref<4x8xbf16, #tpu.memory_space<vmem>>, %arg7: memref<2x8xf32, #tpu.memory_space<vmem>>, %arg8: memref<1x16x16x8xf32, #tpu.memory_space<vmem>>, %arg9: memref<1x18x24x4xf32, #tpu.memory_space<vmem>>, %arg10: memref<1x18x24x8xf32, #tpu.memory_space<vmem>>) attributes {dimension_semantics = [#tpu.dimension_semantics<parallel>], iteration_bounds = array<i64: 2>, scalar_prefetch = 0 : i64, scratch_operands = 2 : i64, tpu.core_type = #tpu.core_type<tc>, window_params = [{transform_indices = @transform_0, window_bounds = array<i64: 1, 16, 16, 4>}, {pipeline_mode = #tpu.pipeline_mode<synchronous>, transform_indices = @transform_1, window_bounds = array<i64: 36, 8>}, {pipeline_mode = #tpu.pipeline_mode<synchronous>, transform_indices = @transform_2, window_bounds = array<i64: 2, 8>}, {pipeline_mode = #tpu.pipeline_mode<synchronous>, transform_indices = @transform_3, window_bounds = array<i64: 72, 8>}, {pipeline_mode = #tpu.pipeline_mode<synchronous>, transform_indices = @transform_4, window_bounds = array<i64: 2, 8>}, {pipeline_mode = #tpu.pipeline_mode<synchronous>, transform_indices = @transform_5, window_bounds = array<i64: 4, 8>}, {pipeline_mode = #tpu.pipeline_mode<synchronous>, transform_indices = @transform_6, window_bounds = array<i64: 2, 8>}, {transform_indices = @transform_7, window_bounds = array<i64: 1, 16, 16, 8>}]} {
    %c0 = arith.constant 0 : index
    %c0_0 = arith.constant 0 : index
    %c0_1 = arith.constant 0 : index
    %c0_2 = arith.constant 0 : index
    %0 = vector.load %arg1[%c0, %c0_0, %c0_1, %c0_2] : memref<1x16x16x4xf32, #tpu.memory_space<vmem>>, vector<1x16x16x4xf32>
    %cst = arith.constant 0.000000e+00 : f32
    %1 = vector.broadcast %cst : f32 to vector<1x1x24x4xf32>
    %c0_3 = arith.constant 0 : index
    %c0_4 = arith.constant 0 : index
    %c0_5 = arith.constant 0 : index
    %c0_6 = arith.constant 0 : index
    %2 = vector.load %arg9[%c0_3, %c0_4, %c0_5, %c0_6] : memref<1x18x24x4xf32, #tpu.memory_space<vmem>>, vector<1x1x24x4xf32>
    tpu.vector_store %arg9[%c0_3, %c0_4, %c0_5, %c0_6], %1 {strides = array<i32>} : memref<1x18x24x4xf32, #tpu.memory_space<vmem>>, vector<1x1x24x4xf32>,
    %cst_7 = arith.constant 0.000000e+00 : f32
    %3 = vector.broadcast %cst_7 : f32 to vector<1x1x24x4xf32>
    %c0_8 = arith.constant 0 : index
    %c17 = arith.constant 17 : index
    %c0_9 = arith.constant 0 : index
    %c0_10 = arith.constant 0 : index
    %4 = vector.load %arg9[%c0_8, %c17, %c0_9, %c0_10] : memref<1x18x24x4xf32, #tpu.memory_space<vmem>>, vector<1x1x24x4xf32>
    tpu.vector_store %arg9[%c0_8, %c17, %c0_9, %c0_10], %3 {strides = array<i32>} : memref<1x18x24x4xf32, #tpu.memory_space<vmem>>, vector<1x1x24x4xf32>,
    %cst_11 = arith.constant 0.000000e+00 : f32
    %5 = vector.broadcast %cst_11 : f32 to vector<1x18x1x4xf32>
    %c0_12 = arith.constant 0 : index
    %c0_13 = arith.constant 0 : index
    %c0_14 = arith.constant 0 : index
    %c0_15 = arith.constant 0 : index
    %6 = vector.load %arg9[%c0_12, %c0_13, %c0_14, %c0_15] : memref<1x18x24x4xf32, #tpu.memory_space<vmem>>, vector<1x18x1x4xf32>
    tpu.vector_store %arg9[%c0_12, %c0_13, %c0_14, %c0_15], %5 {strides = array<i32>} : memref<1x18x24x4xf32, #tpu.memory_space<vmem>>, vector<1x18x1x4xf32>,
    %cst_16 = arith.constant 0.000000e+00 : f32
    %7 = vector.broadcast %cst_16 : f32 to vector<1x18x1x4xf32>
    %c0_17 = arith.constant 0 : index
    %c0_18 = arith.constant 0 : index
    %c17_19 = arith.constant 17 : index
    %c0_20 = arith.constant 0 : index
    %8 = vector.load %arg9[%c0_17, %c0_18, %c17_19, %c0_20] : memref<1x18x24x4xf32, #tpu.memory_space<vmem>>, vector<1x18x1x4xf32>
    tpu.vector_store %arg9[%c0_17, %c0_18, %c17_19, %c0_20], %7 {strides = array<i32>} : memref<1x18x24x4xf32, #tpu.memory_space<vmem>>, vector<1x18x1x4xf32>,
    %c0_21 = arith.constant 0 : index
    %c1 = arith.constant 1 : index
    %c1_22 = arith.constant 1 : index
    %c0_23 = arith.constant 0 : index
    %9 = vector.load %arg9[%c0_21, %c1, %c1_22, %c0_23] : memref<1x18x24x4xf32, #tpu.memory_space<vmem>>, vector<1x16x16x4xf32>
    tpu.vector_store %arg9[%c0_21, %c1, %c1_22, %c0_23], %0 {strides = array<i32>} : memref<1x18x24x4xf32, #tpu.memory_space<vmem>>, vector<1x16x16x4xf32>,
    %c0_24 = arith.constant 0 : index
    %c0_25 = arith.constant 0 : index
    %c0_26 = arith.constant 0 : index
    %c0_27 = arith.constant 0 : index
    %10 = vector.load %arg9[%c0_24, %c0_25, %c0_26, %c0_27] : memref<1x18x24x4xf32, #tpu.memory_space<vmem>>, vector<1x18x24x4xf32>
    %11 = vector.extract_strided_slice %10 {offsets = [0, 0, 0, 0], sizes = [1, 16, 16, 4], strides = [1, 1, 1, 1]} : vector<1x18x24x4xf32> to vector<1x16x16x4xf32>
    %12 = vector.extract_strided_slice %10 {offsets = [0, 0, 1, 0], sizes = [1, 16, 16, 4], strides = [1, 1, 1, 1]} : vector<1x18x24x4xf32> to vector<1x16x16x4xf32>
    %13 = vector.extract_strided_slice %10 {offsets = [0, 0, 2, 0], sizes = [1, 16, 16, 4], strides = [1, 1, 1, 1]} : vector<1x18x24x4xf32> to vector<1x16x16x4xf32>
    %14 = vector.extract_strided_slice %10 {offsets = [0, 1, 0, 0], sizes = [1, 16, 16, 4], strides = [1, 1, 1, 1]} : vector<1x18x24x4xf32> to vector<1x16x16x4xf32>
    %15 = vector.extract_strided_slice %10 {offsets = [0, 1, 1, 0], sizes = [1, 16, 16, 4], strides = [1, 1, 1, 1]} : vector<1x18x24x4xf32> to vector<1x16x16x4xf32>
    %16 = vector.extract_strided_slice %10 {offsets = [0, 1, 2, 0], sizes = [1, 16, 16, 4], strides = [1, 1, 1, 1]} : vector<1x18x24x4xf32> to vector<1x16x16x4xf32>
    %17 = vector.extract_strided_slice %10 {offsets = [0, 2, 0, 0], sizes = [1, 16, 16, 4], strides = [1, 1, 1, 1]} : vector<1x18x24x4xf32> to vector<1x16x16x4xf32>
    %18 = vector.extract_strided_slice %10 {offsets = [0, 2, 1, 0], sizes = [1, 16, 16, 4], strides = [1, 1, 1, 1]} : vector<1x18x24x4xf32> to vector<1x16x16x4xf32>
    %19 = vector.extract_strided_slice %10 {offsets = [0, 2, 2, 0], sizes = [1, 16, 16, 4], strides = [1, 1, 1, 1]} : vector<1x18x24x4xf32> to vector<1x16x16x4xf32>
    %20 = tpu.concatenate %11, %12, %13, %14, %15, %16, %17, %18, %19 in 3 : vector<1x16x16x4xf32>, vector<1x16x16x4xf32>, vector<1x16x16x4xf32>, vector<1x16x16x4xf32>, vector<1x16x16x4xf32>, vector<1x16x16x4xf32>, vector<1x16x16x4xf32>, vector<1x16x16x4xf32>, vector<1x16x16x4xf32> -> vector<1x16x16x36xf32>
    %21 = vector.shape_cast %20 : vector<1x16x16x36xf32> to vector<256x36xf32>
    %22 = arith.truncf %21 : vector<256x36xf32> to vector<256x36xbf16>
    %c0_28 = arith.constant 0 : index
    %c0_29 = arith.constant 0 : index
    %23 = vector.load %arg2[%c0_28, %c0_29] : memref<36x8xbf16, #tpu.memory_space<vmem>>, vector<36x8xbf16>
    %cst_30 = arith.constant dense<0.000000e+00> : vector<256x8xf32>
    %24 = tpu.matmul %22, %23, %cst_30 {dimension_numbers = #tpu.dot_dimension_numbers<[1], [0], [0], [1], [0, 0, 1, 1], [], []>} : vector<256x36xbf16>, vector<36x8xbf16>, vector<256x8xf32> -> vector<256x8xf32>
    %c0_31 = arith.constant 0 : index
    %c0_32 = arith.constant 0 : index
    %25 = vector.load %arg3[%c0_31, %c0_32] : memref<2x8xf32, #tpu.memory_space<vmem>>, vector<1x8xf32>
    %26 = vector.broadcast %25 : vector<1x8xf32> to vector<256x8xf32>
    %27 = arith.mulf %24, %26 : vector<256x8xf32>
    %c1_33 = arith.constant 1 : index
    %c0_34 = arith.constant 0 : index
    %28 = vector.load %arg3[%c1_33, %c0_34] : memref<2x8xf32, #tpu.memory_space<vmem>>, vector<1x8xf32>
    %29 = vector.broadcast %28 : vector<1x8xf32> to vector<256x8xf32>
    %30 = arith.addf %27, %29 : vector<256x8xf32>
    %cst_35 = arith.constant 0.000000e+00 : f32
    %31 = vector.broadcast %cst_35 : f32 to vector<256x8xf32>
    %32 = arith.maximumf %30, %31 : vector<256x8xf32>
    %cst_36 = arith.constant 0.000000e+00 : f32
    %33 = vector.broadcast %cst_36 : f32 to vector<1x1x24x8xf32>
    %c0_37 = arith.constant 0 : index
    %c0_38 = arith.constant 0 : index
    %c0_39 = arith.constant 0 : index
    %c0_40 = arith.constant 0 : index
    %34 = vector.load %arg10[%c0_37, %c0_38, %c0_39, %c0_40] : memref<1x18x24x8xf32, #tpu.memory_space<vmem>>, vector<1x1x24x8xf32>
    tpu.vector_store %arg10[%c0_37, %c0_38, %c0_39, %c0_40], %33 {strides = array<i32>} : memref<1x18x24x8xf32, #tpu.memory_space<vmem>>, vector<1x1x24x8xf32>,
    %cst_41 = arith.constant 0.000000e+00 : f32
    %35 = vector.broadcast %cst_41 : f32 to vector<1x1x24x8xf32>
    %c0_42 = arith.constant 0 : index
    %c17_43 = arith.constant 17 : index
    %c0_44 = arith.constant 0 : index
    %c0_45 = arith.constant 0 : index
    %36 = vector.load %arg10[%c0_42, %c17_43, %c0_44, %c0_45] : memref<1x18x24x8xf32, #tpu.memory_space<vmem>>, vector<1x1x24x8xf32>
    tpu.vector_store %arg10[%c0_42, %c17_43, %c0_44, %c0_45], %35 {strides = array<i32>} : memref<1x18x24x8xf32, #tpu.memory_space<vmem>>, vector<1x1x24x8xf32>,
    %cst_46 = arith.constant 0.000000e+00 : f32
    %37 = vector.broadcast %cst_46 : f32 to vector<1x18x1x8xf32>
    %c0_47 = arith.constant 0 : index
    %c0_48 = arith.constant 0 : index
    %c0_49 = arith.constant 0 : index
    %c0_50 = arith.constant 0 : index
    %38 = vector.load %arg10[%c0_47, %c0_48, %c0_49, %c0_50] : memref<1x18x24x8xf32, #tpu.memory_space<vmem>>, vector<1x18x1x8xf32>
    tpu.vector_store %arg10[%c0_47, %c0_48, %c0_49, %c0_50], %37 {strides = array<i32>} : memref<1x18x24x8xf32, #tpu.memory_space<vmem>>, vector<1x18x1x8xf32>,
    %cst_51 = arith.constant 0.000000e+00 : f32
    %39 = vector.broadcast %cst_51 : f32 to vector<1x18x1x8xf32>
    %c0_52 = arith.constant 0 : index
    %c0_53 = arith.constant 0 : index
    %c17_54 = arith.constant 17 : index
    %c0_55 = arith.constant 0 : index
    %40 = vector.load %arg10[%c0_52, %c0_53, %c17_54, %c0_55] : memref<1x18x24x8xf32, #tpu.memory_space<vmem>>, vector<1x18x1x8xf32>
    tpu.vector_store %arg10[%c0_52, %c0_53, %c17_54, %c0_55], %39 {strides = array<i32>} : memref<1x18x24x8xf32, #tpu.memory_space<vmem>>, vector<1x18x1x8xf32>,
    %41 = vector.shape_cast %32 : vector<256x8xf32> to vector<1x16x16x8xf32>
    %c0_56 = arith.constant 0 : index
    %c1_57 = arith.constant 1 : index
    %c1_58 = arith.constant 1 : index
    %c0_59 = arith.constant 0 : index
    %42 = vector.load %arg10[%c0_56, %c1_57, %c1_58, %c0_59] : memref<1x18x24x8xf32, #tpu.memory_space<vmem>>, vector<1x16x16x8xf32>
    tpu.vector_store %arg10[%c0_56, %c1_57, %c1_58, %c0_59], %41 {strides = array<i32>} : memref<1x18x24x8xf32, #tpu.memory_space<vmem>>, vector<1x16x16x8xf32>,
    %c0_60 = arith.constant 0 : index
    %c0_61 = arith.constant 0 : index
    %c0_62 = arith.constant 0 : index
    %c0_63 = arith.constant 0 : index
    %43 = vector.load %arg10[%c0_60, %c0_61, %c0_62, %c0_63] : memref<1x18x24x8xf32, #tpu.memory_space<vmem>>, vector<1x18x24x8xf32>
    %44 = vector.extract_strided_slice %43 {offsets = [0, 0, 0, 0], sizes = [1, 16, 16, 8], strides = [1, 1, 1, 1]} : vector<1x18x24x8xf32> to vector<1x16x16x8xf32>
    %45 = vector.extract_strided_slice %43 {offsets = [0, 0, 1, 0], sizes = [1, 16, 16, 8], strides = [1, 1, 1, 1]} : vector<1x18x24x8xf32> to vector<1x16x16x8xf32>
    %46 = vector.extract_strided_slice %43 {offsets = [0, 0, 2, 0], sizes = [1, 16, 16, 8], strides = [1, 1, 1, 1]} : vector<1x18x24x8xf32> to vector<1x16x16x8xf32>
    %47 = vector.extract_strided_slice %43 {offsets = [0, 1, 0, 0], sizes = [1, 16, 16, 8], strides = [1, 1, 1, 1]} : vector<1x18x24x8xf32> to vector<1x16x16x8xf32>
    %48 = vector.extract_strided_slice %43 {offsets = [0, 1, 1, 0], sizes = [1, 16, 16, 8], strides = [1, 1, 1, 1]} : vector<1x18x24x8xf32> to vector<1x16x16x8xf32>
    %49 = vector.extract_strided_slice %43 {offsets = [0, 1, 2, 0], sizes = [1, 16, 16, 8], strides = [1, 1, 1, 1]} : vector<1x18x24x8xf32> to vector<1x16x16x8xf32>
    %50 = vector.extract_strided_slice %43 {offsets = [0, 2, 0, 0], sizes = [1, 16, 16, 8], strides = [1, 1, 1, 1]} : vector<1x18x24x8xf32> to vector<1x16x16x8xf32>
    %51 = vector.extract_strided_slice %43 {offsets = [0, 2, 1, 0], sizes = [1, 16, 16, 8], strides = [1, 1, 1, 1]} : vector<1x18x24x8xf32> to vector<1x16x16x8xf32>
    %52 = vector.extract_strided_slice %43 {offsets = [0, 2, 2, 0], sizes = [1, 16, 16, 8], strides = [1, 1, 1, 1]} : vector<1x18x24x8xf32> to vector<1x16x16x8xf32>
    %53 = tpu.concatenate %44, %45, %46, %47, %48, %49, %50, %51, %52 in 3 : vector<1x16x16x8xf32>, vector<1x16x16x8xf32>, vector<1x16x16x8xf32>, vector<1x16x16x8xf32>, vector<1x16x16x8xf32>, vector<1x16x16x8xf32>, vector<1x16x16x8xf32>, vector<1x16x16x8xf32>, vector<1x16x16x8xf32> -> vector<1x16x16x72xf32>
    %54 = vector.shape_cast %53 : vector<1x16x16x72xf32> to vector<256x72xf32>
    %55 = arith.truncf %54 : vector<256x72xf32> to vector<256x72xbf16>
    %c0_64 = arith.constant 0 : index
    %c0_65 = arith.constant 0 : index
    %56 = vector.load %arg4[%c0_64, %c0_65] : memref<72x8xbf16, #tpu.memory_space<vmem>>, vector<72x8xbf16>
    %cst_66 = arith.constant dense<0.000000e+00> : vector<256x8xf32>
    %57 = tpu.matmul %55, %56, %cst_66 {dimension_numbers = #tpu.dot_dimension_numbers<[1], [0], [0], [1], [0, 0, 1, 1], [], []>} : vector<256x72xbf16>, vector<72x8xbf16>, vector<256x8xf32> -> vector<256x8xf32>
    %c0_67 = arith.constant 0 : index
    %c0_68 = arith.constant 0 : index
    %58 = vector.load %arg5[%c0_67, %c0_68] : memref<2x8xf32, #tpu.memory_space<vmem>>, vector<1x8xf32>
    %59 = vector.broadcast %58 : vector<1x8xf32> to vector<256x8xf32>
    %60 = arith.mulf %57, %59 : vector<256x8xf32>
    %c1_69 = arith.constant 1 : index
    %c0_70 = arith.constant 0 : index
    %61 = vector.load %arg5[%c1_69, %c0_70] : memref<2x8xf32, #tpu.memory_space<vmem>>, vector<1x8xf32>
    %62 = vector.broadcast %61 : vector<1x8xf32> to vector<256x8xf32>
    %63 = arith.addf %60, %62 : vector<256x8xf32>
    %64 = vector.shape_cast %0 : vector<1x16x16x4xf32> to vector<256x4xf32>
    %65 = arith.truncf %64 : vector<256x4xf32> to vector<256x4xbf16>
    %c0_71 = arith.constant 0 : index
    %c0_72 = arith.constant 0 : index
    %66 = vector.load %arg6[%c0_71, %c0_72] : memref<4x8xbf16, #tpu.memory_space<vmem>>, vector<4x8xbf16>
    %cst_73 = arith.constant dense<0.000000e+00> : vector<256x8xf32>
    %67 = tpu.matmul %65, %66, %cst_73 {dimension_numbers = #tpu.dot_dimension_numbers<[1], [0], [0], [1], [0, 0, 1, 1], [], []>} : vector<256x4xbf16>, vector<4x8xbf16>, vector<256x8xf32> -> vector<256x8xf32>
    %c0_74 = arith.constant 0 : index
    %c0_75 = arith.constant 0 : index
    %68 = vector.load %arg7[%c0_74, %c0_75] : memref<2x8xf32, #tpu.memory_space<vmem>>, vector<1x8xf32>
    %69 = vector.broadcast %68 : vector<1x8xf32> to vector<256x8xf32>
    %70 = arith.mulf %67, %69 : vector<256x8xf32>
    %c1_76 = arith.constant 1 : index
    %c0_77 = arith.constant 0 : index
    %71 = vector.load %arg7[%c1_76, %c0_77] : memref<2x8xf32, #tpu.memory_space<vmem>>, vector<1x8xf32>
    %72 = vector.broadcast %71 : vector<1x8xf32> to vector<256x8xf32>
    %73 = arith.addf %70, %72 : vector<256x8xf32>
    %74 = arith.addf %73, %63 : vector<256x8xf32>
    %75 = vector.shape_cast %74 : vector<256x8xf32> to vector<1x16x16x8xf32>
    %c0_78 = arith.constant 0 : index
    %c0_79 = arith.constant 0 : index
    %c0_80 = arith.constant 0 : index
    %c0_81 = arith.constant 0 : index
    %76 = vector.load %arg8[%c0_78, %c0_79, %c0_80, %c0_81] : memref<1x16x16x8xf32, #tpu.memory_space<vmem>>, vector<1x16x16x8xf32>
    tpu.vector_store %arg8[%c0_78, %c0_79, %c0_80, %c0_81], %75 {strides = array<i32>} : memref<1x16x16x8xf32, #tpu.memory_space<vmem>>, vector<1x16x16x8xf32>,
    return
  }
  func.func @transform_0(%arg0: i32) -> (i32, i32, i32, i32) {
    %c0_i32 = arith.constant 0 : i32
    %c0_i32_0 = arith.constant 0 : i32
    %c0_i32_1 = arith.constant 0 : i32
    %c0_i32_2 = arith.constant 0 : i32
    return %arg0, %c0_i32, %c0_i32_0, %c0_i32_1 : i32, i32, i32, i32
  }
  func.func @transform_1(%arg0: i32) -> (i32, i32) {
    %c0_i32 = arith.constant 0 : i32
    %c0_i32_0 = arith.constant 0 : i32
    %c0_i32_1 = arith.constant 0 : i32
    return %c0_i32, %c0_i32_0 : i32, i32
  }
  func.func @transform_2(%arg0: i32) -> (i32, i32) {
    %c0_i32 = arith.constant 0 : i32
    %c0_i32_0 = arith.constant 0 : i32
    %c0_i32_1 = arith.constant 0 : i32
    return %c0_i32, %c0_i32_0 : i32, i32
  }
  func.func @transform_3(%arg0: i32) -> (i32, i32) {
    %c0_i32 = arith.constant 0 : i32
    %c0_i32_0 = arith.constant 0 : i32
    %c0_i32_1 = arith.constant 0 : i32
    return %c0_i32, %c0_i32_0 : i32, i32
  }
  func.func @transform_4(%arg0: i32) -> (i32, i32) {
    %c0_i32 = arith.constant 0 : i32
    %c0_i32_0 = arith.constant 0 : i32
    %c0_i32_1 = arith.constant 0 : i32
    return %c0_i32, %c0_i32_0 : i32, i32
  }
  func.func @transform_5(%arg0: i32) -> (i32, i32) {
    %c0_i32 = arith.constant 0 : i32
    %c0_i32_0 = arith.constant 0 : i32
    %c0_i32_1 = arith.constant 0 : i32
    return %c0_i32, %c0_i32_0 : i32, i32
  }
  func.func @transform_6(%arg0: i32) -> (i32, i32) {
    %c0_i32 = arith.constant 0 : i32
    %c0_i32_0 = arith.constant 0 : i32
    %c0_i32_1 = arith.constant 0 : i32
    return %c0_i32, %c0_i32_0 : i32, i32
  }
  func.func @transform_7(%arg0: i32) -> (i32, i32, i32, i32) {
    %c0_i32 = arith.constant 0 : i32
    %c0_i32_0 = arith.constant 0 : i32
    %c0_i32_1 = arith.constant 0 : i32
    %c0_i32_2 = arith.constant 0 : i32
    return %arg0, %c0_i32, %c0_i32_0, %c0_i32_1 : i32, i32, i32, i32
  }
}

</mosaic_0001>

<llo_original>
// kernel: resblk_forward.1
$region0: #{resblk_forward.1}
  #allocation0 [shape = 'u32[]', space=smem, size = 0x4, offset = 0x4, fixed_abs, tag = 'smem constant byte address 0x4 - core index']
  #allocation1 [shape = 'u32[144,128]{1,0:T(1,128)}', space=vmem, size = 0x12000, scoped, tag = 'internal scratch']
  #allocation2 [shape = 'f32[1,18,24,4]{3,2,1,0:T(8,128)}', space=vmem, size = 0x36000, scoped, tag = 'scratch operand']
  #allocation3 [shape = 'f32[1,18,24,8]{3,2,1,0:T(8,128)}', space=vmem, size = 0x36000, scoped, tag = 'scratch operand']
  %s0 = inlined_call_operand.vmem [shape: f32[2,16,16,4], index: 0, kind: input, shape index: {}]
  %s1 = inlined_call_operand.vmem [shape: bf16[36,8], index: 1, kind: input, shape index: {}]
  %s2 = inlined_call_operand.vmem [shape: f32[2,8], index: 2, kind: input, shape index: {}]
  %s3 = inlined_call_operand.vmem [shape: bf16[72,8], index: 3, kind: input, shape index: {}]
  %s4 = inlined_call_operand.vmem [shape: f32[2,8], index: 4, kind: input, shape index: {}]
  %s5 = inlined_call_operand.vmem [shape: bf16[4,8], index: 5, kind: input, shape index: {}]
  %s6 = inlined_call_operand.vmem [shape: f32[2,8], index: 6, kind: input, shape index: {}]
  %s7 = inlined_call_operand.vmem [shape: f32[2,16,16,8], index: 7, kind: output, shape index: {}]
  %s8 = sld [smem:[#allocation0]]
  $region61: #{resblk_forward.1} parent=0
    _
  %s10 = ssub.s32 1, %s8
  %s11 = scalar_select 0, %s10, %s8
  loop: start=0, step=1, limit=4
  $region2: #{resblk_forward.1} parent=0 // loop_pre_header
    _
  $region3: #{resblk_forward.1} parent=0 // loop_header
    %s13 = sphi 0, %s17
    %p14 = scmp.ge.s32.totalorder %s13, 4
    %s23 = sphi 0, %s25
    %s26 = sphi 0, %s23
    %s27 = sphi 0, %s26
    %s43 = sphi 0, %s27
    %s47 = sphi 0, %s47
    %s49 = sphi 0, %s47
    %s50 = sphi 0, %s49
    %s64 = sphi 0, %s50
    %s68 = sphi 0, %s68
    %s70 = sphi 0, %s68
    %s71 = sphi 0, %s70
    %s85 = sphi 0, %s71
    %s89 = sphi 0, %s89
    %s91 = sphi 0, %s89
    %s92 = sphi 0, %s91
    %s106 = sphi 0, %s92
    %s110 = sphi 0, %s110
    %s112 = sphi 0, %s110
    %s113 = sphi 0, %s112
    %s127 = sphi 0, %s113
    %s131 = sphi 0, %s131
    %s133 = sphi 0, %s131
    %s134 = sphi 0, %s133
    %s148 = sphi 0, %s134
    %s152 = sphi 0, %s152
    %s154 = sphi 0, %s152
    %s155 = sphi 0, %s154
    %s169 = sphi 0, %s155
    %s175 = sphi 0, %s177
    %s178 = sphi 0, %s175
    %s179 = sphi 0, %s178
    %s195 = sphi 0, %s179
  $region4: #{resblk_forward.1} parent=0 // loop_header_branch
    %16 = sbr.rel (%p14) target = $region8
  $region5: #{resblk_forward.1} parent=0 // loop_body
    %s18 = ssub.s32 %s13, 1
    %s19 = ssub.s32 %s13, 2
    %s20 = sadd.s32 %s13, 1
    %s21 = ssub.s32 %s13, %s20
    %p22 = scmp.eq.s32.totalorder %s21, 0
    %s24 = sadd.s32 %s23, 1
    %s25 = scalar_select %p22, %s23, %s24
    %p28 = pneg %p22
    %p29 = scmp.eq.s32.totalorder %s13, 1
    %p30 = por %p28, %p29
    %p31 = scmp.ne.s32.totalorder %s23, %s26
    %p32 = scmp.eq.s32.totalorder %s13, 0
    %p33 = por %p31, %p32
    %p34 = scmp.ne.s32.totalorder %s23, %s26
    %p35 = scmp.eq.s32.totalorder %s18, 1
    %p36 = por %p34, %p35
    %p37 = scmp.ne.s32.totalorder %s26, %s27
    %p38 = scmp.eq.s32.totalorder %s18, 0
    %p39 = por %p37, %p38
    %p40 = scmp.ne.s32.totalorder %s26, %s27
    %p41 = scmp.eq.s32.totalorder %s19, 1
    %p42 = por %p40, %p41
    %p44 = scmp.ne.s32.totalorder %s27, %s43
    %p45 = scmp.eq.s32.totalorder %s19, 0
    %p46 = por %p44, %p45
    %s48 = sadd.s32 %s47, 1
    %p51 = scmp.eq.s32.totalorder %s13, 1
    %p52 = scmp.ne.s32.totalorder %s47, %s49
    %p53 = scmp.eq.s32.totalorder %s13, 0
    %p54 = por %p52, %p53
    %p55 = scmp.ne.s32.totalorder %s47, %s49
    %p56 = scmp.eq.s32.totalorder %s18, 1
    %p57 = por %p55, %p56
    %p58 = scmp.ne.s32.totalorder %s49, %s50
    %p59 = scmp.eq.s32.totalorder %s18, 0
    %p60 = por %p58, %p59
    %p61 = scmp.ne.s32.totalorder %s49, %s50
    %p62 = scmp.eq.s32.totalorder %s19, 1
    %p63 = por %p61, %p62
    %p65 = scmp.ne.s32.totalorder %s50, %s64
    %p66 = scmp.eq.s32.totalorder %s19, 0
    %p67 = por %p65, %p66
    %s69 = sadd.s32 %s68, 1
    %p72 = scmp.eq.s32.totalorder %s13, 1
    %p73 = scmp.ne.s32.totalorder %s68, %s70
    %p74 = scmp.eq.s32.totalorder %s13, 0
    %p75 = por %p73, %p74
    %p76 = scmp.ne.s32.totalorder %s68, %s70
    %p77 = scmp.eq.s32.totalorder %s18, 1
    %p78 = por %p76, %p77
    %p79 = scmp.ne.s32.totalorder %s70, %s71
    %p80 = scmp.eq.s32.totalorder %s18, 0
    %p81 = por %p79, %p80
    %p82 = scmp.ne.s32.totalorder %s70, %s71
    %p83 = scmp.eq.s32.totalorder %s19, 1
    %p84 = por %p82, %p83
    %p86 = scmp.ne.s32.totalorder %s71, %s85
    %p87 = scmp.eq.s32.totalorder %s19, 0
    %p88 = por %p86, %p87
    %s90 = sadd.s32 %s89, 1
    %p93 = scmp.eq.s32.totalorder %s13, 1
    %p94 = scmp.ne.s32.totalorder %s89, %s91
    %p95 = scmp.eq.s32.totalorder %s13, 0
    %p96 = por %p94, %p95
    %p97 = scmp.ne.s32.totalorder %s89, %s91
    %p98 = scmp.eq.s32.totalorder %s18, 1
    %p99 = por %p97, %p98
    %p100 = scmp.ne.s32.totalorder %s91, %s92
    %p101 = scmp.eq.s32.totalorder %s18, 0
    %p102 = por %p100, %p101
    %p103 = scmp.ne.s32.totalorder %s91, %s92
    %p104 = scmp.eq.s32.totalorder %s19, 1
    %p105 = por %p103, %p104
    %p107 = scmp.ne.s32.totalorder %s92, %s106
    %p108 = scmp.eq.s32.totalorder %s19, 0
    %p109 = por %p107, %p108
    %s111 = sadd.s32 %s110, 1
    %p114 = scmp.eq.s32.totalorder %s13, 1
    %p115 = scmp.ne.s32.totalorder %s110, %s112
    %p116 = scmp.eq.s32.totalorder %s13, 0
    %p117 = por %p115, %p116
    %p118 = scmp.ne.s32.totalorder %s110, %s112
    %p119 = scmp.eq.s32.totalorder %s18, 1
    %p120 = por %p118, %p119
    %p121 = scmp.ne.s32.totalorder %s112, %s113
    %p122 = scmp.eq.s32.totalorder %s18, 0
    %p123 = por %p121, %p122
    %p124 = scmp.ne.s32.totalorder %s112, %s113
    %p125 = scmp.eq.s32.totalorder %s19, 1
    %p126 = por %p124, %p125
    %p128 = scmp.ne.s32.totalorder %s113, %s127
    %p129 = scmp.eq.s32.totalorder %s19, 0
    %p130 = por %p128, %p129
    %s132 = sadd.s32 %s131, 1
    %p135 = scmp.eq.s32.totalorder %s13, 1
    %p136 = scmp.ne.s32.totalorder %s131, %s133
    %p137 = scmp.eq.s32.totalorder %s13, 0
    %p138 = por %p136, %p137
    %p139 = scmp.ne.s32.totalorder %s131, %s133
    %p140 = scmp.eq.s32.totalorder %s18, 1
    %p141 = por %p139, %p140
    %p142 = scmp.ne.s32.totalorder %s133, %s134
    %p143 = scmp.eq.s32.totalorder %s18, 0
    %p144 = por %p142, %p143
    %p145 = scmp.ne.s32.totalorder %s133, %s134
    %p146 = scmp.eq.s32.totalorder %s19, 1
    %p147 = por %p145, %p146
    %p149 = scmp.ne.s32.totalorder %s134, %s148
    %p150 = scmp.eq.s32.totalorder %s19, 0
    %p151 = por %p149, %p150
    %s153 = sadd.s32 %s152, 1
    %p156 = scmp.eq.s32.totalorder %s13, 1
    %p157 = scmp.ne.s32.totalorder %s152, %s154
    %p158 = scmp.eq.s32.totalorder %s13, 0
    %p159 = por %p157, %p158
    %p160 = scmp.ne.s32.totalorder %s152, %s154
    %p161 = scmp.eq.s32.totalorder %s18, 1
    %p162 = por %p160, %p161
    %p163 = scmp.ne.s32.totalorder %s154, %s155
    %p164 = scmp.eq.s32.totalorder %s18, 0
    %p165 = por %p163, %p164
    %p166 = scmp.ne.s32.totalorder %s154, %s155
    %p167 = scmp.eq.s32.totalorder %s19, 1
    %p168 = por %p166, %p167
    %p170 = scmp.ne.s32.totalorder %s155, %s169
    %p171 = scmp.eq.s32.totalorder %s19, 0
    %p172 = por %p170, %p171
    %s173 = ssub.s32 %s13, %s20
    %p174 = scmp.eq.s32.totalorder %s173, 0
    %s176 = sadd.s32 %s175, 1
    %s177 = scalar_select %p174, %s175, %s176
    %p180 = pneg %p174
    %p181 = scmp.eq.s32.totalorder %s13, 1
    %p182 = por %p180, %p181
    %p183 = scmp.ne.s32.totalorder %s175, %s178
    %p184 = scmp.eq.s32.totalorder %s13, 0
    %p185 = por %p183, %p184
    %p186 = scmp.ne.s32.totalorder %s175, %s178
    %p187 = scmp.eq.s32.totalorder %s18, 1
    %p188 = por %p186, %p187
    %p189 = scmp.ne.s32.totalorder %s178, %s179
    %p190 = scmp.eq.s32.totalorder %s18, 0
    %p191 = por %p189, %p190
    %p192 = scmp.ne.s32.totalorder %s178, %s179
    %p193 = scmp.eq.s32.totalorder %s19, 1
    %p194 = por %p192, %p193
    %p196 = scmp.ne.s32.totalorder %s179, %s195
    %p197 = scmp.eq.s32.totalorder %s19, 0
    %p198 = por %p196, %p197
    %p199 = scmp.le.s32.totalorder 1, %s13
    %p200 = scmp.lt.s32.totalorder %s13, 3
    %p201 = pnand %p199, %p200
    %p202 = pneg %p201
    // Predicated region
    $region9: #{resblk_forward.1} parent=5 // pred_check
      _
    $region10: #{resblk_forward.1} parent=5 // pred_check_branch
      %204 = sbr.rel (%p201) target = $region12
    $region11: #{resblk_forward.1} parent=5 // pred_region
      %s205 = ssub.s32 %s13, 1
      // Predicated region
      $region13: #{resblk_forward.1} parent=11 // pred_check
        %p206 = pneg %p60
      $region14: #{resblk_forward.1} parent=11 // pred_check_branch
        %208 = sbr.rel (%p206) target = $region16
      $region15: #{resblk_forward.1} parent=11 // pred_region
        _
      $region16: #{resblk_forward.1} parent=11 // pred_fallthru
        _
      // Predicated region
      $region17: #{resblk_forward.1} parent=11 // pred_check
        %p209 = pneg %p81
      $region18: #{resblk_forward.1} parent=11 // pred_check_branch
        %211 = sbr.rel (%p209) target = $region20
      $region19: #{resblk_forward.1} parent=11 // pred_region
        _
      $region20: #{resblk_forward.1} parent=11 // pred_fallthru
        _
      // Predicated region
      $region21: #{resblk_forward.1} parent=11 // pred_check
        %p212 = pneg %p102
      $region22: #{resblk_forward.1} parent=11 // pred_check_branch
        %214 = sbr.rel (%p212) target = $region24
      $region23: #{resblk_forward.1} parent=11 // pred_region
        _
      $region24: #{resblk_forward.1} parent=11 // pred_fallthru
        _
      // Predicated region
      $region25: #{resblk_forward.1} parent=11 // pred_check
        %p215 = pneg %p123
      $region26: #{resblk_forward.1} parent=11 // pred_check_branch
        %217 = sbr.rel (%p215) target = $region28
      $region27: #{resblk_forward.1} parent=11 // pred_region
        _
      $region28: #{resblk_forward.1} parent=11 // pred_fallthru
        _
      // Predicated region
      $region29: #{resblk_forward.1} parent=11 // pred_check
        %p218 = pneg %p144
      $region30: #{resblk_forward.1} parent=11 // pred_check_branch
        %220 = sbr.rel (%p218) target = $region32
      $region31: #{resblk_forward.1} parent=11 // pred_region
        _
      $region32: #{resblk_forward.1} parent=11 // pred_fallthru
        _
      // Predicated region
      $region33: #{resblk_forward.1} parent=11 // pred_check
        %p221 = pneg %p165
      $region34: #{resblk_forward.1} parent=11 // pred_check_branch
        %223 = sbr.rel (%p221) target = $region36
      $region35: #{resblk_forward.1} parent=11 // pred_region
        _
      $region36: #{resblk_forward.1} parent=11 // pred_fallthru
        _
    $region12: #{resblk_forward.1} parent=5 // pred_fallthru
      _
    %p224 = scmp.lt.s32.totalorder %s13, 2
    // Predicated region
    $region37: #{resblk_forward.1} parent=5 // pred_check
      %p225 = pneg %p224
    $region38: #{resblk_forward.1} parent=5 // pred_check_branch
      %227 = sbr.rel (%p225) target = $region40
    $region39: #{resblk_forward.1} parent=5 // pred_region
      // Predicated region
      $region41: #{resblk_forward.1} parent=39 // pred_check
        %p228 = pneg %p33
      $region42: #{resblk_forward.1} parent=39 // pred_check_branch
        %230 = sbr.rel (%p228) target = $region44
      $region43: #{resblk_forward.1} parent=39 // pred_region
        %p231 = scmp.lt.s32.totalorder %s13, 1
        %s232 = scalar_select %p231, %s13, 1
        %s233 = smul.addr %s232, 32
        %s234 = smul.addr %s233, 8
        %s235 = scalar_lea.vmem %s0, %s234
      $region44: #{resblk_forward.1} parent=39 // pred_fallthru
        _
    $region40: #{resblk_forward.1} parent=5 // pred_fallthru
      _
    %p236 = scmp.le.s32.totalorder 1, %s13
    %p237 = scmp.lt.s32.totalorder %s13, 3
    %p238 = pnand %p236, %p237
    %p239 = pneg %p238
    // Predicated region
    $region45: #{resblk_forward.1} parent=5 // pred_check
      _
    $region46: #{resblk_forward.1} parent=5 // pred_check_branch
      %241 = sbr.rel (%p238) target = $region48
    $region47: #{resblk_forward.1} parent=5 // pred_region
      %s242 = ssub.s32 %s13, 1
      %p243 = scmp.lt.s32.totalorder %s18, 1
      %s244 = scalar_select %p243, %s18, 1
      %s245 = smul.addr %s244, 32
      %s246 = smul.addr %s245, 8
      %s247 = scalar_lea.vmem %s0, %s246
      %p248 = pneg %p39
      %p249 = pneg %p36
      %p250 = pneg %p60
      %p251 = pneg %p57
      %p252 = pneg %p81
      %p253 = pneg %p78
      %p254 = pneg %p102
      %p255 = pneg %p99
      %p256 = pneg %p123
      %p257 = pneg %p120
      %p258 = pneg %p144
      %p259 = pneg %p141
      %p260 = pneg %p165
      %p261 = pneg %p162
      %p262 = pneg %p191
      %p263 = pneg %p188
      %p264 = scmp.lt.s32.totalorder %s18, 1
      %s265 = scalar_select %p264, %s18, 1
      %s266 = smul.addr %s265, 32
      %s267 = smul.addr %s266, 8
      %s268 = scalar_lea.vmem %s7, %s267
      %p269 = scmp.lt.s32.totalorder %s18, 1
      %s270 = scalar_select %p269, %s18, 1
      %s271 = smul.addr %s270, 32
      %s272 = smul.addr %s271, 8
      %s273 = scalar_lea.vmem %s0, %s272
      %p274 = scmp.lt.s32.totalorder %s18, 1
      %s275 = scalar_select %p274, %s18, 1
      %s276 = smul.addr %s275, 32
      %s277 = smul.addr %s276, 8
      %s278 = scalar_lea.vmem %s7, %s277
      %v280 = vld [vmem:[%s273] sm:$0xff]
      %v281 = vld [vmem:[%s273 + $0x8] sm:$0xff]
      %v282 = vld [vmem:[%s273 + $0x10] sm:$0xff]
      %v283 = vld [vmem:[%s273 + $0x18] sm:$0xff]
      %v284 = vld [vmem:[%s273 + $0x20] sm:$0xff]
      %v285 = vld [vmem:[%s273 + $0x28] sm:$0xff]
      %v286 = vld [vmem:[%s273 + $0x30] sm:$0xff]
      %v287 = vld [vmem:[%s273 + $0x38] sm:$0xff]
      %v288 = vld [vmem:[%s273 + $0x40] sm:$0xff]
      %v289 = vld [vmem:[%s273 + $0x48] sm:$0xff]
      %v290 = vld [vmem:[%s273 + $0x50] sm:$0xff]
      %v291 = vld [vmem:[%s273 + $0x58] sm:$0xff]
      %v292 = vld [vmem:[%s273 + $0x60] sm:$0xff]
      %v293 = vld [vmem:[%s273 + $0x68] sm:$0xff]
      %v294 = vld [vmem:[%s273 + $0x70] sm:$0xff]
      %v295 = vld [vmem:[%s273 + $0x78] sm:$0xff]
      %v296 = vld [vmem:[%s273 + $0x80] sm:$0xff]
      %v297 = vld [vmem:[%s273 + $0x88] sm:$0xff]
      %v298 = vld [vmem:[%s273 + $0x90] sm:$0xff]
      %v299 = vld [vmem:[%s273 + $0x98] sm:$0xff]
      %v300 = vld [vmem:[%s273 + $0xa0] sm:$0xff]
      %v301 = vld [vmem:[%s273 + $0xa8] sm:$0xff]
      %v302 = vld [vmem:[%s273 + $0xb0] sm:$0xff]
      %v303 = vld [vmem:[%s273 + $0xb8] sm:$0xff]
      %v304 = vld [vmem:[%s273 + $0xc0] sm:$0xff]
      %v305 = vld [vmem:[%s273 + $0xc8] sm:$0xff]
      %v306 = vld [vmem:[%s273 + $0xd0] sm:$0xff]
      %v307 = vld [vmem:[%s273 + $0xd8] sm:$0xff]
      %v308 = vld [vmem:[%s273 + $0xe0] sm:$0xff]
      %v309 = vld [vmem:[%s273 + $0xe8] sm:$0xff]
      %v310 = vld [vmem:[%s273 + $0xf0] sm:$0xff]
      %v311 = vld [vmem:[%s273 + $0xf8] sm:$0xff]
      %vm312 = vcmask 31744
      %313 = vst.msk [vmem:[#allocation2] sm:$0xff] %vm312, 0.0
      %314 = vst.msk [vmem:[#allocation2 + $0x8] sm:$0xff] %vm312, 0.0
      %315 = vst.msk [vmem:[#allocation2 + $0x10] sm:$0xff] %vm312, 0.0
      %s316 = scalar_lea.vmem [#allocation2], 408
      %317 = vst.msk [vmem:[%s316] sm:$0xff] %vm312, 0.0
      %318 = vst.msk [vmem:[%s316 + $0x8] sm:$0xff] %vm312, 0.0
      %319 = vst.msk [vmem:[%s316 + $0x10] sm:$0xff] %vm312, 0.0
      %vm320 = vcmask 24576
      %321 = vst.msk [vmem:[#allocation2] sm:$0x1] %vm320, 0.0
      %322 = vst.msk [vmem:[#allocation2 + $0x18] sm:$0x1] %vm320, 0.0
      %323 = vst.msk [vmem:[#allocation2 + $0x30] sm:$0x1] %vm320, 0.0
      %324 = vst.msk [vmem:[#allocation2 + $0x48] sm:$0x1] %vm320, 0.0
      %325 = vst.msk [vmem:[#allocation2 + $0x60] sm:$0x1] %vm320, 0.0
      %326 = vst.msk [vmem:[#allocation2 + $0x78] sm:$0x1] %vm320, 0.0
      %327 = vst.msk [vmem:[#allocation2 + $0x90] sm:$0x1] %vm320, 0.0
      %328 = vst.msk [vmem:[#allocation2 + $0xa8] sm:$0x1] %vm320, 0.0
      %329 = vst.msk [vmem:[#allocation2 + $0xc0] sm:$0x1] %vm320, 0.0
      %330 = vst.msk [vmem:[#allocation2 + $0xd8] sm:$0x1] %vm320, 0.0
      %331 = vst.msk [vmem:[#allocation2 + $0xf0] sm:$0x1] %vm320, 0.0
      %332 = vst.msk [vmem:[#allocation2 + $0x108] sm:$0x1] %vm320, 0.0
      %333 = vst.msk [vmem:[#allocation2 + $0x120] sm:$0x1] %vm320, 0.0
      %334 = vst.msk [vmem:[#allocation2 + $0x138] sm:$0x1] %vm320, 0.0
      %335 = vst.msk [vmem:[#allocation2 + $0x150] sm:$0x1] %vm320, 0.0
      %336 = vst.msk [vmem:[#allocation2 + $0x168] sm:$0x1] %vm320, 0.0
      %337 = vst.msk [vmem:[#allocation2 + $0x180] sm:$0x1] %vm320, 0.0
      %338 = vst.msk [vmem:[#allocation2 + $0x198] sm:$0x1] %vm320, 0.0
      %339 = vst.msk [vmem:[#allocation2 + $0x11] sm:$0x1] %vm320, 0.0
      %340 = vst.msk [vmem:[#allocation2 + $0x29] sm:$0x1] %vm320, 0.0
      %341 = vst.msk [vmem:[#allocation2 + $0x41] sm:$0x1] %vm320, 0.0
      %342 = vst.msk [vmem:[#allocation2 + $0x59] sm:$0x1] %vm320, 0.0
      %343 = vst.msk [vmem:[#allocation2 + $0x71] sm:$0x1] %vm320, 0.0
      %344 = vst.msk [vmem:[#allocation2 + $0x89] sm:$0x1] %vm320, 0.0
      %345 = vst.msk [vmem:[#allocation2 + $0xa1] sm:$0x1] %vm320, 0.0
      %346 = vst.msk [vmem:[#allocation2 + $0xb9] sm:$0x1] %vm320, 0.0
      %347 = vst.msk [vmem:[#allocation2 + $0xd1] sm:$0x1] %vm320, 0.0
      %348 = vst.msk [vmem:[#allocation2 + $0xe9] sm:$0x1] %vm320, 0.0
      %349 = vst.msk [vmem:[#allocation2 + $0x101] sm:$0x1] %vm320, 0.0
      %350 = vst.msk [vmem:[#allocation2 + $0x119] sm:$0x1] %vm320, 0.0
      %351 = vst.msk [vmem:[#allocation2 + $0x131] sm:$0x1] %vm320, 0.0
      %352 = vst.msk [vmem:[#allocation2 + $0x149] sm:$0x1] %vm320, 0.0
      %353 = vst.msk [vmem:[#allocation2 + $0x161] sm:$0x1] %vm320, 0.0
      %354 = vst.msk [vmem:[#allocation2 + $0x179] sm:$0x1] %vm320, 0.0
      %355 = vst.msk [vmem:[#allocation2 + $0x191] sm:$0x1] %vm320, 0.0
      %356 = vst.msk [vmem:[#allocation2 + $0x1a9] sm:$0x1] %vm320, 0.0
      %s357 = scalar_lea.vmem [#allocation2], 24
      %358 = vst.msk [vmem:[%s357 + $0x1] sm:$0xff] %vm312, %v280
      %359 = vst.msk [vmem:[%s357 + $0x9] sm:$0xff] %vm312, %v281
      %360 = vst.msk [vmem:[%s357 + $0x19] sm:$0xff] %vm312, %v282
      %361 = vst.msk [vmem:[%s357 + $0x21] sm:$0xff] %vm312, %v283
      %362 = vst.msk [vmem:[%s357 + $0x31] sm:$0xff] %vm312, %v284
      %363 = vst.msk [vmem:[%s357 + $0x39] sm:$0xff] %vm312, %v285
      %364 = vst.msk [vmem:[%s357 + $0x49] sm:$0xff] %vm312, %v286
      %365 = vst.msk [vmem:[%s357 + $0x51] sm:$0xff] %vm312, %v287
      %366 = vst.msk [vmem:[%s357 + $0x61] sm:$0xff] %vm312, %v288
      %367 = vst.msk [vmem:[%s357 + $0x69] sm:$0xff] %vm312, %v289
      %368 = vst.msk [vmem:[%s357 + $0x79] sm:$0xff] %vm312, %v290
      %369 = vst.msk [vmem:[%s357 + $0x81] sm:$0xff] %vm312, %v291
      %370 = vst.msk [vmem:[%s357 + $0x91] sm:$0xff] %vm312, %v292
      %371 = vst.msk [vmem:[%s357 + $0x99] sm:$0xff] %vm312, %v293
      %372 = vst.msk [vmem:[%s357 + $0xa9] sm:$0xff] %vm312, %v294
      %373 = vst.msk [vmem:[%s357 + $0xb1] sm:$0xff] %vm312, %v295
      %374 = vst.msk [vmem:[%s357 + $0xc1] sm:$0xff] %vm312, %v296
      %375 = vst.msk [vmem:[%s357 + $0xc9] sm:$0xff] %vm312, %v297
      %376 = vst.msk [vmem:[%s357 + $0xd9] sm:$0xff] %vm312, %v298
      %377 = vst.msk [vmem:[%s357 + $0xe1] sm:$0xff] %vm312, %v299
      %378 = vst.msk [vmem:[%s357 + $0xf1] sm:$0xff] %vm312, %v300
      %379 = vst.msk [vmem:[%s357 + $0xf9] sm:$0xff] %vm312, %v301
      %380 = vst.msk [vmem:[%s357 + $0x109] sm:$0xff] %vm312, %v302
      %381 = vst.msk [vmem:[%s357 + $0x111] sm:$0xff] %vm312, %v303
      %382 = vst.msk [vmem:[%s357 + $0x121] sm:$0xff] %vm312, %v304
      %383 = vst.msk [vmem:[%s357 + $0x129] sm:$0xff] %vm312, %v305
      %384 = vst.msk [vmem:[%s357 + $0x139] sm:$0xff] %vm312, %v306
      %385 = vst.msk [vmem:[%s357 + $0x141] sm:$0xff] %vm312, %v307
      %386 = vst.msk [vmem:[%s357 + $0x151] sm:$0xff] %vm312, %v308
      %387 = vst.msk [vmem:[%s357 + $0x159] sm:$0xff] %vm312, %v309
      %388 = vst.msk [vmem:[%s357 + $0x169] sm:$0xff] %vm312, %v310
      %389 = vst.msk [vmem:[%s357 + $0x171] sm:$0xff] %vm312, %v311
      %v390 = vld [vmem:[#allocation2] sm:$0xff]
      %v391 = vld [vmem:[#allocation2 + $0x8] sm:$0xff]
      %v392 = vld [vmem:[#allocation2 + $0x10] sm:$0xff]
      %v393 = vld [vmem:[#allocation2 + $0x18] sm:$0xff]
      %v394 = vld [vmem:[#allocation2 + $0x20] sm:$0xff]
      %v395 = vld [vmem:[#allocation2 + $0x28] sm:$0xff]
      %v396 = vld [vmem:[#allocation2 + $0x30] sm:$0xff]
      %v397 = vld [vmem:[#allocation2 + $0x38] sm:$0xff]
      %v398 = vld [vmem:[#allocation2 + $0x40] sm:$0xff]
      %v399 = vld [vmem:[#allocation2 + $0x48] sm:$0xff]
      %v400 = vld [vmem:[#allocation2 + $0x50] sm:$0xff]
      %v401 = vld [vmem:[#allocation2 + $0x58] sm:$0xff]
      %v402 = vld [vmem:[#allocation2 + $0x60] sm:$0xff]
      %v403 = vld [vmem:[#allocation2 + $0x68] sm:$0xff]
      %v404 = vld [vmem:[#allocation2 + $0x70] sm:$0xff]
      %v405 = vld [vmem:[#allocation2 + $0x78] sm:$0xff]
      %v406 = vld [vmem:[#allocation2 + $0x80] sm:$0xff]
      %v407 = vld [vmem:[#allocation2 + $0x88] sm:$0xff]
      %v408 = vld [vmem:[#allocation2 + $0x90] sm:$0xff]
      %v409 = vld [vmem:[#allocation2 + $0x98] sm:$0xff]
      %v410 = vld [vmem:[#allocation2 + $0xa0] sm:$0xff]
      %v411 = vld [vmem:[#allocation2 + $0xa8] sm:$0xff]
      %v412 = vld [vmem:[#allocation2 + $0xb0] sm:$0xff]
      %v413 = vld [vmem:[#allocation2 + $0xb8] sm:$0xff]
      %v414 = vld [vmem:[#allocation2 + $0xc0] sm:$0xff]
      %v415 = vld [vmem:[#allocation2 + $0xc8] sm:$0xff]
      %v416 = vld [vmem:[#allocation2 + $0xd0] sm:$0xff]
      %v417 = vld [vmem:[#allocation2 + $0xd8] sm:$0xff]
      %v418 = vld [vmem:[#allocation2 + $0xe0] sm:$0xff]
      %v419 = vld [vmem:[#allocation2 + $0xe8] sm:$0xff]
      %v420 = vld [vmem:[#allocation2 + $0xf0] sm:$0xff]
      %v421 = vld [vmem:[#allocation2 + $0xf8] sm:$0xff]
      %v422 = vld [vmem:[#allocation2 + $0x100] sm:$0xff]
      %v423 = vld [vmem:[#allocation2 + $0x108] sm:$0xff]
      %v424 = vld [vmem:[#allocation2 + $0x110] sm:$0xff]
      %v425 = vld [vmem:[#allocation2 + $0x118] sm:$0xff]
      %v426 = vld [vmem:[#allocation2 + $0x120] sm:$0xff]
      %v427 = vld [vmem:[#allocation2 + $0x128] sm:$0xff]
      %v428 = vld [vmem:[#allocation2 + $0x130] sm:$0xff]
      %v429 = vld [vmem:[#allocation2 + $0x138] sm:$0xff]
      %v430 = vld [vmem:[#allocation2 + $0x140] sm:$0xff]
      %v431 = vld [vmem:[#allocation2 + $0x148] sm:$0xff]
      %v432 = vld [vmem:[#allocation2 + $0x150] sm:$0xff]
      %v433 = vld [vmem:[#allocation2 + $0x158] sm:$0xff]
      %v434 = vld [vmem:[#allocation2 + $0x160] sm:$0xff]
      %v435 = vld [vmem:[#allocation2 + $0x168] sm:$0xff]
      %v436 = vld [vmem:[#allocation2 + $0x170] sm:$0xff]
      %v437 = vld [vmem:[#allocation2 + $0x178] sm:$0xff]
      %v438 = vld [vmem:[#allocation2 + $0x180] sm:$0xff]
      %v439 = vld [vmem:[#allocation2 + $0x188] sm:$0xff]
      %v440 = vld [vmem:[#allocation2 + $0x190] sm:$0xff]
      %v441 = vld [vmem:[#allocation2 + $0x198] sm:$0xff]
      %v442 = vld [vmem:[#allocation2 + $0x1a0] sm:$0xff]
      %v443 = vld [vmem:[#allocation2 + $0x1a8] sm:$0xff]
      %vm492 = vcmask 1046528
      %v493 = vrot.slane %v390, 1
      %v494 = vrot.slane %v391, 1
      %v495 = vsel %vm492, %v493, %v494
      %v496 = vrot.slane %v392, 1
      %v497 = vsel %vm492, %v494, %v496
      %v498 = vrot.slane %v393, 1
      %v499 = vrot.slane %v394, 1
      %v500 = vsel %vm492, %v498, %v499
      %v501 = vrot.slane %v395, 1
      %v502 = vsel %vm492, %v499, %v501
      %v503 = vrot.slane %v396, 1
      %v504 = vrot.slane %v397, 1
      %v505 = vsel %vm492, %v503, %v504
      %v506 = vrot.slane %v398, 1
      %v507 = vsel %vm492, %v504, %v506
      %v508 = vrot.slane %v399, 1
      %v509 = vrot.slane %v400, 1
      %v510 = vsel %vm492, %v508, %v509
      %v511 = vrot.slane %v401, 1
      %v512 = vsel %vm492, %v509, %v511
      %v513 = vrot.slane %v402, 1
      %v514 = vrot.slane %v403, 1
      %v515 = vsel %vm492, %v513, %v514
      %v516 = vrot.slane %v404, 1
      %v517 = vsel %vm492, %v514, %v516
      %v518 = vrot.slane %v405, 1
      %v519 = vrot.slane %v406, 1
      %v520 = vsel %vm492, %v518, %v519
      %v521 = vrot.slane %v407, 1
      %v522 = vsel %vm492, %v519, %v521
      %v523 = vrot.slane %v408, 1
      %v524 = vrot.slane %v409, 1
      %v525 = vsel %vm492, %v523, %v524
      %v526 = vrot.slane %v410, 1
      %v527 = vsel %vm492, %v524, %v526
      %v528 = vrot.slane %v411, 1
      %v529 = vrot.slane %v412, 1
      %v530 = vsel %vm492, %v528, %v529
      %v531 = vrot.slane %v413, 1
      %v532 = vsel %vm492, %v529, %v531
      %v533 = vrot.slane %v414, 1
      %v534 = vrot.slane %v415, 1
      %v535 = vsel %vm492, %v533, %v534
      %v536 = vrot.slane %v416, 1
      %v537 = vsel %vm492, %v534, %v536
      %v538 = vrot.slane %v417, 1
      %v539 = vrot.slane %v418, 1
      %v540 = vsel %vm492, %v538, %v539
      %v541 = vrot.slane %v419, 1
      %v542 = vsel %vm492, %v539, %v541
      %v543 = vrot.slane %v420, 1
      %v544 = vrot.slane %v421, 1
      %v545 = vsel %vm492, %v543, %v544
      %v546 = vrot.slane %v422, 1
      %v547 = vsel %vm492, %v544, %v546
      %v548 = vrot.slane %v423, 1
      %v549 = vrot.slane %v424, 1
      %v550 = vsel %vm492, %v548, %v549
      %v551 = vrot.slane %v425, 1
      %v552 = vsel %vm492, %v549, %v551
      %v553 = vrot.slane %v426, 1
      %v554 = vrot.slane %v427, 1
      %v555 = vsel %vm492, %v553, %v554
      %v556 = vrot.slane %v428, 1
      %v557 = vsel %vm492, %v554, %v556
      %v558 = vrot.slane %v429, 1
      %v559 = vrot.slane %v430, 1
      %v560 = vsel %vm492, %v558, %v559
      %v561 = vrot.slane %v431, 1
      %v562 = vsel %vm492, %v559, %v561
      %v563 = vrot.slane %v432, 1
      %v564 = vrot.slane %v433, 1
      %v565 = vsel %vm492, %v563, %v564
      %v566 = vrot.slane %v434, 1
      %v567 = vsel %vm492, %v564, %v566
      %v568 = vrot.slane %v435, 1
      %v569 = vrot.slane %v436, 1
      %v570 = vsel %vm492, %v568, %v569
      %v571 = vrot.slane %v437, 1
      %v572 = vsel %vm492, %v569, %v571
      %573 = vrot.lane.b32.xlu0 %v495, 4
      %v574 = vpop.permute.xlu0 %573
      %575 = vrot.lane.b32.xlu0 %v497, 4
      %v576 = vpop.permute.xlu0 %575
      %577 = vrot.lane.b32.xlu0 %v500, 4
      %v578 = vpop.permute.xlu0 %577
      %579 = vrot.lane.b32.xlu0 %v502, 4
      %v580 = vpop.permute.xlu0 %579
      %581 = vrot.lane.b32.xlu0 %v505, 4
      %v582 = vpop.permute.xlu0 %581
      %583 = vrot.lane.b32.xlu0 %v507, 4
      %v584 = vpop.permute.xlu0 %583
      %585 = vrot.lane.b32.xlu0 %v510, 4
      %v586 = vpop.permute.xlu0 %585
      %587 = vrot.lane.b32.xlu0 %v512, 4
      %v588 = vpop.permute.xlu0 %587
      %589 = vrot.lane.b32.xlu0 %v515, 4
      %v590 = vpop.permute.xlu0 %589
      %591 = vrot.lane.b32.xlu0 %v517, 4
      %v592 = vpop.permute.xlu0 %591
      %593 = vrot.lane.b32.xlu0 %v520, 4
      %v594 = vpop.permute.xlu0 %593
      %595 = vrot.lane.b32.xlu0 %v522, 4
      %v596 = vpop.permute.xlu0 %595
      %597 = vrot.lane.b32.xlu0 %v525, 4
      %v598 = vpop.permute.xlu0 %597
      %599 = vrot.lane.b32.xlu0 %v527, 4
      %v600 = vpop.permute.xlu0 %599
      %601 = vrot.lane.b32.xlu0 %v530, 4
      %v602 = vpop.permute.xlu0 %601
      %603 = vrot.lane.b32.xlu0 %v532, 4
      %v604 = vpop.permute.xlu0 %603
      %605 = vrot.lane.b32.xlu0 %v535, 4
      %v606 = vpop.permute.xlu0 %605
      %607 = vrot.lane.b32.xlu0 %v537, 4
      %v608 = vpop.permute.xlu0 %607
      %609 = vrot.lane.b32.xlu0 %v540, 4
      %v610 = vpop.permute.xlu0 %609
      %611 = vrot.lane.b32.xlu0 %v542, 4
      %v612 = vpop.permute.xlu0 %611
      %613 = vrot.lane.b32.xlu0 %v545, 4
      %v614 = vpop.permute.xlu0 %613
      %615 = vrot.lane.b32.xlu0 %v547, 4
      %v616 = vpop.permute.xlu0 %615
      %617 = vrot.lane.b32.xlu0 %v550, 4
      %v618 = vpop.permute.xlu0 %617
      %619 = vrot.lane.b32.xlu0 %v552, 4
      %v620 = vpop.permute.xlu0 %619
      %621 = vrot.lane.b32.xlu0 %v555, 4
      %v622 = vpop.permute.xlu0 %621
      %623 = vrot.lane.b32.xlu0 %v557, 4
      %v624 = vpop.permute.xlu0 %623
      %625 = vrot.lane.b32.xlu0 %v560, 4
      %v626 = vpop.permute.xlu0 %625
      %627 = vrot.lane.b32.xlu0 %v562, 4
      %v628 = vpop.permute.xlu0 %627
      %629 = vrot.lane.b32.xlu0 %v565, 4
      %v630 = vpop.permute.xlu0 %629
      %631 = vrot.lane.b32.xlu0 %v567, 4
      %v632 = vpop.permute.xlu0 %631
      %633 = vrot.lane.b32.xlu0 %v570, 4
      %v634 = vpop.permute.xlu0 %633
      %635 = vrot.lane.b32.xlu0 %v572, 4
      %v636 = vpop.permute.xlu0 %635
      %vm669 = vcmask 1045504
      %v670 = vrot.slane %v390, 2
      %v671 = vrot.slane %v391, 2
      %v672 = vsel %vm669, %v670, %v671
      %v673 = vrot.slane %v392, 2
      %v674 = vsel %vm669, %v671, %v673
      %v675 = vrot.slane %v393, 2
      %v676 = vrot.slane %v394, 2
      %v677 = vsel %vm669, %v675, %v676
      %v678 = vrot.slane %v395, 2
      %v679 = vsel %vm669, %v676, %v678
      %v680 = vrot.slane %v396, 2
      %v681 = vrot.slane %v397, 2
      %v682 = vsel %vm669, %v680, %v681
      %v683 = vrot.slane %v398, 2
      %v684 = vsel %vm669, %v681, %v683
      %v685 = vrot.slane %v399, 2
      %v686 = vrot.slane %v400, 2
      %v687 = vsel %vm669, %v685, %v686
      %v688 = vrot.slane %v401, 2
      %v689 = vsel %vm669, %v686, %v688
      %v690 = vrot.slane %v402, 2
      %v691 = vrot.slane %v403, 2
      %v692 = vsel %vm669, %v690, %v691
      %v693 = vrot.slane %v404, 2
      %v694 = vsel %vm669, %v691, %v693
      %v695 = vrot.slane %v405, 2
      %v696 = vrot.slane %v406, 2
      %v697 = vsel %vm669, %v695, %v696
      %v698 = vrot.slane %v407, 2
      %v699 = vsel %vm669, %v696, %v698
      %v700 = vrot.slane %v408, 2
      %v701 = vrot.slane %v409, 2
      %v702 = vsel %vm669, %v700, %v701
      %v703 = vrot.slane %v410, 2
      %v704 = vsel %vm669, %v701, %v703
      %v705 = vrot.slane %v411, 2
      %v706 = vrot.slane %v412, 2
      %v707 = vsel %vm669, %v705, %v706
      %v708 = vrot.slane %v413, 2
      %v709 = vsel %vm669, %v706, %v708
      %v710 = vrot.slane %v414, 2
      %v711 = vrot.slane %v415, 2
      %v712 = vsel %vm669, %v710, %v711
      %v713 = vrot.slane %v416, 2
      %v714 = vsel %vm669, %v711, %v713
      %v715 = vrot.slane %v417, 2
      %v716 = vrot.slane %v418, 2
      %v717 = vsel %vm669, %v715, %v716
      %v718 = vrot.slane %v419, 2
      %v719 = vsel %vm669, %v716, %v718
      %v720 = vrot.slane %v420, 2
      %v721 = vrot.slane %v421, 2
      %v722 = vsel %vm669, %v720, %v721
      %v723 = vrot.slane %v422, 2
      %v724 = vsel %vm669, %v721, %v723
      %v725 = vrot.slane %v423, 2
      %v726 = vrot.slane %v424, 2
      %v727 = vsel %vm669, %v725, %v726
      %v728 = vrot.slane %v425, 2
      %v729 = vsel %vm669, %v726, %v728
      %v730 = vrot.slane %v426, 2
      %v731 = vrot.slane %v427, 2
      %v732 = vsel %vm669, %v730, %v731
      %v733 = vrot.slane %v428, 2
      %v734 = vsel %vm669, %v731, %v733
      %v735 = vrot.slane %v429, 2
      %v736 = vrot.slane %v430, 2
      %v737 = vsel %vm669, %v735, %v736
      %v738 = vrot.slane %v431, 2
      %v739 = vsel %vm669, %v736, %v738
      %v740 = vrot.slane %v432, 2
      %v741 = vrot.slane %v433, 2
      %v742 = vsel %vm669, %v740, %v741
      %v743 = vrot.slane %v434, 2
      %v744 = vsel %vm669, %v741, %v743
      %v745 = vrot.slane %v435, 2
      %v746 = vrot.slane %v436, 2
      %v747 = vsel %vm669, %v745, %v746
      %v748 = vrot.slane %v437, 2
      %v749 = vsel %vm669, %v746, %v748
      %750 = vrot.lane.b32.xlu0 %v672, 8
      %v751 = vpop.permute.xlu0 %750
      %752 = vrot.lane.b32.xlu0 %v674, 8
      %v753 = vpop.permute.xlu0 %752
      %754 = vrot.lane.b32.xlu0 %v677, 8
      %v755 = vpop.permute.xlu0 %754
      %756 = vrot.lane.b32.xlu0 %v679, 8
      %v757 = vpop.permute.xlu0 %756
      %758 = vrot.lane.b32.xlu0 %v682, 8
      %v759 = vpop.permute.xlu0 %758
      %760 = vrot.lane.b32.xlu0 %v684, 8
      %v761 = vpop.permute.xlu0 %760
      %762 = vrot.lane.b32.xlu0 %v687, 8
      %v763 = vpop.permute.xlu0 %762
      %764 = vrot.lane.b32.xlu0 %v689, 8
      %v765 = vpop.permute.xlu0 %764
      %766 = vrot.lane.b32.xlu0 %v692, 8
      %v767 = vpop.permute.xlu0 %766
      %768 = vrot.lane.b32.xlu0 %v694, 8
      %v769 = vpop.permute.xlu0 %768
      %770 = vrot.lane.b32.xlu0 %v697, 8
      %v771 = vpop.permute.xlu0 %770
      %772 = vrot.lane.b32.xlu0 %v699, 8
      %v773 = vpop.permute.xlu0 %772
      %774 = vrot.lane.b32.xlu0 %v702, 8
      %v775 = vpop.permute.xlu0 %774
      %776 = vrot.lane.b32.xlu0 %v704, 8
      %v777 = vpop.permute.xlu0 %776
      %778 = vrot.lane.b32.xlu0 %v707, 8
      %v779 = vpop.permute.xlu0 %778
      %780 = vrot.lane.b32.xlu0 %v709, 8
      %v781 = vpop.permute.xlu0 %780
      %782 = vrot.lane.b32.xlu0 %v712, 8
      %v783 = vpop.permute.xlu0 %782
      %784 = vrot.lane.b32.xlu0 %v714, 8
      %v785 = vpop.permute.xlu0 %784
      %786 = vrot.lane.b32.xlu0 %v717, 8
      %v787 = vpop.permute.xlu0 %786
      %788 = vrot.lane.b32.xlu0 %v719, 8
      %v789 = vpop.permute.xlu0 %788
      %790 = vrot.lane.b32.xlu0 %v722, 8
      %v791 = vpop.permute.xlu0 %790
      %792 = vrot.lane.b32.xlu0 %v724, 8
      %v793 = vpop.permute.xlu0 %792
      %794 = vrot.lane.b32.xlu0 %v727, 8
      %v795 = vpop.permute.xlu0 %794
      %796 = vrot.lane.b32.xlu0 %v729, 8
      %v797 = vpop.permute.xlu0 %796
      %798 = vrot.lane.b32.xlu0 %v732, 8
      %v799 = vpop.permute.xlu0 %798
      %800 = vrot.lane.b32.xlu0 %v734, 8
      %v801 = vpop.permute.xlu0 %800
      %802 = vrot.lane.b32.xlu0 %v737, 8
      %v803 = vpop.permute.xlu0 %802
      %804 = vrot.lane.b32.xlu0 %v739, 8
      %v805 = vpop.permute.xlu0 %804
      %806 = vrot.lane.b32.xlu0 %v742, 8
      %v807 = vpop.permute.xlu0 %806
      %808 = vrot.lane.b32.xlu0 %v744, 8
      %v809 = vpop.permute.xlu0 %808
      %810 = vrot.lane.b32.xlu0 %v747, 8
      %v811 = vpop.permute.xlu0 %810
      %812 = vrot.lane.b32.xlu0 %v749, 8
      %v813 = vpop.permute.xlu0 %812
      %848 = vrot.lane.b32.xlu0 %v393, 12
      %v849 = vpop.permute.xlu0 %848
      %850 = vrot.lane.b32.xlu0 %v394, 12
      %v851 = vpop.permute.xlu0 %850
      %852 = vrot.lane.b32.xlu0 %v396, 12
      %v853 = vpop.permute.xlu0 %852
      %854 = vrot.lane.b32.xlu0 %v397, 12
      %v855 = vpop.permute.xlu0 %854
      %856 = vrot.lane.b32.xlu0 %v399, 12
      %v857 = vpop.permute.xlu0 %856
      %858 = vrot.lane.b32.xlu0 %v400, 12
      %v859 = vpop.permute.xlu0 %858
      %860 = vrot.lane.b32.xlu0 %v402, 12
      %v861 = vpop.permute.xlu0 %860
      %862 = vrot.lane.b32.xlu0 %v403, 12
      %v863 = vpop.permute.xlu0 %862
      %864 = vrot.lane.b32.xlu0 %v405, 12
      %v865 = vpop.permute.xlu0 %864
      %866 = vrot.lane.b32.xlu0 %v406, 12
      %v867 = vpop.permute.xlu0 %866
      %868 = vrot.lane.b32.xlu0 %v408, 12
      %v869 = vpop.permute.xlu0 %868
      %870 = vrot.lane.b32.xlu0 %v409, 12
      %v871 = vpop.permute.xlu0 %870
      %872 = vrot.lane.b32.xlu0 %v411, 12
      %v873 = vpop.permute.xlu0 %872
      %874 = vrot.lane.b32.xlu0 %v412, 12
      %v875 = vpop.permute.xlu0 %874
      %876 = vrot.lane.b32.xlu0 %v414, 12
      %v877 = vpop.permute.xlu0 %876
      %878 = vrot.lane.b32.xlu0 %v415, 12
      %v879 = vpop.permute.xlu0 %878
      %880 = vrot.lane.b32.xlu0 %v417, 12
      %v881 = vpop.permute.xlu0 %880
      %882 = vrot.lane.b32.xlu0 %v418, 12
      %v883 = vpop.permute.xlu0 %882
      %884 = vrot.lane.b32.xlu0 %v420, 12
      %v885 = vpop.permute.xlu0 %884
      %886 = vrot.lane.b32.xlu0 %v421, 12
      %v887 = vpop.permute.xlu0 %886
      %888 = vrot.lane.b32.xlu0 %v423, 12
      %v889 = vpop.permute.xlu0 %888
      %890 = vrot.lane.b32.xlu0 %v424, 12
      %v891 = vpop.permute.xlu0 %890
      %892 = vrot.lane.b32.xlu0 %v426, 12
      %v893 = vpop.permute.xlu0 %892
      %894 = vrot.lane.b32.xlu0 %v427, 12
      %v895 = vpop.permute.xlu0 %894
      %896 = vrot.lane.b32.xlu0 %v429, 12
      %v897 = vpop.permute.xlu0 %896
      %898 = vrot.lane.b32.xlu0 %v430, 12
      %v899 = vpop.permute.xlu0 %898
      %900 = vrot.lane.b32.xlu0 %v432, 12
      %v901 = vpop.permute.xlu0 %900
      %902 = vrot.lane.b32.xlu0 %v433, 12
      %v903 = vpop.permute.xlu0 %902
      %904 = vrot.lane.b32.xlu0 %v435, 12
      %v905 = vpop.permute.xlu0 %904
      %906 = vrot.lane.b32.xlu0 %v436, 12
      %v907 = vpop.permute.xlu0 %906
      %908 = vrot.lane.b32.xlu0 %v438, 12
      %v909 = vpop.permute.xlu0 %908
      %910 = vrot.lane.b32.xlu0 %v439, 12
      %v911 = vpop.permute.xlu0 %910
      %v945 = vrot.slane %v438, 1
      %v946 = vrot.slane %v439, 1
      %v947 = vsel %vm492, %v945, %v946
      %v948 = vrot.slane %v440, 1
      %v949 = vsel %vm492, %v946, %v948
      %950 = vrot.lane.b32.xlu0 %v500, 16
      %v951 = vpop.permute.xlu0 %950
      %952 = vrot.lane.b32.xlu0 %v502, 16
      %v953 = vpop.permute.xlu0 %952
      %954 = vrot.lane.b32.xlu0 %v505, 16
      %v955 = vpop.permute.xlu0 %954
      %956 = vrot.lane.b32.xlu0 %v507, 16
      %v957 = vpop.permute.xlu0 %956
      %958 = vrot.lane.b32.xlu0 %v510, 16
      %v959 = vpop.permute.xlu0 %958
      %960 = vrot.lane.b32.xlu0 %v512, 16
      %v961 = vpop.permute.xlu0 %960
      %962 = vrot.lane.b32.xlu0 %v515, 16
      %v963 = vpop.permute.xlu0 %962
      %964 = vrot.lane.b32.xlu0 %v517, 16
      %v965 = vpop.permute.xlu0 %964
      %966 = vrot.lane.b32.xlu0 %v520, 16
      %v967 = vpop.permute.xlu0 %966
      %968 = vrot.lane.b32.xlu0 %v522, 16
      %v969 = vpop.permute.xlu0 %968
      %970 = vrot.lane.b32.xlu0 %v525, 16
      %v971 = vpop.permute.xlu0 %970
      %972 = vrot.lane.b32.xlu0 %v527, 16
      %v973 = vpop.permute.xlu0 %972
      %974 = vrot.lane.b32.xlu0 %v530, 16
      %v975 = vpop.permute.xlu0 %974
      %976 = vrot.lane.b32.xlu0 %v532, 16
      %v977 = vpop.permute.xlu0 %976
      %978 = vrot.lane.b32.xlu0 %v535, 16
      %v979 = vpop.permute.xlu0 %978
      %980 = vrot.lane.b32.xlu0 %v537, 16
      %v981 = vpop.permute.xlu0 %980
      %982 = vrot.lane.b32.xlu0 %v540, 16
      %v983 = vpop.permute.xlu0 %982
      %984 = vrot.lane.b32.xlu0 %v542, 16
      %v985 = vpop.permute.xlu0 %984
      %986 = vrot.lane.b32.xlu0 %v545, 16
      %v987 = vpop.permute.xlu0 %986
      %988 = vrot.lane.b32.xlu0 %v547, 16
      %v989 = vpop.permute.xlu0 %988
      %990 = vrot.lane.b32.xlu0 %v550, 16
      %v991 = vpop.permute.xlu0 %990
      %992 = vrot.lane.b32.xlu0 %v552, 16
      %v993 = vpop.permute.xlu0 %992
      %994 = vrot.lane.b32.xlu0 %v555, 16
      %v995 = vpop.permute.xlu0 %994
      %996 = vrot.lane.b32.xlu0 %v557, 16
      %v997 = vpop.permute.xlu0 %996
      %998 = vrot.lane.b32.xlu0 %v560, 16
      %v999 = vpop.permute.xlu0 %998
      %1000 = vrot.lane.b32.xlu0 %v562, 16
      %v1001 = vpop.permute.xlu0 %1000
      %1002 = vrot.lane.b32.xlu0 %v565, 16
      %v1003 = vpop.permute.xlu0 %1002
      %1004 = vrot.lane.b32.xlu0 %v567, 16
      %v1005 = vpop.permute.xlu0 %1004
      %1006 = vrot.lane.b32.xlu0 %v570, 16
      %v1007 = vpop.permute.xlu0 %1006
      %1008 = vrot.lane.b32.xlu0 %v572, 16
      %v1009 = vpop.permute.xlu0 %1008
      %1010 = vrot.lane.b32.xlu0 %v947, 16
      %v1011 = vpop.permute.xlu0 %1010
      %1012 = vrot.lane.b32.xlu0 %v949, 16
      %v1013 = vpop.permute.xlu0 %1012
      %v1046 = vrot.slane %v438, 2
      %v1047 = vrot.slane %v439, 2
      %v1048 = vsel %vm669, %v1046, %v1047
      %v1049 = vrot.slane %v440, 2
      %v1050 = vsel %vm669, %v1047, %v1049
      %1051 = vrot.lane.b32.xlu0 %v677, 20
      %v1052 = vpop.permute.xlu0 %1051
      %1053 = vrot.lane.b32.xlu0 %v679, 20
      %v1054 = vpop.permute.xlu0 %1053
      %1055 = vrot.lane.b32.xlu0 %v682, 20
      %v1056 = vpop.permute.xlu0 %1055
      %1057 = vrot.lane.b32.xlu0 %v684, 20
      %v1058 = vpop.permute.xlu0 %1057
      %1059 = vrot.lane.b32.xlu0 %v687, 20
      %v1060 = vpop.permute.xlu0 %1059
      %1061 = vrot.lane.b32.xlu0 %v689, 20
      %v1062 = vpop.permute.xlu0 %1061
      %1063 = vrot.lane.b32.xlu0 %v692, 20
      %v1064 = vpop.permute.xlu0 %1063
      %1065 = vrot.lane.b32.xlu0 %v694, 20
      %v1066 = vpop.permute.xlu0 %1065
      %1067 = vrot.lane.b32.xlu0 %v697, 20
      %v1068 = vpop.permute.xlu0 %1067
      %1069 = vrot.lane.b32.xlu0 %v699, 20
      %v1070 = vpop.permute.xlu0 %1069
      %1071 = vrot.lane.b32.xlu0 %v702, 20
      %v1072 = vpop.permute.xlu0 %1071
      %1073 = vrot.lane.b32.xlu0 %v704, 20
      %v1074 = vpop.permute.xlu0 %1073
      %1075 = vrot.lane.b32.xlu0 %v707, 20
      %v1076 = vpop.permute.xlu0 %1075
      %1077 = vrot.lane.b32.xlu0 %v709, 20
      %v1078 = vpop.permute.xlu0 %1077
      %1079 = vrot.lane.b32.xlu0 %v712, 20
      %v1080 = vpop.permute.xlu0 %1079
      %1081 = vrot.lane.b32.xlu0 %v714, 20
      %v1082 = vpop.permute.xlu0 %1081
      %1083 = vrot.lane.b32.xlu0 %v717, 20
      %v1084 = vpop.permute.xlu0 %1083
      %1085 = vrot.lane.b32.xlu0 %v719, 20
      %v1086 = vpop.permute.xlu0 %1085
      %1087 = vrot.lane.b32.xlu0 %v722, 20
      %v1088 = vpop.permute.xlu0 %1087
      %1089 = vrot.lane.b32.xlu0 %v724, 20
      %v1090 = vpop.permute.xlu0 %1089
      %1091 = vrot.lane.b32.xlu0 %v727, 20
      %v1092 = vpop.permute.xlu0 %1091
      %1093 = vrot.lane.b32.xlu0 %v729, 20
      %v1094 = vpop.permute.xlu0 %1093
      %1095 = vrot.lane.b32.xlu0 %v732, 20
      %v1096 = vpop.permute.xlu0 %1095
      %1097 = vrot.lane.b32.xlu0 %v734, 20
      %v1098 = vpop.permute.xlu0 %1097
      %1099 = vrot.lane.b32.xlu0 %v737, 20
      %v1100 = vpop.permute.xlu0 %1099
      %1101 = vrot.lane.b32.xlu0 %v739, 20
      %v1102 = vpop.permute.xlu0 %1101
      %1103 = vrot.lane.b32.xlu0 %v742, 20
      %v1104 = vpop.permute.xlu0 %1103
      %1105 = vrot.lane.b32.xlu0 %v744, 20
      %v1106 = vpop.permute.xlu0 %1105
      %1107 = vrot.lane.b32.xlu0 %v747, 20
      %v1108 = vpop.permute.xlu0 %1107
      %1109 = vrot.lane.b32.xlu0 %v749, 20
      %v1110 = vpop.permute.xlu0 %1109
      %1111 = vrot.lane.b32.xlu0 %v1048, 20
      %v1112 = vpop.permute.xlu0 %1111
      %1113 = vrot.lane.b32.xlu0 %v1050, 20
      %v1114 = vpop.permute.xlu0 %1113
      %1149 = vrot.lane.b32.xlu0 %v396, 24
      %v1150 = vpop.permute.xlu0 %1149
      %1151 = vrot.lane.b32.xlu0 %v397, 24
      %v1152 = vpop.permute.xlu0 %1151
      %1153 = vrot.lane.b32.xlu0 %v399, 24
      %v1154 = vpop.permute.xlu0 %1153
      %1155 = vrot.lane.b32.xlu0 %v400, 24
      %v1156 = vpop.permute.xlu0 %1155
      %1157 = vrot.lane.b32.xlu0 %v402, 24
      %v1158 = vpop.permute.xlu0 %1157
      %1159 = vrot.lane.b32.xlu0 %v403, 24
      %v1160 = vpop.permute.xlu0 %1159
      %1161 = vrot.lane.b32.xlu0 %v405, 24
      %v1162 = vpop.permute.xlu0 %1161
      %1163 = vrot.lane.b32.xlu0 %v406, 24
      %v1164 = vpop.permute.xlu0 %1163
      %1165 = vrot.lane.b32.xlu0 %v408, 24
      %v1166 = vpop.permute.xlu0 %1165
      %1167 = vrot.lane.b32.xlu0 %v409, 24
      %v1168 = vpop.permute.xlu0 %1167
      %1169 = vrot.lane.b32.xlu0 %v411, 24
      %v1170 = vpop.permute.xlu0 %1169
      %1171 = vrot.lane.b32.xlu0 %v412, 24
      %v1172 = vpop.permute.xlu0 %1171
      %1173 = vrot.lane.b32.xlu0 %v414, 24
      %v1174 = vpop.permute.xlu0 %1173
      %1175 = vrot.lane.b32.xlu0 %v415, 24
      %v1176 = vpop.permute.xlu0 %1175
      %1177 = vrot.lane.b32.xlu0 %v417, 24
      %v1178 = vpop.permute.xlu0 %1177
      %1179 = vrot.lane.b32.xlu0 %v418, 24
      %v1180 = vpop.permute.xlu0 %1179
      %1181 = vrot.lane.b32.xlu0 %v420, 24
      %v1182 = vpop.permute.xlu0 %1181
      %1183 = vrot.lane.b32.xlu0 %v421, 24
      %v1184 = vpop.permute.xlu0 %1183
      %1185 = vrot.lane.b32.xlu0 %v423, 24
      %v1186 = vpop.permute.xlu0 %1185
      %1187 = vrot.lane.b32.xlu0 %v424, 24
      %v1188 = vpop.permute.xlu0 %1187
      %1189 = vrot.lane.b32.xlu0 %v426, 24
      %v1190 = vpop.permute.xlu0 %1189
      %1191 = vrot.lane.b32.xlu0 %v427, 24
      %v1192 = vpop.permute.xlu0 %1191
      %1193 = vrot.lane.b32.xlu0 %v429, 24
      %v1194 = vpop.permute.xlu0 %1193
      %1195 = vrot.lane.b32.xlu0 %v430, 24
      %v1196 = vpop.permute.xlu0 %1195
      %1197 = vrot.lane.b32.xlu0 %v432, 24
      %v1198 = vpop.permute.xlu0 %1197
      %1199 = vrot.lane.b32.xlu0 %v433, 24
      %v1200 = vpop.permute.xlu0 %1199
      %1201 = vrot.lane.b32.xlu0 %v435, 24
      %v1202 = vpop.permute.xlu0 %1201
      %1203 = vrot.lane.b32.xlu0 %v436, 24
      %v1204 = vpop.permute.xlu0 %1203
      %1205 = vrot.lane.b32.xlu0 %v438, 24
      %v1206 = vpop.permute.xlu0 %1205
      %1207 = vrot.lane.b32.xlu0 %v439, 24
      %v1208 = vpop.permute.xlu0 %1207
      %1209 = vrot.lane.b32.xlu0 %v441, 24
      %v1210 = vpop.permute.xlu0 %1209
      %1211 = vrot.lane.b32.xlu0 %v442, 24
      %v1212 = vpop.permute.xlu0 %1211
      %v1246 = vrot.slane %v441, 1
      %v1247 = vrot.slane %v442, 1
      %v1248 = vsel %vm492, %v1246, %v1247
      %v1249 = vrot.slane %v443, 1
      %v1250 = vsel %vm492, %v1247, %v1249
      %1251 = vrot.lane.b32.xlu0 %v505, 28
      %v1252 = vpop.permute.xlu0 %1251
      %1253 = vrot.lane.b32.xlu0 %v507, 28
      %v1254 = vpop.permute.xlu0 %1253
      %1255 = vrot.lane.b32.xlu0 %v510, 28
      %v1256 = vpop.permute.xlu0 %1255
      %1257 = vrot.lane.b32.xlu0 %v512, 28
      %v1258 = vpop.permute.xlu0 %1257
      %1259 = vrot.lane.b32.xlu0 %v515, 28
      %v1260 = vpop.permute.xlu0 %1259
      %1261 = vrot.lane.b32.xlu0 %v517, 28
      %v1262 = vpop.permute.xlu0 %1261
      %1263 = vrot.lane.b32.xlu0 %v520, 28
      %v1264 = vpop.permute.xlu0 %1263
      %1265 = vrot.lane.b32.xlu0 %v522, 28
      %v1266 = vpop.permute.xlu0 %1265
      %1267 = vrot.lane.b32.xlu0 %v525, 28
      %v1268 = vpop.permute.xlu0 %1267
      %1269 = vrot.lane.b32.xlu0 %v527, 28
      %v1270 = vpop.permute.xlu0 %1269
      %1271 = vrot.lane.b32.xlu0 %v530, 28
      %v1272 = vpop.permute.xlu0 %1271
      %1273 = vrot.lane.b32.xlu0 %v532, 28
      %v1274 = vpop.permute.xlu0 %1273
      %1275 = vrot.lane.b32.xlu0 %v535, 28
      %v1276 = vpop.permute.xlu0 %1275
      %1277 = vrot.lane.b32.xlu0 %v537, 28
      %v1278 = vpop.permute.xlu0 %1277
      %1279 = vrot.lane.b32.xlu0 %v540, 28
      %v1280 = vpop.permute.xlu0 %1279
      %1281 = vrot.lane.b32.xlu0 %v542, 28
      %v1282 = vpop.permute.xlu0 %1281
      %1283 = vrot.lane.b32.xlu0 %v545, 28
      %v1284 = vpop.permute.xlu0 %1283
      %1285 = vrot.lane.b32.xlu0 %v547, 28
      %v1286 = vpop.permute.xlu0 %1285
      %1287 = vrot.lane.b32.xlu0 %v550, 28
      %v1288 = vpop.permute.xlu0 %1287
      %1289 = vrot.lane.b32.xlu0 %v552, 28
      %v1290 = vpop.permute.xlu0 %1289
      %1291 = vrot.lane.b32.xlu0 %v555, 28
      %v1292 = vpop.permute.xlu0 %1291
      %1293 = vrot.lane.b32.xlu0 %v557, 28
      %v1294 = vpop.permute.xlu0 %1293
      %1295 = vrot.lane.b32.xlu0 %v560, 28
      %v1296 = vpop.permute.xlu0 %1295
      %1297 = vrot.lane.b32.xlu0 %v562, 28
      %v1298 = vpop.permute.xlu0 %1297
      %1299 = vrot.lane.b32.xlu0 %v565, 28
      %v1300 = vpop.permute.xlu0 %1299
      %1301 = vrot.lane.b32.xlu0 %v567, 28
      %v1302 = vpop.permute.xlu0 %1301
      %1303 = vrot.lane.b32.xlu0 %v570, 28
      %v1304 = vpop.permute.xlu0 %1303
      %1305 = vrot.lane.b32.xlu0 %v572, 28
      %v1306 = vpop.permute.xlu0 %1305
      %1307 = vrot.lane.b32.xlu0 %v947, 28
      %v1308 = vpop.permute.xlu0 %1307
      %1309 = vrot.lane.b32.xlu0 %v949, 28
      %v1310 = vpop.permute.xlu0 %1309
      %1311 = vrot.lane.b32.xlu0 %v1248, 28
      %v1312 = vpop.permute.xlu0 %1311
      %1313 = vrot.lane.b32.xlu0 %v1250, 28
      %v1314 = vpop.permute.xlu0 %1313
      %v1347 = vrot.slane %v441, 2
      %v1348 = vrot.slane %v442, 2
      %v1349 = vsel %vm669, %v1347, %v1348
      %v1350 = vrot.slane %v443, 2
      %v1351 = vsel %vm669, %v1348, %v1350
      %1352 = vrot.lane.b32.xlu0 %v682, 32
      %v1353 = vpop.permute.xlu0 %1352
      %1354 = vrot.lane.b32.xlu0 %v684, 32
      %v1355 = vpop.permute.xlu0 %1354
      %1356 = vrot.lane.b32.xlu0 %v687, 32
      %v1357 = vpop.permute.xlu0 %1356
      %1358 = vrot.lane.b32.xlu0 %v689, 32
      %v1359 = vpop.permute.xlu0 %1358
      %1360 = vrot.lane.b32.xlu0 %v692, 32
      %v1361 = vpop.permute.xlu0 %1360
      %1362 = vrot.lane.b32.xlu0 %v694, 32
      %v1363 = vpop.permute.xlu0 %1362
      %1364 = vrot.lane.b32.xlu0 %v697, 32
      %v1365 = vpop.permute.xlu0 %1364
      %1366 = vrot.lane.b32.xlu0 %v699, 32
      %v1367 = vpop.permute.xlu0 %1366
      %1368 = vrot.lane.b32.xlu0 %v702, 32
      %v1369 = vpop.permute.xlu0 %1368
      %1370 = vrot.lane.b32.xlu0 %v704, 32
      %v1371 = vpop.permute.xlu0 %1370
      %1372 = vrot.lane.b32.xlu0 %v707, 32
      %v1373 = vpop.permute.xlu0 %1372
      %1374 = vrot.lane.b32.xlu0 %v709, 32
      %v1375 = vpop.permute.xlu0 %1374
      %1376 = vrot.lane.b32.xlu0 %v712, 32
      %v1377 = vpop.permute.xlu0 %1376
      %1378 = vrot.lane.b32.xlu0 %v714, 32
      %v1379 = vpop.permute.xlu0 %1378
      %1380 = vrot.lane.b32.xlu0 %v717, 32
      %v1381 = vpop.permute.xlu0 %1380
      %1382 = vrot.lane.b32.xlu0 %v719, 32
      %v1383 = vpop.permute.xlu0 %1382
      %1384 = vrot.lane.b32.xlu0 %v722, 32
      %v1385 = vpop.permute.xlu0 %1384
      %1386 = vrot.lane.b32.xlu0 %v724, 32
      %v1387 = vpop.permute.xlu0 %1386
      %1388 = vrot.lane.b32.xlu0 %v727, 32
      %v1389 = vpop.permute.xlu0 %1388
      %1390 = vrot.lane.b32.xlu0 %v729, 32
      %v1391 = vpop.permute.xlu0 %1390
      %1392 = vrot.lane.b32.xlu0 %v732, 32
      %v1393 = vpop.permute.xlu0 %1392
      %1394 = vrot.lane.b32.xlu0 %v734, 32
      %v1395 = vpop.permute.xlu0 %1394
      %1396 = vrot.lane.b32.xlu0 %v737, 32
      %v1397 = vpop.permute.xlu0 %1396
      %1398 = vrot.lane.b32.xlu0 %v739, 32
      %v1399 = vpop.permute.xlu0 %1398
      %1400 = vrot.lane.b32.xlu0 %v742, 32
      %v1401 = vpop.permute.xlu0 %1400
      %1402 = vrot.lane.b32.xlu0 %v744, 32
      %v1403 = vpop.permute.xlu0 %1402
      %1404 = vrot.lane.b32.xlu0 %v747, 32
      %v1405 = vpop.permute.xlu0 %1404
      %1406 = vrot.lane.b32.xlu0 %v749, 32
      %v1407 = vpop.permute.xlu0 %1406
      %1408 = vrot.lane.b32.xlu0 %v1048, 32
      %v1409 = vpop.permute.xlu0 %1408
      %1410 = vrot.lane.b32.xlu0 %v1050, 32
      %v1411 = vpop.permute.xlu0 %1410
      %1412 = vrot.lane.b32.xlu0 %v1349, 32
      %v1413 = vpop.permute.xlu0 %1412
      %1414 = vrot.lane.b32.xlu0 %v1351, 32
      %v1415 = vpop.permute.xlu0 %1414
      %v1448 = vsel %vm312, %v390, %v574
      %v1449 = vsel %vm312, %v391, %v576
      %v1450 = vsel %vm312, %v393, %v578
      %v1451 = vsel %vm312, %v394, %v580
      %v1452 = vsel %vm312, %v396, %v582
      %v1453 = vsel %vm312, %v397, %v584
      %v1454 = vsel %vm312, %v399, %v586
      %v1455 = vsel %vm312, %v400, %v588
      %v1456 = vsel %vm312, %v402, %v590
      %v1457 = vsel %vm312, %v403, %v592
      %v1458 = vsel %vm312, %v405, %v594
      %v1459 = vsel %vm312, %v406, %v596
      %v1460 = vsel %vm312, %v408, %v598
      %v1461 = vsel %vm312, %v409, %v600
      %v1462 = vsel %vm312, %v411, %v602
      %v1463 = vsel %vm312, %v412, %v604
      %v1464 = vsel %vm312, %v414, %v606
      %v1465 = vsel %vm312, %v415, %v608
      %v1466 = vsel %vm312, %v417, %v610
      %v1467 = vsel %vm312, %v418, %v612
      %v1468 = vsel %vm312, %v420, %v614
      %v1469 = vsel %vm312, %v421, %v616
      %v1470 = vsel %vm312, %v423, %v618
      %v1471 = vsel %vm312, %v424, %v620
      %v1472 = vsel %vm312, %v426, %v622
      %v1473 = vsel %vm312, %v427, %v624
      %v1474 = vsel %vm312, %v429, %v626
      %v1475 = vsel %vm312, %v430, %v628
      %v1476 = vsel %vm312, %v432, %v630
      %v1477 = vsel %vm312, %v433, %v632
      %v1478 = vsel %vm312, %v435, %v634
      %v1479 = vsel %vm312, %v436, %v636
      %vm1480 = vcmask 64512
      %v1481 = vsel %vm1480, %v1448, %v751
      %v1482 = vsel %vm1480, %v1449, %v753
      %v1483 = vsel %vm1480, %v1450, %v755
      %v1484 = vsel %vm1480, %v1451, %v757
      %v1485 = vsel %vm1480, %v1452, %v759
      %v1486 = vsel %vm1480, %v1453, %v761
      %v1487 = vsel %vm1480, %v1454, %v763
      %v1488 = vsel %vm1480, %v1455, %v765
      %v1489 = vsel %vm1480, %v1456, %v767
      %v1490 = vsel %vm1480, %v1457, %v769
      %v1491 = vsel %vm1480, %v1458, %v771
      %v1492 = vsel %vm1480, %v1459, %v773
      %v1493 = vsel %vm1480, %v1460, %v775
      %v1494 = vsel %vm1480, %v1461, %v777
      %v1495 = vsel %vm1480, %v1462, %v779
      %v1496 = vsel %vm1480, %v1463, %v781
      %v1497 = vsel %vm1480, %v1464, %v783
      %v1498 = vsel %vm1480, %v1465, %v785
      %v1499 = vsel %vm1480, %v1466, %v787
      %v1500 = vsel %vm1480, %v1467, %v789
      %v1501 = vsel %vm1480, %v1468, %v791
      %v1502 = vsel %vm1480, %v1469, %v793
      %v1503 = vsel %vm1480, %v1470, %v795
      %v1504 = vsel %vm1480, %v1471, %v797
      %v1505 = vsel %vm1480, %v1472, %v799
      %v1506 = vsel %vm1480, %v1473, %v801
      %v1507 = vsel %vm1480, %v1474, %v803
      %v1508 = vsel %vm1480, %v1475, %v805
      %v1509 = vsel %vm1480, %v1476, %v807
      %v1510 = vsel %vm1480, %v1477, %v809
      %v1511 = vsel %vm1480, %v1478, %v811
      %v1512 = vsel %vm1480, %v1479, %v813
      %vm1513 = vcmask 97280
      %v1514 = vsel %vm1513, %v1481, %v849
      %v1515 = vsel %vm1513, %v1482, %v851
      %v1516 = vsel %vm1513, %v1483, %v853
      %v1517 = vsel %vm1513, %v1484, %v855
      %v1518 = vsel %vm1513, %v1485, %v857
      %v1519 = vsel %vm1513, %v1486, %v859
      %v1520 = vsel %vm1513, %v1487, %v861
      %v1521 = vsel %vm1513, %v1488, %v863
      %v1522 = vsel %vm1513, %v1489, %v865
      %v1523 = vsel %vm1513, %v1490, %v867
      %v1524 = vsel %vm1513, %v1491, %v869
      %v1525 = vsel %vm1513, %v1492, %v871
      %v1526 = vsel %vm1513, %v1493, %v873
      %v1527 = vsel %vm1513, %v1494, %v875
      %v1528 = vsel %vm1513, %v1495, %v877
      %v1529 = vsel %vm1513, %v1496, %v879
      %v1530 = vsel %vm1513, %v1497, %v881
      %v1531 = vsel %vm1513, %v1498, %v883
      %v1532 = vsel %vm1513, %v1499, %v885
      %v1533 = vsel %vm1513, %v1500, %v887
      %v1534 = vsel %vm1513, %v1501, %v889
      %v1535 = vsel %vm1513, %v1502, %v891
      %v1536 = vsel %vm1513, %v1503, %v893
      %v1537 = vsel %vm1513, %v1504, %v895
      %v1538 = vsel %vm1513, %v1505, %v897
      %v1539 = vsel %vm1513, %v1506, %v899
      %v1540 = vsel %vm1513, %v1507, %v901
      %v1541 = vsel %vm1513, %v1508, %v903
      %v1542 = vsel %vm1513, %v1509, %v905
      %v1543 = vsel %vm1513, %v1510, %v907
      %v1544 = vsel %vm1513, %v1511, %v909
      %v1545 = vsel %vm1513, %v1512, %v911
      %vm1546 = vcmask 130048
      %v1547 = vsel %vm1546, %v1514, %v951
      %v1548 = vsel %vm1546, %v1515, %v953
      %v1549 = vsel %vm1546, %v1516, %v955
      %v1550 = vsel %vm1546, %v1517, %v957
      %v1551 = vsel %vm1546, %v1518, %v959
      %v1552 = vsel %vm1546, %v1519, %v961
      %v1553 = vsel %vm1546, %v1520, %v963
      %v1554 = vsel %vm1546, %v1521, %v965
      %v1555 = vsel %vm1546, %v1522, %v967
      %v1556 = vsel %vm1546, %v1523, %v969
      %v1557 = vsel %vm1546, %v1524, %v971
      %v1558 = vsel %vm1546, %v1525, %v973
      %v1559 = vsel %vm1546, %v1526, %v975
      %v1560 = vsel %vm1546, %v1527, %v977
      %v1561 = vsel %vm1546, %v1528, %v979
      %v1562 = vsel %vm1546, %v1529, %v981
      %v1563 = vsel %vm1546, %v1530, %v983
      %v1564 = vsel %vm1546, %v1531, %v985
      %v1565 = vsel %vm1546, %v1532, %v987
      %v1566 = vsel %vm1546, %v1533, %v989
      %v1567 = vsel %vm1546, %v1534, %v991
      %v1568 = vsel %vm1546, %v1535, %v993
      %v1569 = vsel %vm1546, %v1536, %v995
      %v1570 = vsel %vm1546, %v1537, %v997
      %v1571 = vsel %vm1546, %v1538, %v999
      %v1572 = vsel %vm1546, %v1539, %v1001
      %v1573 = vsel %vm1546, %v1540, %v1003
      %v1574 = vsel %vm1546, %v1541, %v1005
      %v1575 = vsel %vm1546, %v1542, %v1007
      %v1576 = vsel %vm1546, %v1543, %v1009
      %v1577 = vsel %vm1546, %v1544, %v1011
      %v1578 = vsel %vm1546, %v1545, %v1013
      %vm1579 = vcmask 162816
      %v1580 = vsel %vm1579, %v1547, %v1052
      %v1581 = vsel %vm1579, %v1548, %v1054
      %v1582 = vsel %vm1579, %v1549, %v1056
      %v1583 = vsel %vm1579, %v1550, %v1058
      %v1584 = vsel %vm1579, %v1551, %v1060
      %v1585 = vsel %vm1579, %v1552, %v1062
      %v1586 = vsel %vm1579, %v1553, %v1064
      %v1587 = vsel %vm1579, %v1554, %v1066
      %v1588 = vsel %vm1579, %v1555, %v1068
      %v1589 = vsel %vm1579, %v1556, %v1070
      %v1590 = vsel %vm1579, %v1557, %v1072
      %v1591 = vsel %vm1579, %v1558, %v1074
      %v1592 = vsel %vm1579, %v1559, %v1076
      %v1593 = vsel %vm1579, %v1560, %v1078
      %v1594 = vsel %vm1579, %v1561, %v1080
      %v1595 = vsel %vm1579, %v1562, %v1082
      %v1596 = vsel %vm1579, %v1563, %v1084
      %v1597 = vsel %vm1579, %v1564, %v1086
      %v1598 = vsel %vm1579, %v1565, %v1088
      %v1599 = vsel %vm1579, %v1566, %v1090
      %v1600 = vsel %vm1579, %v1567, %v1092
      %v1601 = vsel %vm1579, %v1568, %v1094
      %v1602 = vsel %vm1579, %v1569, %v1096
      %v1603 = vsel %vm1579, %v1570, %v1098
      %v1604 = vsel %vm1579, %v1571, %v1100
      %v1605 = vsel %vm1579, %v1572, %v1102
      %v1606 = vsel %vm1579, %v1573, %v1104
      %v1607 = vsel %vm1579, %v1574, %v1106
      %v1608 = vsel %vm1579, %v1575, %v1108
      %v1609 = vsel %vm1579, %v1576, %v1110
      %v1610 = vsel %vm1579, %v1577, %v1112
      %v1611 = vsel %vm1579, %v1578, %v1114
      %vm1612 = vcmask 195584
      %v1613 = vsel %vm1612, %v1580, %v1150
      %v1614 = vsel %vm1612, %v1581, %v1152
      %v1615 = vsel %vm1612, %v1582, %v1154
      %v1616 = vsel %vm1612, %v1583, %v1156
      %v1617 = vsel %vm1612, %v1584, %v1158
      %v1618 = vsel %vm1612, %v1585, %v1160
      %v1619 = vsel %vm1612, %v1586, %v1162
      %v1620 = vsel %vm1612, %v1587, %v1164
      %v1621 = vsel %vm1612, %v1588, %v1166
      %v1622 = vsel %vm1612, %v1589, %v1168
      %v1623 = vsel %vm1612, %v1590, %v1170
      %v1624 = vsel %vm1612, %v1591, %v1172
      %v1625 = vsel %vm1612, %v1592, %v1174
      %v1626 = vsel %vm1612, %v1593, %v1176
      %v1627 = vsel %vm1612, %v1594, %v1178
      %v1628 = vsel %vm1612, %v1595, %v1180
      %v1629 = vsel %vm1612, %v1596, %v1182
      %v1630 = vsel %vm1612, %v1597, %v1184
      %v1631 = vsel %vm1612, %v1598, %v1186
      %v1632 = vsel %vm1612, %v1599, %v1188
      %v1633 = vsel %vm1612, %v1600, %v1190
      %v1634 = vsel %vm1612, %v1601, %v1192
      %v1635 = vsel %vm1612, %v1602, %v1194
      %v1636 = vsel %vm1612, %v1603, %v1196
      %v1637 = vsel %vm1612, %v1604, %v1198
      %v1638 = vsel %vm1612, %v1605, %v1200
      %v1639 = vsel %vm1612, %v1606, %v1202
      %v1640 = vsel %vm1612, %v1607, %v1204
      %v1641 = vsel %vm1612, %v1608, %v1206
      %v1642 = vsel %vm1612, %v1609, %v1208
      %v1643 = vsel %vm1612, %v1610, %v1210
      %v1644 = vsel %vm1612, %v1611, %v1212
      %vm1645 = vcmask 228352
      %v1646 = vsel %vm1645, %v1613, %v1252
      %v1647 = vsel %vm1645, %v1614, %v1254
      %v1648 = vsel %vm1645, %v1615, %v1256
      %v1649 = vsel %vm1645, %v1616, %v1258
      %v1650 = vsel %vm1645, %v1617, %v1260
      %v1651 = vsel %vm1645, %v1618, %v1262
      %v1652 = vsel %vm1645, %v1619, %v1264
      %v1653 = vsel %vm1645, %v1620, %v1266
      %v1654 = vsel %vm1645, %v1621, %v1268
      %v1655 = vsel %vm1645, %v1622, %v1270
      %v1656 = vsel %vm1645, %v1623, %v1272
      %v1657 = vsel %vm1645, %v1624, %v1274
      %v1658 = vsel %vm1645, %v1625, %v1276
      %v1659 = vsel %vm1645, %v1626, %v1278
      %v1660 = vsel %vm1645, %v1627, %v1280
      %v1661 = vsel %vm1645, %v1628, %v1282
      %v1662 = vsel %vm1645, %v1629, %v1284
      %v1663 = vsel %vm1645, %v1630, %v1286
      %v1664 = vsel %vm1645, %v1631, %v1288
      %v1665 = vsel %vm1645, %v1632, %v1290
      %v1666 = vsel %vm1645, %v1633, %v1292
      %v1667 = vsel %vm1645, %v1634, %v1294
      %v1668 = vsel %vm1645, %v1635, %v1296
      %v1669 = vsel %vm1645, %v1636, %v1298
      %v1670 = vsel %vm1645, %v1637, %v1300
      %v1671 = vsel %vm1645, %v1638, %v1302
      %v1672 = vsel %vm1645, %v1639, %v1304
      %v1673 = vsel %vm1645, %v1640, %v1306
      %v1674 = vsel %vm1645, %v1641, %v1308
      %v1675 = vsel %vm1645, %v1642, %v1310
      %v1676 = vsel %vm1645, %v1643, %v1312
      %v1677 = vsel %vm1645, %v1644, %v1314
      %vm1678 = vcmask 261120
      %v1679 = vsel %vm1678, %v1646, %v1353
      %v1680 = vsel %vm1678, %v1647, %v1355
      %v1681 = vsel %vm1678, %v1648, %v1357
      %v1682 = vsel %vm1678, %v1649, %v1359
      %v1683 = vsel %vm1678, %v1650, %v1361
      %v1684 = vsel %vm1678, %v1651, %v1363
      %v1685 = vsel %vm1678, %v1652, %v1365
      %v1686 = vsel %vm1678, %v1653, %v1367
      %v1687 = vsel %vm1678, %v1654, %v1369
      %v1688 = vsel %vm1678, %v1655, %v1371
      %v1689 = vsel %vm1678, %v1656, %v1373
      %v1690 = vsel %vm1678, %v1657, %v1375
      %v1691 = vsel %vm1678, %v1658, %v1377
      %v1692 = vsel %vm1678, %v1659, %v1379
      %v1693 = vsel %vm1678, %v1660, %v1381
      %v1694 = vsel %vm1678, %v1661, %v1383
      %v1695 = vsel %vm1678, %v1662, %v1385
      %v1696 = vsel %vm1678, %v1663, %v1387
      %v1697 = vsel %vm1678, %v1664, %v1389
      %v1698 = vsel %vm1678, %v1665, %v1391
      %v1699 = vsel %vm1678, %v1666, %v1393
      %v1700 = vsel %vm1678, %v1667, %v1395
      %v1701 = vsel %vm1678, %v1668, %v1397
      %v1702 = vsel %vm1678, %v1669, %v1399
      %v1703 = vsel %vm1678, %v1670, %v1401
      %v1704 = vsel %vm1678, %v1671, %v1403
      %v1705 = vsel %vm1678, %v1672, %v1405
      %v1706 = vsel %vm1678, %v1673, %v1407
      %v1707 = vsel %vm1678, %v1674, %v1409
      %v1708 = vsel %vm1678, %v1675, %v1411
      %v1709 = vsel %vm1678, %v1676, %v1413
      %v1710 = vsel %vm1678, %v1677, %v1415
      %v1711 = vpack.c.bf16 %v1680, %v1679
      %v1712 = vpack.c.bf16 %v1682, %v1681
      %v1713 = vpack.c.bf16 %v1684, %v1683
      %v1714 = vpack.c.bf16 %v1686, %v1685
      %v1715 = vpack.c.bf16 %v1688, %v1687
      %v1716 = vpack.c.bf16 %v1690, %v1689
      %v1717 = vpack.c.bf16 %v1692, %v1691
      %v1718 = vpack.c.bf16 %v1694, %v1693
      %v1719 = vpack.c.bf16 %v1696, %v1695
      %v1720 = vpack.c.bf16 %v1698, %v1697
      %v1721 = vpack.c.bf16 %v1700, %v1699
      %v1722 = vpack.c.bf16 %v1702, %v1701
      %v1723 = vpack.c.bf16 %v1704, %v1703
      %v1724 = vpack.c.bf16 %v1706, %v1705
      %v1725 = vpack.c.bf16 %v1708, %v1707
      %v1726 = vpack.c.bf16 %v1710, %v1709
      %v1727 = vld [vmem:[%s1] sm:$0xf]
      %v1728 = vld [vmem:[%s1 + $0x4] sm:$0xf]
      %v1729 = vld [vmem:[%s1 + $0x8] sm:$0xf]
      %v1730 = vld [vmem:[%s1 + $0xc] sm:$0xf]
      %v1731 = vld [vmem:[%s1 + $0x10] sm:$0x3]
      %v1737 = vunpack.c.l.b16 %v1727
      %v1738 = vunpack.c.l.b16 %v1728
      %v1739 = vunpack.c.l.b16 %v1729
      %v1740 = vunpack.c.l.b16 %v1730
      %v1741 = vunpack.c.l.b16 %v1731
      %v1742 = vpack.c.b16 %v1738, %v1737
      %v1743 = vpack.c.b16 %v1740, %v1739
      %v1744 = vpack.c.b16 %v1741, %v1741
      %vm1747 = vcmask 293888
      %v1749 = vsel %vm1747, %v1711, 0
      %v1752 = vsel %vm1747, %v1712, 0
      %v1755 = vsel %vm1747, %v1713, 0
      %v1758 = vsel %vm1747, %v1714, 0
      %v1761 = vsel %vm1747, %v1715, 0
      %v1764 = vsel %vm1747, %v1716, 0
      %v1767 = vsel %vm1747, %v1717, 0
      %v1770 = vsel %vm1747, %v1718, 0
      %v1773 = vsel %vm1747, %v1719, 0
      %v1776 = vsel %vm1747, %v1720, 0
      %v1779 = vsel %vm1747, %v1721, 0
      %v1782 = vsel %vm1747, %v1722, 0
      %v1785 = vsel %vm1747, %v1723, 0
      %v1788 = vsel %vm1747, %v1724, 0
      %v1791 = vsel %vm1747, %v1725, 0
      %v1794 = vsel %vm1747, %v1726, 0
      %vm1796 = vcmask 1041408
      %v1798 = vsel %vm1796, %v1744, 0
      %1800 = vmatprep.subr.bf16.mxu0 0
      %1801 = vmatpush1.bf16.msra.mxu0 %v1742
      %1802 = vmatprep.subr.bf16.mxu0 0
      %1803 = vmatpush1.bf16.msra.mxu0 %v1743
      %1804 = vmatprep.subr.bf16.mxu0 0
      %1805 = vmatpush1.bf16.msra.mxu0 %v1798
      %1806 = vmatprep.subr.bf16.mxu0 0
      %1807 = vmatpush1.bf16.msra.mxu0 0
      %1808 = vmatprep.subr.bf16.mxu0 0
      %1809 = vmatpush1.bf16.msra.mxu0 0
      %1810 = vmatprep.subr.bf16.mxu0 0
      %1811 = vmatpush1.bf16.msra.mxu0 0
      %1812 = vmatprep.subr.bf16.mxu0 0
      %1813 = vmatpush1.bf16.msra.mxu0 0
      %1814 = vmatprep.subr.bf16.mxu0 0
      %1815 = vmatpush1.bf16.msra.mxu0 0
      %1816 = vmatprep.subr.bf16.mxu0 0
      %1817 = vmatpush1.bf16.msra.mxu0 0
      %1818 = vmatprep.subr.bf16.mxu0 0
      %1819 = vmatpush1.bf16.msra.mxu0 0
      %1820 = vmatprep.subr.bf16.mxu0 0
      %1821 = vmatpush1.bf16.msra.mxu0 0
      %1822 = vmatprep.subr.bf16.mxu0 0
      %1823 = vmatpush1.bf16.msra.mxu0 0
      %1824 = vmatprep.subr.bf16.mxu0 0
      %1825 = vmatpush1.bf16.msra.mxu0 0
      %1826 = vmatprep.subr.bf16.mxu0 0
      %1827 = vmatpush1.bf16.msra.mxu0 0
      %1828 = vmatprep.subr.bf16.mxu0 0
      %1829 = vmatpush1.bf16.msra.mxu0 0
      %1830 = vmatprep.subr.bf16.mxu0 0
      %1831 = vmatpush1.bf16.msra.mxu0 0
      %1832 = vmatprep.mubr.bf16.mxu0 0
      %1833 = vmatmul.mubr.bf16.gmra.mrb[0].mxu0 %v1749
      %v1834 = vpop.f32.mrb[0].mxu0
      %v1835 = vadd.f32 0.0, %v1834
      %v1836 = vpop.f32.mrb[0].mxu0
      %v1837 = vpop.f32.mrb[0].mxu0
      %v1838 = vadd.f32 0.0, %v1837
      %v1839 = vpop.f32.mrb[0].mxu0
      %1840 = vmatprep.mubr.bf16.mxu0 0
      %1841 = vmatmul.mubr.bf16.gmra.mrb[0].mxu0 %v1752
      %v1842 = vpop.f32.mrb[0].mxu0
      %v1843 = vadd.f32 0.0, %v1842
      %v1844 = vpop.f32.mrb[0].mxu0
      %v1845 = vpop.f32.mrb[0].mxu0
      %v1846 = vadd.f32 0.0, %v1845
      %v1847 = vpop.f32.mrb[0].mxu0
      %1848 = vmatprep.mubr.bf16.mxu0 0
      %1849 = vmatmul.mubr.bf16.gmra.mrb[0].mxu0 %v1755
      %v1850 = vpop.f32.mrb[0].mxu0
      %v1851 = vadd.f32 0.0, %v1850
      %v1852 = vpop.f32.mrb[0].mxu0
      %v1853 = vpop.f32.mrb[0].mxu0
      %v1854 = vadd.f32 0.0, %v1853
      %v1855 = vpop.f32.mrb[0].mxu0
      %1856 = vmatprep.mubr.bf16.mxu0 0
      %1857 = vmatmul.mubr.bf16.gmra.mrb[0].mxu0 %v1758
      %v1858 = vpop.f32.mrb[0].mxu0
      %v1859 = vadd.f32 0.0, %v1858
      %v1860 = vpop.f32.mrb[0].mxu0
      %v1861 = vpop.f32.mrb[0].mxu0
      %v1862 = vadd.f32 0.0, %v1861
      %v1863 = vpop.f32.mrb[0].mxu0
      %1864 = vmatprep.mubr.bf16.mxu0 0
      %1865 = vmatmul.mubr.bf16.gmra.mrb[0].mxu0 %v1761
      %v1866 = vpop.f32.mrb[0].mxu0
      %v1867 = vadd.f32 0.0, %v1866
      %v1868 = vpop.f32.mrb[0].mxu0
      %v1869 = vpop.f32.mrb[0].mxu0
      %v1870 = vadd.f32 0.0, %v1869
      %v1871 = vpop.f32.mrb[0].mxu0
      %1872 = vmatprep.mubr.bf16.mxu0 0
      %1873 = vmatmul.mubr.bf16.gmra.mrb[0].mxu0 %v1764
      %v1874 = vpop.f32.mrb[0].mxu0
      %v1875 = vadd.f32 0.0, %v1874
      %v1876 = vpop.f32.mrb[0].mxu0
      %v1877 = vpop.f32.mrb[0].mxu0
      %v1878 = vadd.f32 0.0, %v1877
      %v1879 = vpop.f32.mrb[0].mxu0
      %1880 = vmatprep.mubr.bf16.mxu0 0
      %1881 = vmatmul.mubr.bf16.gmra.mrb[0].mxu0 %v1767
      %v1882 = vpop.f32.mrb[0].mxu0
      %v1883 = vadd.f32 0.0, %v1882
      %v1884 = vpop.f32.mrb[0].mxu0
      %v1885 = vpop.f32.mrb[0].mxu0
      %v1886 = vadd.f32 0.0, %v1885
      %v1887 = vpop.f32.mrb[0].mxu0
      %1888 = vmatprep.mubr.bf16.mxu0 0
      %1889 = vmatmul.mubr.bf16.gmra.mrb[0].mxu0 %v1770
      %v1890 = vpop.f32.mrb[0].mxu0
      %v1891 = vadd.f32 0.0, %v1890
      %v1892 = vpop.f32.mrb[0].mxu0
      %v1893 = vpop.f32.mrb[0].mxu0
      %v1894 = vadd.f32 0.0, %v1893
      %v1895 = vpop.f32.mrb[0].mxu0
      %1896 = vmatprep.mubr.bf16.mxu0 0
      %1897 = vmatmul.mubr.bf16.gmra.mrb[0].mxu0 %v1773
      %v1898 = vpop.f32.mrb[0].mxu0
      %v1899 = vadd.f32 0.0, %v1898
      %v1900 = vpop.f32.mrb[0].mxu0
      %v1901 = vpop.f32.mrb[0].mxu0
      %v1902 = vadd.f32 0.0, %v1901
      %v1903 = vpop.f32.mrb[0].mxu0
      %1904 = vmatprep.mubr.bf16.mxu0 0
      %1905 = vmatmul.mubr.bf16.gmra.mrb[0].mxu0 %v1776
      %v1906 = vpop.f32.mrb[0].mxu0
      %v1907 = vadd.f32 0.0, %v1906
      %v1908 = vpop.f32.mrb[0].mxu0
      %v1909 = vpop.f32.mrb[0].mxu0
      %v1910 = vadd.f32 0.0, %v1909
      %v1911 = vpop.f32.mrb[0].mxu0
      %1912 = vmatprep.mubr.bf16.mxu0 0
      %1913 = vmatmul.mubr.bf16.gmra.mrb[0].mxu0 %v1779
      %v1914 = vpop.f32.mrb[0].mxu0
      %v1915 = vadd.f32 0.0, %v1914
      %v1916 = vpop.f32.mrb[0].mxu0
      %v1917 = vpop.f32.mrb[0].mxu0
      %v1918 = vadd.f32 0.0, %v1917
      %v1919 = vpop.f32.mrb[0].mxu0
      %1920 = vmatprep.mubr.bf16.mxu0 0
      %1921 = vmatmul.mubr.bf16.gmra.mrb[0].mxu0 %v1782
      %v1922 = vpop.f32.mrb[0].mxu0
      %v1923 = vadd.f32 0.0, %v1922
      %v1924 = vpop.f32.mrb[0].mxu0
      %v1925 = vpop.f32.mrb[0].mxu0
      %v1926 = vadd.f32 0.0, %v1925
      %v1927 = vpop.f32.mrb[0].mxu0
      %1928 = vmatprep.mubr.bf16.mxu0 0
      %1929 = vmatmul.mubr.bf16.gmra.mrb[0].mxu0 %v1785
      %v1930 = vpop.f32.mrb[0].mxu0
      %v1931 = vadd.f32 0.0, %v1930
      %v1932 = vpop.f32.mrb[0].mxu0
      %v1933 = vpop.f32.mrb[0].mxu0
      %v1934 = vadd.f32 0.0, %v1933
      %v1935 = vpop.f32.mrb[0].mxu0
      %1936 = vmatprep.mubr.bf16.mxu0 0
      %1937 = vmatmul.mubr.bf16.gmra.mrb[0].mxu0 %v1788
      %v1938 = vpop.f32.mrb[0].mxu0
      %v1939 = vadd.f32 0.0, %v1938
      %v1940 = vpop.f32.mrb[0].mxu0
      %v1941 = vpop.f32.mrb[0].mxu0
      %v1942 = vadd.f32 0.0, %v1941
      %v1943 = vpop.f32.mrb[0].mxu0
      %1944 = vmatprep.mubr.bf16.mxu0 0
      %1945 = vmatmul.mubr.bf16.gmra.mrb[0].mxu0 %v1791
      %v1946 = vpop.f32.mrb[0].mxu0
      %v1947 = vadd.f32 0.0, %v1946
      %v1948 = vpop.f32.mrb[0].mxu0
      %v1949 = vpop.f32.mrb[0].mxu0
      %v1950 = vadd.f32 0.0, %v1949
      %v1951 = vpop.f32.mrb[0].mxu0
      %1952 = vmatprep.mubr.bf16.mxu0 0
      %1953 = vmatmul.mubr.bf16.gmra.mrb[0].mxu0 %v1794
      %v1954 = vpop.f32.mrb[0].mxu0
      %v1955 = vadd.f32 0.0, %v1954
      %v1956 = vpop.f32.mrb[0].mxu0
      %v1957 = vpop.f32.mrb[0].mxu0
      %v1958 = vadd.f32 0.0, %v1957
      %v1959 = vpop.f32.mrb[0].mxu0
      %1960 = vdwg.mxu0
      %v1961 = vld [vmem:[%s2] sm:$0x1]
      %v1962 = vlaneseq
      %v1963 = vshrl.u32 %v1962, 7
      %v1964 = vsub.s32 0, %v1963
      %v1965 = vrot.slane %v1961, %v1964
      %v1966 = vmul.f32 %v1835, %v1965
      %v1967 = vmul.f32 %v1838, %v1965
      %v1968 = vmul.f32 %v1843, %v1965
      %v1969 = vmul.f32 %v1846, %v1965
      %v1970 = vmul.f32 %v1851, %v1965
      %v1971 = vmul.f32 %v1854, %v1965
      %v1972 = vmul.f32 %v1859, %v1965
      %v1973 = vmul.f32 %v1862, %v1965
      %v1974 = vmul.f32 %v1867, %v1965
      %v1975 = vmul.f32 %v1870, %v1965
      %v1976 = vmul.f32 %v1875, %v1965
      %v1977 = vmul.f32 %v1878, %v1965
      %v1978 = vmul.f32 %v1883, %v1965
      %v1979 = vmul.f32 %v1886, %v1965
      %v1980 = vmul.f32 %v1891, %v1965
      %v1981 = vmul.f32 %v1894, %v1965
      %v1982 = vmul.f32 %v1899, %v1965
      %v1983 = vmul.f32 %v1902, %v1965
      %v1984 = vmul.f32 %v1907, %v1965
      %v1985 = vmul.f32 %v1910, %v1965
      %v1986 = vmul.f32 %v1915, %v1965
      %v1987 = vmul.f32 %v1918, %v1965
      %v1988 = vmul.f32 %v1923, %v1965
      %v1989 = vmul.f32 %v1926, %v1965
      %v1990 = vmul.f32 %v1931, %v1965
      %v1991 = vmul.f32 %v1934, %v1965
      %v1992 = vmul.f32 %v1939, %v1965
      %v1993 = vmul.f32 %v1942, %v1965
      %v1994 = vmul.f32 %v1947, %v1965
      %v1995 = vmul.f32 %v1950, %v1965
      %v1996 = vmul.f32 %v1955, %v1965
      %v1997 = vmul.f32 %v1958, %v1965
      %v1998 = vld [vmem:[%s2 + $0x1] sm:$0x1]
      %v1999 = vlaneseq
      %v2000 = vshrl.u32 %v1999, 7
      %v2001 = vsub.s32 0, %v2000
      %v2002 = vrot.slane %v1998, %v2001
      %v2003 = vadd.f32 %v1966, %v2002
      %v2004 = vadd.f32 %v1967, %v2002
      %v2005 = vadd.f32 %v1968, %v2002
      %v2006 = vadd.f32 %v1969, %v2002
      %v2007 = vadd.f32 %v1970, %v2002
      %v2008 = vadd.f32 %v1971, %v2002
      %v2009 = vadd.f32 %v1972, %v2002
      %v2010 = vadd.f32 %v1973, %v2002
      %v2011 = vadd.f32 %v1974, %v2002
      %v2012 = vadd.f32 %v1975, %v2002
      %v2013 = vadd.f32 %v1976, %v2002
      %v2014 = vadd.f32 %v1977, %v2002
      %v2015 = vadd.f32 %v1978, %v2002
      %v2016 = vadd.f32 %v1979, %v2002
      %v2017 = vadd.f32 %v1980, %v2002
      %v2018 = vadd.f32 %v1981, %v2002
      %v2019 = vadd.f32 %v1982, %v2002
      %v2020 = vadd.f32 %v1983, %v2002
      %v2021 = vadd.f32 %v1984, %v2002
      %v2022 = vadd.f32 %v1985, %v2002
      %v2023 = vadd.f32 %v1986, %v2002
      %v2024 = vadd.f32 %v1987, %v2002
      %v2025 = vadd.f32 %v1988, %v2002
      %v2026 = vadd.f32 %v1989, %v2002
      %v2027 = vadd.f32 %v1990, %v2002
      %v2028 = vadd.f32 %v1991, %v2002
      %v2029 = vadd.f32 %v1992, %v2002
      %v2030 = vadd.f32 %v1993, %v2002
      %v2031 = vadd.f32 %v1994, %v2002
      %v2032 = vadd.f32 %v1995, %v2002
      %v2033 = vadd.f32 %v1996, %v2002
      %v2034 = vadd.f32 %v1997, %v2002
      %v2035 = vmax.f32 %v2003, 0.0
      %v2036 = vmax.f32 %v2004, 0.0
      %v2037 = vmax.f32 %v2005, 0.0
      %v2038 = vmax.f32 %v2006, 0.0
      %v2039 = vmax.f32 %v2007, 0.0
      %v2040 = vmax.f32 %v2008, 0.0
      %v2041 = vmax.f32 %v2009, 0.0
      %v2042 = vmax.f32 %v2010, 0.0
      %v2043 = vmax.f32 %v2011, 0.0
      %v2044 = vmax.f32 %v2012, 0.0
      %v2045 = vmax.f32 %v2013, 0.0
      %v2046 = vmax.f32 %v2014, 0.0
      %v2047 = vmax.f32 %v2015, 0.0
      %v2048 = vmax.f32 %v2016, 0.0
      %v2049 = vmax.f32 %v2017, 0.0
      %v2050 = vmax.f32 %v2018, 0.0
      %v2051 = vmax.f32 %v2019, 0.0
      %v2052 = vmax.f32 %v2020, 0.0
      %v2053 = vmax.f32 %v2021, 0.0
      %v2054 = vmax.f32 %v2022, 0.0
      %v2055 = vmax.f32 %v2023, 0.0
      %v2056 = vmax.f32 %v2024, 0.0
      %v2057 = vmax.f32 %v2025, 0.0
      %v2058 = vmax.f32 %v2026, 0.0
      %v2059 = vmax.f32 %v2027, 0.0
      %v2060 = vmax.f32 %v2028, 0.0
      %v2061 = vmax.f32 %v2029, 0.0
      %v2062 = vmax.f32 %v2030, 0.0
      %v2063 = vmax.f32 %v2031, 0.0
      %v2064 = vmax.f32 %v2032, 0.0
      %v2065 = vmax.f32 %v2033, 0.0
      %v2066 = vmax.f32 %v2034, 0.0
      %2067 = vst.msk [vmem:[#allocation3] sm:$0xff] %vm1480, 0.0
      %2068 = vst.msk [vmem:[#allocation3 + $0x8] sm:$0xff] %vm1480, 0.0
      %2069 = vst.msk [vmem:[#allocation3 + $0x10] sm:$0xff] %vm1480, 0.0
      %s2070 = scalar_lea.vmem [#allocation3], 408
      %2071 = vst.msk [vmem:[%s2070] sm:$0xff] %vm1480, 0.0
      %2072 = vst.msk [vmem:[%s2070 + $0x8] sm:$0xff] %vm1480, 0.0
      %2073 = vst.msk [vmem:[%s2070 + $0x10] sm:$0xff] %vm1480, 0.0
      %vm2074 = vcmask 57344
      %2075 = vst.msk [vmem:[#allocation3] sm:$0x1] %vm2074, 0.0
      %2076 = vst.msk [vmem:[#allocation3 + $0x18] sm:$0x1] %vm2074, 0.0
      %2077 = vst.msk [vmem:[#allocation3 + $0x30] sm:$0x1] %vm2074, 0.0
      %2078 = vst.msk [vmem:[#allocation3 + $0x48] sm:$0x1] %vm2074, 0.0
      %2079 = vst.msk [vmem:[#allocation3 + $0x60] sm:$0x1] %vm2074, 0.0
      %2080 = vst.msk [vmem:[#allocation3 + $0x78] sm:$0x1] %vm2074, 0.0
      %2081 = vst.msk [vmem:[#allocation3 + $0x90] sm:$0x1] %vm2074, 0.0
      %2082 = vst.msk [vmem:[#allocation3 + $0xa8] sm:$0x1] %vm2074, 0.0
      %2083 = vst.msk [vmem:[#allocation3 + $0xc0] sm:$0x1] %vm2074, 0.0
      %2084 = vst.msk [vmem:[#allocation3 + $0xd8] sm:$0x1] %vm2074, 0.0
      %2085 = vst.msk [vmem:[#allocation3 + $0xf0] sm:$0x1] %vm2074, 0.0
      %2086 = vst.msk [vmem:[#allocation3 + $0x108] sm:$0x1] %vm2074, 0.0
      %2087 = vst.msk [vmem:[#allocation3 + $0x120] sm:$0x1] %vm2074, 0.0
      %2088 = vst.msk [vmem:[#allocation3 + $0x138] sm:$0x1] %vm2074, 0.0
      %2089 = vst.msk [vmem:[#allocation3 + $0x150] sm:$0x1] %vm2074, 0.0
      %2090 = vst.msk [vmem:[#allocation3 + $0x168] sm:$0x1] %vm2074, 0.0
      %2091 = vst.msk [vmem:[#allocation3 + $0x180] sm:$0x1] %vm2074, 0.0
      %2092 = vst.msk [vmem:[#allocation3 + $0x198] sm:$0x1] %vm2074, 0.0
      %2093 = vst.msk [vmem:[#allocation3 + $0x11] sm:$0x1] %vm2074, 0.0
      %2094 = vst.msk [vmem:[#allocation3 + $0x29] sm:$0x1] %vm2074, 0.0
      %2095 = vst.msk [vmem:[#allocation3 + $0x41] sm:$0x1] %vm2074, 0.0
      %2096 = vst.msk [vmem:[#allocation3 + $0x59] sm:$0x1] %vm2074, 0.0
      %2097 = vst.msk [vmem:[#allocation3 + $0x71] sm:$0x1] %vm2074, 0.0
      %2098 = vst.msk [vmem:[#allocation3 + $0x89] sm:$0x1] %vm2074, 0.0
      %2099 = vst.msk [vmem:[#allocation3 + $0xa1] sm:$0x1] %vm2074, 0.0
      %2100 = vst.msk [vmem:[#allocation3 + $0xb9] sm:$0x1] %vm2074, 0.0
      %2101 = vst.msk [vmem:[#allocation3 + $0xd1] sm:$0x1] %vm2074, 0.0
      %2102 = vst.msk [vmem:[#allocation3 + $0xe9] sm:$0x1] %vm2074, 0.0
      %2103 = vst.msk [vmem:[#allocation3 + $0x101] sm:$0x1] %vm2074, 0.0
      %2104 = vst.msk [vmem:[#allocation3 + $0x119] sm:$0x1] %vm2074, 0.0
      %2105 = vst.msk [vmem:[#allocation3 + $0x131] sm:$0x1] %vm2074, 0.0
      %2106 = vst.msk [vmem:[#allocation3 + $0x149] sm:$0x1] %vm2074, 0.0
      %2107 = vst.msk [vmem:[#allocation3 + $0x161] sm:$0x1] %vm2074, 0.0
      %2108 = vst.msk [vmem:[#allocation3 + $0x179] sm:$0x1] %vm2074, 0.0
      %2109 = vst.msk [vmem:[#allocation3 + $0x191] sm:$0x1] %vm2074, 0.0
      %2110 = vst.msk [vmem:[#allocation3 + $0x1a9] sm:$0x1] %vm2074, 0.0
      %s2111 = scalar_lea.vmem [#allocation3], 24
      %2112 = vst.msk [vmem:[%s2111 + $0x1] sm:$0xff] %vm1480, %v2035
      %2113 = vst.msk [vmem:[%s2111 + $0x9] sm:$0xff] %vm1480, %v2036
      %2114 = vst.msk [vmem:[%s2111 + $0x19] sm:$0xff] %vm1480, %v2037
      %2115 = vst.msk [vmem:[%s2111 + $0x21] sm:$0xff] %vm1480, %v2038
      %2116 = vst.msk [vmem:[%s2111 + $0x31] sm:$0xff] %vm1480, %v2039
      %2117 = vst.msk [vmem:[%s2111 + $0x39] sm:$0xff] %vm1480, %v2040
      %2118 = vst.msk [vmem:[%s2111 + $0x49] sm:$0xff] %vm1480, %v2041
      %2119 = vst.msk [vmem:[%s2111 + $0x51] sm:$0xff] %vm1480, %v2042
      %2120 = vst.msk [vmem:[%s2111 + $0x61] sm:$0xff] %vm1480, %v2043
      %2121 = vst.msk [vmem:[%s2111 + $0x69] sm:$0xff] %vm1480, %v2044
      %2122 = vst.msk [vmem:[%s2111 + $0x79] sm:$0xff] %vm1480, %v2045
      %2123 = vst.msk [vmem:[%s2111 + $0x81] sm:$0xff] %vm1480, %v2046
      %2124 = vst.msk [vmem:[%s2111 + $0x91] sm:$0xff] %vm1480, %v2047
      %2125 = vst.msk [vmem:[%s2111 + $0x99] sm:$0xff] %vm1480, %v2048
      %2126 = vst.msk [vmem:[%s2111 + $0xa9] sm:$0xff] %vm1480, %v2049
      %2127 = vst.msk [vmem:[%s2111 + $0xb1] sm:$0xff] %vm1480, %v2050
      %2128 = vst.msk [vmem:[%s2111 + $0xc1] sm:$0xff] %vm1480, %v2051
      %2129 = vst.msk [vmem:[%s2111 + $0xc9] sm:$0xff] %vm1480, %v2052
      %2130 = vst.msk [vmem:[%s2111 + $0xd9] sm:$0xff] %vm1480, %v2053
      %2131 = vst.msk [vmem:[%s2111 + $0xe1] sm:$0xff] %vm1480, %v2054
      %2132 = vst.msk [vmem:[%s2111 + $0xf1] sm:$0xff] %vm1480, %v2055
      %2133 = vst.msk [vmem:[%s2111 + $0xf9] sm:$0xff] %vm1480, %v2056
      %2134 = vst.msk [vmem:[%s2111 + $0x109] sm:$0xff] %vm1480, %v2057
      %2135 = vst.msk [vmem:[%s2111 + $0x111] sm:$0xff] %vm1480, %v2058
      %2136 = vst.msk [vmem:[%s2111 + $0x121] sm:$0xff] %vm1480, %v2059
      %2137 = vst.msk [vmem:[%s2111 + $0x129] sm:$0xff] %vm1480, %v2060
      %2138 = vst.msk [vmem:[%s2111 + $0x139] sm:$0xff] %vm1480, %v2061
      %2139 = vst.msk [vmem:[%s2111 + $0x141] sm:$0xff] %vm1480, %v2062
      %2140 = vst.msk [vmem:[%s2111 + $0x151] sm:$0xff] %vm1480, %v2063
      %2141 = vst.msk [vmem:[%s2111 + $0x159] sm:$0xff] %vm1480, %v2064
      %2142 = vst.msk [vmem:[%s2111 + $0x169] sm:$0xff] %vm1480, %v2065
      %2143 = vst.msk [vmem:[%s2111 + $0x171] sm:$0xff] %vm1480, %v2066
      %v2144 = vld [vmem:[#allocation3] sm:$0xff]
      %v2145 = vld [vmem:[#allocation3 + $0x8] sm:$0xff]
      %v2146 = vld [vmem:[#allocation3 + $0x10] sm:$0xff]
      %v2147 = vld [vmem:[#allocation3 + $0x18] sm:$0xff]
      %v2148 = vld [vmem:[#allocation3 + $0x20] sm:$0xff]
      %v2149 = vld [vmem:[#allocation3 + $0x28] sm:$0xff]
      %v2150 = vld [vmem:[#allocation3 + $0x30] sm:$0xff]
      %v2151 = vld [vmem:[#allocation3 + $0x38] sm:$0xff]
      %v2152 = vld [vmem:[#allocation3 + $0x40] sm:$0xff]
      %v2153 = vld [vmem:[#allocation3 + $0x48] sm:$0xff]
      %v2154 = vld [vmem:[#allocation3 + $0x50] sm:$0xff]
      %v2155 = vld [vmem:[#allocation3 + $0x58] sm:$0xff]
      %v2156 = vld [vmem:[#allocation3 + $0x60] sm:$0xff]
      %v2157 = vld [vmem:[#allocation3 + $0x68] sm:$0xff]
      %v2158 = vld [vmem:[#allocation3 + $0x70] sm:$0xff]
      %v2159 = vld [vmem:[#allocation3 + $0x78] sm:$0xff]
      %v2160 = vld [vmem:[#allocation3 + $0x80] sm:$0xff]
      %v2161 = vld [vmem:[#allocation3 + $0x88] sm:$0xff]
      %v2162 = vld [vmem:[#allocation3 + $0x90] sm:$0xff]
      %v2163 = vld [vmem:[#allocation3 + $0x98] sm:$0xff]
      %v2164 = vld [vmem:[#allocation3 + $0xa0] sm:$0xff]
      %v2165 = vld [vmem:[#allocation3 + $0xa8] sm:$0xff]
      %v2166 = vld [vmem:[#allocation3 + $0xb0] sm:$0xff]
      %v2167 = vld [vmem:[#allocation3 + $0xb8] sm:$0xff]
      %v2168 = vld [vmem:[#allocation3 + $0xc0] sm:$0xff]
      %v2169 = vld [vmem:[#allocation3 + $0xc8] sm:$0xff]
      %v2170 = vld [vmem:[#allocation3 + $0xd0] sm:$0xff]
      %v2171 = vld [vmem:[#allocation3 + $0xd8] sm:$0xff]
      %v2172 = vld [vmem:[#allocation3 + $0xe0] sm:$0xff]
      %v2173 = vld [vmem:[#allocation3 + $0xe8] sm:$0xff]
      %v2174 = vld [vmem:[#allocation3 + $0xf0] sm:$0xff]
      %v2175 = vld [vmem:[#allocation3 + $0xf8] sm:$0xff]
      %v2176 = vld [vmem:[#allocation3 + $0x100] sm:$0xff]
      %v2177 = vld [vmem:[#allocation3 + $0x108] sm:$0xff]
      %v2178 = vld [vmem:[#allocation3 + $0x110] sm:$0xff]
      %v2179 = vld [vmem:[#allocation3 + $0x118] sm:$0xff]
      %v2180 = vld [vmem:[#allocation3 + $0x120] sm:$0xff]
      %v2181 = vld [vmem:[#allocation3 + $0x128] sm:$0xff]
      %v2182 = vld [vmem:[#allocation3 + $0x130] sm:$0xff]
      %v2183 = vld [vmem:[#allocation3 + $0x138] sm:$0xff]
      %v2184 = vld [vmem:[#allocation3 + $0x140] sm:$0xff]
      %v2185 = vld [vmem:[#allocation3 + $0x148] sm:$0xff]
      %v2186 = vld [vmem:[#allocation3 + $0x150] sm:$0xff]
      %v2187 = vld [vmem:[#allocation3 + $0x158] sm:$0xff]
      %v2188 = vld [vmem:[#allocation3 + $0x160] sm:$0xff]
      %v2189 = vld [vmem:[#allocation3 + $0x168] sm:$0xff]
      %v2190 = vld [vmem:[#allocation3 + $0x170] sm:$0xff]
      %v2191 = vld [vmem:[#allocation3 + $0x178] sm:$0xff]
      %v2192 = vld [vmem:[#allocation3 + $0x180] sm:$0xff]
      %v2193 = vld [vmem:[#allocation3 + $0x188] sm:$0xff]
      %v2194 = vld [vmem:[#allocation3 + $0x190] sm:$0xff]
      %v2195 = vld [vmem:[#allocation3 + $0x198] sm:$0xff]
      %v2196 = vld [vmem:[#allocation3 + $0x1a0] sm:$0xff]
      %v2197 = vld [vmem:[#allocation3 + $0x1a8] sm:$0xff]
      %v2246 = vrot.slane %v2144, 1
      %v2247 = vrot.slane %v2145, 1
      %v2248 = vsel %vm492, %v2246, %v2247
      %v2249 = vrot.slane %v2146, 1
      %v2250 = vsel %vm492, %v2247, %v2249
      %v2251 = vrot.slane %v2147, 1
      %v2252 = vrot.slane %v2148, 1
      %v2253 = vsel %vm492, %v2251, %v2252
      %v2254 = vrot.slane %v2149, 1
      %v2255 = vsel %vm492, %v2252, %v2254
      %v2256 = vrot.slane %v2150, 1
      %v2257 = vrot.slane %v2151, 1
      %v2258 = vsel %vm492, %v2256, %v2257
      %v2259 = vrot.slane %v2152, 1
      %v2260 = vsel %vm492, %v2257, %v2259
      %v2261 = vrot.slane %v2153, 1
      %v2262 = vrot.slane %v2154, 1
      %v2263 = vsel %vm492, %v2261, %v2262
      %v2264 = vrot.slane %v2155, 1
      %v2265 = vsel %vm492, %v2262, %v2264
      %v2266 = vrot.slane %v2156, 1
      %v2267 = vrot.slane %v2157, 1
      %v2268 = vsel %vm492, %v2266, %v2267
      %v2269 = vrot.slane %v2158, 1
      %v2270 = vsel %vm492, %v2267, %v2269
      %v2271 = vrot.slane %v2159, 1
      %v2272 = vrot.slane %v2160, 1
      %v2273 = vsel %vm492, %v2271, %v2272
      %v2274 = vrot.slane %v2161, 1
      %v2275 = vsel %vm492, %v2272, %v2274
      %v2276 = vrot.slane %v2162, 1
      %v2277 = vrot.slane %v2163, 1
      %v2278 = vsel %vm492, %v2276, %v2277
      %v2279 = vrot.slane %v2164, 1
      %v2280 = vsel %vm492, %v2277, %v2279
      %v2281 = vrot.slane %v2165, 1
      %v2282 = vrot.slane %v2166, 1
      %v2283 = vsel %vm492, %v2281, %v2282
      %v2284 = vrot.slane %v2167, 1
      %v2285 = vsel %vm492, %v2282, %v2284
      %v2286 = vrot.slane %v2168, 1
      %v2287 = vrot.slane %v2169, 1
      %v2288 = vsel %vm492, %v2286, %v2287
      %v2289 = vrot.slane %v2170, 1
      %v2290 = vsel %vm492, %v2287, %v2289
      %v2291 = vrot.slane %v2171, 1
      %v2292 = vrot.slane %v2172, 1
      %v2293 = vsel %vm492, %v2291, %v2292
      %v2294 = vrot.slane %v2173, 1
      %v2295 = vsel %vm492, %v2292, %v2294
      %v2296 = vrot.slane %v2174, 1
      %v2297 = vrot.slane %v2175, 1
      %v2298 = vsel %vm492, %v2296, %v2297
      %v2299 = vrot.slane %v2176, 1
      %v2300 = vsel %vm492, %v2297, %v2299
      %v2301 = vrot.slane %v2177, 1
      %v2302 = vrot.slane %v2178, 1
      %v2303 = vsel %vm492, %v2301, %v2302
      %v2304 = vrot.slane %v2179, 1
      %v2305 = vsel %vm492, %v2302, %v2304
      %v2306 = vrot.slane %v2180, 1
      %v2307 = vrot.slane %v2181, 1
      %v2308 = vsel %vm492, %v2306, %v2307
      %v2309 = vrot.slane %v2182, 1
      %v2310 = vsel %vm492, %v2307, %v2309
      %v2311 = vrot.slane %v2183, 1
      %v2312 = vrot.slane %v2184, 1
      %v2313 = vsel %vm492, %v2311, %v2312
      %v2314 = vrot.slane %v2185, 1
      %v2315 = vsel %vm492, %v2312, %v2314
      %v2316 = vrot.slane %v2186, 1
      %v2317 = vrot.slane %v2187, 1
      %v2318 = vsel %vm492, %v2316, %v2317
      %v2319 = vrot.slane %v2188, 1
      %v2320 = vsel %vm492, %v2317, %v2319
      %v2321 = vrot.slane %v2189, 1
      %v2322 = vrot.slane %v2190, 1
      %v2323 = vsel %vm492, %v2321, %v2322
      %v2324 = vrot.slane %v2191, 1
      %v2325 = vsel %vm492, %v2322, %v2324
      %2326 = vrot.lane.b32.xlu0 %v2248, 8
      %v2327 = vpop.permute.xlu0 %2326
      %2328 = vrot.lane.b32.xlu0 %v2250, 8
      %v2329 = vpop.permute.xlu0 %2328
      %2330 = vrot.lane.b32.xlu0 %v2253, 8
      %v2331 = vpop.permute.xlu0 %2330
      %2332 = vrot.lane.b32.xlu0 %v2255, 8
      %v2333 = vpop.permute.xlu0 %2332
      %2334 = vrot.lane.b32.xlu0 %v2258, 8
      %v2335 = vpop.permute.xlu0 %2334
      %2336 = vrot.lane.b32.xlu0 %v2260, 8
      %v2337 = vpop.permute.xlu0 %2336
      %2338 = vrot.lane.b32.xlu0 %v2263, 8
      %v2339 = vpop.permute.xlu0 %2338
      %2340 = vrot.lane.b32.xlu0 %v2265, 8
      %v2341 = vpop.permute.xlu0 %2340
      %2342 = vrot.lane.b32.xlu0 %v2268, 8
      %v2343 = vpop.permute.xlu0 %2342
      %2344 = vrot.lane.b32.xlu0 %v2270, 8
      %v2345 = vpop.permute.xlu0 %2344
      %2346 = vrot.lane.b32.xlu0 %v2273, 8
      %v2347 = vpop.permute.xlu0 %2346
      %2348 = vrot.lane.b32.xlu0 %v2275, 8
      %v2349 = vpop.permute.xlu0 %2348
      %2350 = vrot.lane.b32.xlu0 %v2278, 8
      %v2351 = vpop.permute.xlu0 %2350
      %2352 = vrot.lane.b32.xlu0 %v2280, 8
      %v2353 = vpop.permute.xlu0 %2352
      %2354 = vrot.lane.b32.xlu0 %v2283, 8
      %v2355 = vpop.permute.xlu0 %2354
      %2356 = vrot.lane.b32.xlu0 %v2285, 8
      %v2357 = vpop.permute.xlu0 %2356
      %2358 = vrot.lane.b32.xlu0 %v2288, 8
      %v2359 = vpop.permute.xlu0 %2358
      %2360 = vrot.lane.b32.xlu0 %v2290, 8
      %v2361 = vpop.permute.xlu0 %2360
      %2362 = vrot.lane.b32.xlu0 %v2293, 8
      %v2363 = vpop.permute.xlu0 %2362
      %2364 = vrot.lane.b32.xlu0 %v2295, 8
      %v2365 = vpop.permute.xlu0 %2364
      %2366 = vrot.lane.b32.xlu0 %v2298, 8
      %v2367 = vpop.permute.xlu0 %2366
      %2368 = vrot.lane.b32.xlu0 %v2300, 8
      %v2369 = vpop.permute.xlu0 %2368
      %2370 = vrot.lane.b32.xlu0 %v2303, 8
      %v2371 = vpop.permute.xlu0 %2370
      %2372 = vrot.lane.b32.xlu0 %v2305, 8
      %v2373 = vpop.permute.xlu0 %2372
      %2374 = vrot.lane.b32.xlu0 %v2308, 8
      %v2375 = vpop.permute.xlu0 %2374
      %2376 = vrot.lane.b32.xlu0 %v2310, 8
      %v2377 = vpop.permute.xlu0 %2376
      %2378 = vrot.lane.b32.xlu0 %v2313, 8
      %v2379 = vpop.permute.xlu0 %2378
      %2380 = vrot.lane.b32.xlu0 %v2315, 8
      %v2381 = vpop.permute.xlu0 %2380
      %2382 = vrot.lane.b32.xlu0 %v2318, 8
      %v2383 = vpop.permute.xlu0 %2382
      %2384 = vrot.lane.b32.xlu0 %v2320, 8
      %v2385 = vpop.permute.xlu0 %2384
      %2386 = vrot.lane.b32.xlu0 %v2323, 8
      %v2387 = vpop.permute.xlu0 %2386
      %2388 = vrot.lane.b32.xlu0 %v2325, 8
      %v2389 = vpop.permute.xlu0 %2388
      %v2422 = vrot.slane %v2144, 2
      %v2423 = vrot.slane %v2145, 2
      %v2424 = vsel %vm669, %v2422, %v2423
      %v2425 = vrot.slane %v2146, 2
      %v2426 = vsel %vm669, %v2423, %v2425
      %v2427 = vrot.slane %v2147, 2
      %v2428 = vrot.slane %v2148, 2
      %v2429 = vsel %vm669, %v2427, %v2428
      %v2430 = vrot.slane %v2149, 2
      %v2431 = vsel %vm669, %v2428, %v2430
      %v2432 = vrot.slane %v2150, 2
      %v2433 = vrot.slane %v2151, 2
      %v2434 = vsel %vm669, %v2432, %v2433
      %v2435 = vrot.slane %v2152, 2
      %v2436 = vsel %vm669, %v2433, %v2435
      %v2437 = vrot.slane %v2153, 2
      %v2438 = vrot.slane %v2154, 2
      %v2439 = vsel %vm669, %v2437, %v2438
      %v2440 = vrot.slane %v2155, 2
      %v2441 = vsel %vm669, %v2438, %v2440
      %v2442 = vrot.slane %v2156, 2
      %v2443 = vrot.slane %v2157, 2
      %v2444 = vsel %vm669, %v2442, %v2443
      %v2445 = vrot.slane %v2158, 2
      %v2446 = vsel %vm669, %v2443, %v2445
      %v2447 = vrot.slane %v2159, 2
      %v2448 = vrot.slane %v2160, 2
      %v2449 = vsel %vm669, %v2447, %v2448
      %v2450 = vrot.slane %v2161, 2
      %v2451 = vsel %vm669, %v2448, %v2450
      %v2452 = vrot.slane %v2162, 2
      %v2453 = vrot.slane %v2163, 2
      %v2454 = vsel %vm669, %v2452, %v2453
      %v2455 = vrot.slane %v2164, 2
      %v2456 = vsel %vm669, %v2453, %v2455
      %v2457 = vrot.slane %v2165, 2
      %v2458 = vrot.slane %v2166, 2
      %v2459 = vsel %vm669, %v2457, %v2458
      %v2460 = vrot.slane %v2167, 2
      %v2461 = vsel %vm669, %v2458, %v2460
      %v2462 = vrot.slane %v2168, 2
      %v2463 = vrot.slane %v2169, 2
      %v2464 = vsel %vm669, %v2462, %v2463
      %v2465 = vrot.slane %v2170, 2
      %v2466 = vsel %vm669, %v2463, %v2465
      %v2467 = vrot.slane %v2171, 2
      %v2468 = vrot.slane %v2172, 2
      %v2469 = vsel %vm669, %v2467, %v2468
      %v2470 = vrot.slane %v2173, 2
      %v2471 = vsel %vm669, %v2468, %v2470
      %v2472 = vrot.slane %v2174, 2
      %v2473 = vrot.slane %v2175, 2
      %v2474 = vsel %vm669, %v2472, %v2473
      %v2475 = vrot.slane %v2176, 2
      %v2476 = vsel %vm669, %v2473, %v2475
      %v2477 = vrot.slane %v2177, 2
      %v2478 = vrot.slane %v2178, 2
      %v2479 = vsel %vm669, %v2477, %v2478
      %v2480 = vrot.slane %v2179, 2
      %v2481 = vsel %vm669, %v2478, %v2480
      %v2482 = vrot.slane %v2180, 2
      %v2483 = vrot.slane %v2181, 2
      %v2484 = vsel %vm669, %v2482, %v2483
      %v2485 = vrot.slane %v2182, 2
      %v2486 = vsel %vm669, %v2483, %v2485
      %v2487 = vrot.slane %v2183, 2
      %v2488 = vrot.slane %v2184, 2
      %v2489 = vsel %vm669, %v2487, %v2488
      %v2490 = vrot.slane %v2185, 2
      %v2491 = vsel %vm669, %v2488, %v2490
      %v2492 = vrot.slane %v2186, 2
      %v2493 = vrot.slane %v2187, 2
      %v2494 = vsel %vm669, %v2492, %v2493
      %v2495 = vrot.slane %v2188, 2
      %v2496 = vsel %vm669, %v2493, %v2495
      %v2497 = vrot.slane %v2189, 2
      %v2498 = vrot.slane %v2190, 2
      %v2499 = vsel %vm669, %v2497, %v2498
      %v2500 = vrot.slane %v2191, 2
      %v2501 = vsel %vm669, %v2498, %v2500
      %2502 = vrot.lane.b32.xlu0 %v2424, 16
      %v2503 = vpop.permute.xlu0 %2502
      %2504 = vrot.lane.b32.xlu0 %v2426, 16
      %v2505 = vpop.permute.xlu0 %2504
      %2506 = vrot.lane.b32.xlu0 %v2429, 16
      %v2507 = vpop.permute.xlu0 %2506
      %2508 = vrot.lane.b32.xlu0 %v2431, 16
      %v2509 = vpop.permute.xlu0 %2508
      %2510 = vrot.lane.b32.xlu0 %v2434, 16
      %v2511 = vpop.permute.xlu0 %2510
      %2512 = vrot.lane.b32.xlu0 %v2436, 16
      %v2513 = vpop.permute.xlu0 %2512
      %2514 = vrot.lane.b32.xlu0 %v2439, 16
      %v2515 = vpop.permute.xlu0 %2514
      %2516 = vrot.lane.b32.xlu0 %v2441, 16
      %v2517 = vpop.permute.xlu0 %2516
      %2518 = vrot.lane.b32.xlu0 %v2444, 16
      %v2519 = vpop.permute.xlu0 %2518
      %2520 = vrot.lane.b32.xlu0 %v2446, 16
      %v2521 = vpop.permute.xlu0 %2520
      %2522 = vrot.lane.b32.xlu0 %v2449, 16
      %v2523 = vpop.permute.xlu0 %2522
      %2524 = vrot.lane.b32.xlu0 %v2451, 16
      %v2525 = vpop.permute.xlu0 %2524
      %2526 = vrot.lane.b32.xlu0 %v2454, 16
      %v2527 = vpop.permute.xlu0 %2526
      %2528 = vrot.lane.b32.xlu0 %v2456, 16
      %v2529 = vpop.permute.xlu0 %2528
      %2530 = vrot.lane.b32.xlu0 %v2459, 16
      %v2531 = vpop.permute.xlu0 %2530
      %2532 = vrot.lane.b32.xlu0 %v2461, 16
      %v2533 = vpop.permute.xlu0 %2532
      %2534 = vrot.lane.b32.xlu0 %v2464, 16
      %v2535 = vpop.permute.xlu0 %2534
      %2536 = vrot.lane.b32.xlu0 %v2466, 16
      %v2537 = vpop.permute.xlu0 %2536
      %2538 = vrot.lane.b32.xlu0 %v2469, 16
      %v2539 = vpop.permute.xlu0 %2538
      %2540 = vrot.lane.b32.xlu0 %v2471, 16
      %v2541 = vpop.permute.xlu0 %2540
      %2542 = vrot.lane.b32.xlu0 %v2474, 16
      %v2543 = vpop.permute.xlu0 %2542
      %2544 = vrot.lane.b32.xlu0 %v2476, 16
      %v2545 = vpop.permute.xlu0 %2544
      %2546 = vrot.lane.b32.xlu0 %v2479, 16
      %v2547 = vpop.permute.xlu0 %2546
      %2548 = vrot.lane.b32.xlu0 %v2481, 16
      %v2549 = vpop.permute.xlu0 %2548
      %2550 = vrot.lane.b32.xlu0 %v2484, 16
      %v2551 = vpop.permute.xlu0 %2550
      %2552 = vrot.lane.b32.xlu0 %v2486, 16
      %v2553 = vpop.permute.xlu0 %2552
      %2554 = vrot.lane.b32.xlu0 %v2489, 16
      %v2555 = vpop.permute.xlu0 %2554
      %2556 = vrot.lane.b32.xlu0 %v2491, 16
      %v2557 = vpop.permute.xlu0 %2556
      %2558 = vrot.lane.b32.xlu0 %v2494, 16
      %v2559 = vpop.permute.xlu0 %2558
      %2560 = vrot.lane.b32.xlu0 %v2496, 16
      %v2561 = vpop.permute.xlu0 %2560
      %2562 = vrot.lane.b32.xlu0 %v2499, 16
      %v2563 = vpop.permute.xlu0 %2562
      %2564 = vrot.lane.b32.xlu0 %v2501, 16
      %v2565 = vpop.permute.xlu0 %2564
      %2600 = vrot.lane.b32.xlu0 %v2147, 24
      %v2601 = vpop.permute.xlu0 %2600
      %2602 = vrot.lane.b32.xlu0 %v2148, 24
      %v2603 = vpop.permute.xlu0 %2602
      %2604 = vrot.lane.b32.xlu0 %v2150, 24
      %v2605 = vpop.permute.xlu0 %2604
      %2606 = vrot.lane.b32.xlu0 %v2151, 24
      %v2607 = vpop.permute.xlu0 %2606
      %2608 = vrot.lane.b32.xlu0 %v2153, 24
      %v2609 = vpop.permute.xlu0 %2608
      %2610 = vrot.lane.b32.xlu0 %v2154, 24
      %v2611 = vpop.permute.xlu0 %2610
      %2612 = vrot.lane.b32.xlu0 %v2156, 24
      %v2613 = vpop.permute.xlu0 %2612
      %2614 = vrot.lane.b32.xlu0 %v2157, 24
      %v2615 = vpop.permute.xlu0 %2614
      %2616 = vrot.lane.b32.xlu0 %v2159, 24
      %v2617 = vpop.permute.xlu0 %2616
      %2618 = vrot.lane.b32.xlu0 %v2160, 24
      %v2619 = vpop.permute.xlu0 %2618
      %2620 = vrot.lane.b32.xlu0 %v2162, 24
      %v2621 = vpop.permute.xlu0 %2620
      %2622 = vrot.lane.b32.xlu0 %v2163, 24
      %v2623 = vpop.permute.xlu0 %2622
      %2624 = vrot.lane.b32.xlu0 %v2165, 24
      %v2625 = vpop.permute.xlu0 %2624
      %2626 = vrot.lane.b32.xlu0 %v2166, 24
      %v2627 = vpop.permute.xlu0 %2626
      %2628 = vrot.lane.b32.xlu0 %v2168, 24
      %v2629 = vpop.permute.xlu0 %2628
      %2630 = vrot.lane.b32.xlu0 %v2169, 24
      %v2631 = vpop.permute.xlu0 %2630
      %2632 = vrot.lane.b32.xlu0 %v2171, 24
      %v2633 = vpop.permute.xlu0 %2632
      %2634 = vrot.lane.b32.xlu0 %v2172, 24
      %v2635 = vpop.permute.xlu0 %2634
      %2636 = vrot.lane.b32.xlu0 %v2174, 24
      %v2637 = vpop.permute.xlu0 %2636
      %2638 = vrot.lane.b32.xlu0 %v2175, 24
      %v2639 = vpop.permute.xlu0 %2638
      %2640 = vrot.lane.b32.xlu0 %v2177, 24
      %v2641 = vpop.permute.xlu0 %2640
      %2642 = vrot.lane.b32.xlu0 %v2178, 24
      %v2643 = vpop.permute.xlu0 %2642
      %2644 = vrot.lane.b32.xlu0 %v2180, 24
      %v2645 = vpop.permute.xlu0 %2644
      %2646 = vrot.lane.b32.xlu0 %v2181, 24
      %v2647 = vpop.permute.xlu0 %2646
      %2648 = vrot.lane.b32.xlu0 %v2183, 24
      %v2649 = vpop.permute.xlu0 %2648
      %2650 = vrot.lane.b32.xlu0 %v2184, 24
      %v2651 = vpop.permute.xlu0 %2650
      %2652 = vrot.lane.b32.xlu0 %v2186, 24
      %v2653 = vpop.permute.xlu0 %2652
      %2654 = vrot.lane.b32.xlu0 %v2187, 24
      %v2655 = vpop.permute.xlu0 %2654
      %2656 = vrot.lane.b32.xlu0 %v2189, 24
      %v2657 = vpop.permute.xlu0 %2656
      %2658 = vrot.lane.b32.xlu0 %v2190, 24
      %v2659 = vpop.permute.xlu0 %2658
      %2660 = vrot.lane.b32.xlu0 %v2192, 24
      %v2661 = vpop.permute.xlu0 %2660
      %2662 = vrot.lane.b32.xlu0 %v2193, 24
      %v2663 = vpop.permute.xlu0 %2662
      %v2697 = vrot.slane %v2192, 1
      %v2698 = vrot.slane %v2193, 1
      %v2699 = vsel %vm492, %v2697, %v2698
      %v2700 = vrot.slane %v2194, 1
      %v2701 = vsel %vm492, %v2698, %v2700
      %2702 = vrot.lane.b32.xlu0 %v2253, 32
      %v2703 = vpop.permute.xlu0 %2702
      %2704 = vrot.lane.b32.xlu0 %v2255, 32
      %v2705 = vpop.permute.xlu0 %2704
      %2706 = vrot.lane.b32.xlu0 %v2258, 32
      %v2707 = vpop.permute.xlu0 %2706
      %2708 = vrot.lane.b32.xlu0 %v2260, 32
      %v2709 = vpop.permute.xlu0 %2708
      %2710 = vrot.lane.b32.xlu0 %v2263, 32
      %v2711 = vpop.permute.xlu0 %2710
      %2712 = vrot.lane.b32.xlu0 %v2265, 32
      %v2713 = vpop.permute.xlu0 %2712
      %2714 = vrot.lane.b32.xlu0 %v2268, 32
      %v2715 = vpop.permute.xlu0 %2714
      %2716 = vrot.lane.b32.xlu0 %v2270, 32
      %v2717 = vpop.permute.xlu0 %2716
      %2718 = vrot.lane.b32.xlu0 %v2273, 32
      %v2719 = vpop.permute.xlu0 %2718
      %2720 = vrot.lane.b32.xlu0 %v2275, 32
      %v2721 = vpop.permute.xlu0 %2720
      %2722 = vrot.lane.b32.xlu0 %v2278, 32
      %v2723 = vpop.permute.xlu0 %2722
      %2724 = vrot.lane.b32.xlu0 %v2280, 32
      %v2725 = vpop.permute.xlu0 %2724
      %2726 = vrot.lane.b32.xlu0 %v2283, 32
      %v2727 = vpop.permute.xlu0 %2726
      %2728 = vrot.lane.b32.xlu0 %v2285, 32
      %v2729 = vpop.permute.xlu0 %2728
      %2730 = vrot.lane.b32.xlu0 %v2288, 32
      %v2731 = vpop.permute.xlu0 %2730
      %2732 = vrot.lane.b32.xlu0 %v2290, 32
      %v2733 = vpop.permute.xlu0 %2732
      %2734 = vrot.lane.b32.xlu0 %v2293, 32
      %v2735 = vpop.permute.xlu0 %2734
      %2736 = vrot.lane.b32.xlu0 %v2295, 32
      %v2737 = vpop.permute.xlu0 %2736
      %2738 = vrot.lane.b32.xlu0 %v2298, 32
      %v2739 = vpop.permute.xlu0 %2738
      %2740 = vrot.lane.b32.xlu0 %v2300, 32
      %v2741 = vpop.permute.xlu0 %2740
      %2742 = vrot.lane.b32.xlu0 %v2303, 32
      %v2743 = vpop.permute.xlu0 %2742
      %2744 = vrot.lane.b32.xlu0 %v2305, 32
      %v2745 = vpop.permute.xlu0 %2744
      %2746 = vrot.lane.b32.xlu0 %v2308, 32
      %v2747 = vpop.permute.xlu0 %2746
      %2748 = vrot.lane.b32.xlu0 %v2310, 32
      %v2749 = vpop.permute.xlu0 %2748
      %2750 = vrot.lane.b32.xlu0 %v2313, 32
      %v2751 = vpop.permute.xlu0 %2750
      %2752 = vrot.lane.b32.xlu0 %v2315, 32
      %v2753 = vpop.permute.xlu0 %2752
      %2754 = vrot.lane.b32.xlu0 %v2318, 32
      %v2755 = vpop.permute.xlu0 %2754
      %2756 = vrot.lane.b32.xlu0 %v2320, 32
      %v2757 = vpop.permute.xlu0 %2756
      %2758 = vrot.lane.b32.xlu0 %v2323, 32
      %v2759 = vpop.permute.xlu0 %2758
      %2760 = vrot.lane.b32.xlu0 %v2325, 32
      %v2761 = vpop.permute.xlu0 %2760
      %2762 = vrot.lane.b32.xlu0 %v2699, 32
      %v2763 = vpop.permute.xlu0 %2762
      %2764 = vrot.lane.b32.xlu0 %v2701, 32
      %v2765 = vpop.permute.xlu0 %2764
      %v2798 = vrot.slane %v2192, 2
      %v2799 = vrot.slane %v2193, 2
      %v2800 = vsel %vm669, %v2798, %v2799
      %v2801 = vrot.slane %v2194, 2
      %v2802 = vsel %vm669, %v2799, %v2801
      %2803 = vrot.lane.b32.xlu0 %v2429, 40
      %v2804 = vpop.permute.xlu0 %2803
      %2805 = vrot.lane.b32.xlu0 %v2431, 40
      %v2806 = vpop.permute.xlu0 %2805
      %2807 = vrot.lane.b32.xlu0 %v2434, 40
      %v2808 = vpop.permute.xlu0 %2807
      %2809 = vrot.lane.b32.xlu0 %v2436, 40
      %v2810 = vpop.permute.xlu0 %2809
      %2811 = vrot.lane.b32.xlu0 %v2439, 40
      %v2812 = vpop.permute.xlu0 %2811
      %2813 = vrot.lane.b32.xlu0 %v2441, 40
      %v2814 = vpop.permute.xlu0 %2813
      %2815 = vrot.lane.b32.xlu0 %v2444, 40
      %v2816 = vpop.permute.xlu0 %2815
      %2817 = vrot.lane.b32.xlu0 %v2446, 40
      %v2818 = vpop.permute.xlu0 %2817
      %2819 = vrot.lane.b32.xlu0 %v2449, 40
      %v2820 = vpop.permute.xlu0 %2819
      %2821 = vrot.lane.b32.xlu0 %v2451, 40
      %v2822 = vpop.permute.xlu0 %2821
      %2823 = vrot.lane.b32.xlu0 %v2454, 40
      %v2824 = vpop.permute.xlu0 %2823
      %2825 = vrot.lane.b32.xlu0 %v2456, 40
      %v2826 = vpop.permute.xlu0 %2825
      %2827 = vrot.lane.b32.xlu0 %v2459, 40
      %v2828 = vpop.permute.xlu0 %2827
      %2829 = vrot.lane.b32.xlu0 %v2461, 40
      %v2830 = vpop.permute.xlu0 %2829
      %2831 = vrot.lane.b32.xlu0 %v2464, 40
      %v2832 = vpop.permute.xlu0 %2831
      %2833 = vrot.lane.b32.xlu0 %v2466, 40
      %v2834 = vpop.permute.xlu0 %2833
      %2835 = vrot.lane.b32.xlu0 %v2469, 40
      %v2836 = vpop.permute.xlu0 %2835
      %2837 = vrot.lane.b32.xlu0 %v2471, 40
      %v2838 = vpop.permute.xlu0 %2837
      %2839 = vrot.lane.b32.xlu0 %v2474, 40
      %v2840 = vpop.permute.xlu0 %2839
      %2841 = vrot.lane.b32.xlu0 %v2476, 40
      %v2842 = vpop.permute.xlu0 %2841
      %2843 = vrot.lane.b32.xlu0 %v2479, 40
      %v2844 = vpop.permute.xlu0 %2843
      %2845 = vrot.lane.b32.xlu0 %v2481, 40
      %v2846 = vpop.permute.xlu0 %2845
      %2847 = vrot.lane.b32.xlu0 %v2484, 40
      %v2848 = vpop.permute.xlu0 %2847
      %2849 = vrot.lane.b32.xlu0 %v2486, 40
      %v2850 = vpop.permute.xlu0 %2849
      %2851 = vrot.lane.b32.xlu0 %v2489, 40
      %v2852 = vpop.permute.xlu0 %2851
      %2853 = vrot.lane.b32.xlu0 %v2491, 40
      %v2854 = vpop.permute.xlu0 %2853
      %2855 = vrot.lane.b32.xlu0 %v2494, 40
      %v2856 = vpop.permute.xlu0 %2855
      %2857 = vrot.lane.b32.xlu0 %v2496, 40
      %v2858 = vpop.permute.xlu0 %2857
      %2859 = vrot.lane.b32.xlu0 %v2499, 40
      %v2860 = vpop.permute.xlu0 %2859
      %2861 = vrot.lane.b32.xlu0 %v2501, 40
      %v2862 = vpop.permute.xlu0 %2861
      %2863 = vrot.lane.b32.xlu0 %v2800, 40
      %v2864 = vpop.permute.xlu0 %2863
      %2865 = vrot.lane.b32.xlu0 %v2802, 40
      %v2866 = vpop.permute.xlu0 %2865
      %2901 = vrot.lane.b32.xlu0 %v2150, 48
      %v2902 = vpop.permute.xlu0 %2901
      %2903 = vrot.lane.b32.xlu0 %v2151, 48
      %v2904 = vpop.permute.xlu0 %2903
      %2905 = vrot.lane.b32.xlu0 %v2153, 48
      %v2906 = vpop.permute.xlu0 %2905
      %2907 = vrot.lane.b32.xlu0 %v2154, 48
      %v2908 = vpop.permute.xlu0 %2907
      %2909 = vrot.lane.b32.xlu0 %v2156, 48
      %v2910 = vpop.permute.xlu0 %2909
      %2911 = vrot.lane.b32.xlu0 %v2157, 48
      %v2912 = vpop.permute.xlu0 %2911
      %2913 = vrot.lane.b32.xlu0 %v2159, 48
      %v2914 = vpop.permute.xlu0 %2913
      %2915 = vrot.lane.b32.xlu0 %v2160, 48
      %v2916 = vpop.permute.xlu0 %2915
      %2917 = vrot.lane.b32.xlu0 %v2162, 48
      %v2918 = vpop.permute.xlu0 %2917
      %2919 = vrot.lane.b32.xlu0 %v2163, 48
      %v2920 = vpop.permute.xlu0 %2919
      %2921 = vrot.lane.b32.xlu0 %v2165, 48
      %v2922 = vpop.permute.xlu0 %2921
      %2923 = vrot.lane.b32.xlu0 %v2166, 48
      %v2924 = vpop.permute.xlu0 %2923
      %2925 = vrot.lane.b32.xlu0 %v2168, 48
      %v2926 = vpop.permute.xlu0 %2925
      %2927 = vrot.lane.b32.xlu0 %v2169, 48
      %v2928 = vpop.permute.xlu0 %2927
      %2929 = vrot.lane.b32.xlu0 %v2171, 48
      %v2930 = vpop.permute.xlu0 %2929
      %2931 = vrot.lane.b32.xlu0 %v2172, 48
      %v2932 = vpop.permute.xlu0 %2931
      %2933 = vrot.lane.b32.xlu0 %v2174, 48
      %v2934 = vpop.permute.xlu0 %2933
      %2935 = vrot.lane.b32.xlu0 %v2175, 48
      %v2936 = vpop.permute.xlu0 %2935
      %2937 = vrot.lane.b32.xlu0 %v2177, 48
      %v2938 = vpop.permute.xlu0 %2937
      %2939 = vrot.lane.b32.xlu0 %v2178, 48
      %v2940 = vpop.permute.xlu0 %2939
      %2941 = vrot.lane.b32.xlu0 %v2180, 48
      %v2942 = vpop.permute.xlu0 %2941
      %2943 = vrot.lane.b32.xlu0 %v2181, 48
      %v2944 = vpop.permute.xlu0 %2943
      %2945 = vrot.lane.b32.xlu0 %v2183, 48
      %v2946 = vpop.permute.xlu0 %2945
      %2947 = vrot.lane.b32.xlu0 %v2184, 48
      %v2948 = vpop.permute.xlu0 %2947
      %2949 = vrot.lane.b32.xlu0 %v2186, 48
      %v2950 = vpop.permute.xlu0 %2949
      %2951 = vrot.lane.b32.xlu0 %v2187, 48
      %v2952 = vpop.permute.xlu0 %2951
      %2953 = vrot.lane.b32.xlu0 %v2189, 48
      %v2954 = vpop.permute.xlu0 %2953
      %2955 = vrot.lane.b32.xlu0 %v2190, 48
      %v2956 = vpop.permute.xlu0 %2955
      %2957 = vrot.lane.b32.xlu0 %v2192, 48
      %v2958 = vpop.permute.xlu0 %2957
      %2959 = vrot.lane.b32.xlu0 %v2193, 48
      %v2960 = vpop.permute.xlu0 %2959
      %2961 = vrot.lane.b32.xlu0 %v2195, 48
      %v2962 = vpop.permute.xlu0 %2961
      %2963 = vrot.lane.b32.xlu0 %v2196, 48
      %v2964 = vpop.permute.xlu0 %2963
      %v2998 = vrot.slane %v2195, 1
      %v2999 = vrot.slane %v2196, 1
      %v3000 = vsel %vm492, %v2998, %v2999
      %v3001 = vrot.slane %v2197, 1
      %v3002 = vsel %vm492, %v2999, %v3001
      %3003 = vrot.lane.b32.xlu0 %v2258, 56
      %v3004 = vpop.permute.xlu0 %3003
      %3005 = vrot.lane.b32.xlu0 %v2260, 56
      %v3006 = vpop.permute.xlu0 %3005
      %3007 = vrot.lane.b32.xlu0 %v2263, 56
      %v3008 = vpop.permute.xlu0 %3007
      %3009 = vrot.lane.b32.xlu0 %v2265, 56
      %v3010 = vpop.permute.xlu0 %3009
      %3011 = vrot.lane.b32.xlu0 %v2268, 56
      %v3012 = vpop.permute.xlu0 %3011
      %3013 = vrot.lane.b32.xlu0 %v2270, 56
      %v3014 = vpop.permute.xlu0 %3013
      %3015 = vrot.lane.b32.xlu0 %v2273, 56
      %v3016 = vpop.permute.xlu0 %3015
      %3017 = vrot.lane.b32.xlu0 %v2275, 56
      %v3018 = vpop.permute.xlu0 %3017
      %3019 = vrot.lane.b32.xlu0 %v2278, 56
      %v3020 = vpop.permute.xlu0 %3019
      %3021 = vrot.lane.b32.xlu0 %v2280, 56
      %v3022 = vpop.permute.xlu0 %3021
      %3023 = vrot.lane.b32.xlu0 %v2283, 56
      %v3024 = vpop.permute.xlu0 %3023
      %3025 = vrot.lane.b32.xlu0 %v2285, 56
      %v3026 = vpop.permute.xlu0 %3025
      %3027 = vrot.lane.b32.xlu0 %v2288, 56
      %v3028 = vpop.permute.xlu0 %3027
      %3029 = vrot.lane.b32.xlu0 %v2290, 56
      %v3030 = vpop.permute.xlu0 %3029
      %3031 = vrot.lane.b32.xlu0 %v2293, 56
      %v3032 = vpop.permute.xlu0 %3031
      %3033 = vrot.lane.b32.xlu0 %v2295, 56
      %v3034 = vpop.permute.xlu0 %3033
      %3035 = vrot.lane.b32.xlu0 %v2298, 56
      %v3036 = vpop.permute.xlu0 %3035
      %3037 = vrot.lane.b32.xlu0 %v2300, 56
      %v3038 = vpop.permute.xlu0 %3037
      %3039 = vrot.lane.b32.xlu0 %v2303, 56
      %v3040 = vpop.permute.xlu0 %3039
      %3041 = vrot.lane.b32.xlu0 %v2305, 56
      %v3042 = vpop.permute.xlu0 %3041
      %3043 = vrot.lane.b32.xlu0 %v2308, 56
      %v3044 = vpop.permute.xlu0 %3043
      %3045 = vrot.lane.b32.xlu0 %v2310, 56
      %v3046 = vpop.permute.xlu0 %3045
      %3047 = vrot.lane.b32.xlu0 %v2313, 56
      %v3048 = vpop.permute.xlu0 %3047
      %3049 = vrot.lane.b32.xlu0 %v2315, 56
      %v3050 = vpop.permute.xlu0 %3049
      %3051 = vrot.lane.b32.xlu0 %v2318, 56
      %v3052 = vpop.permute.xlu0 %3051
      %3053 = vrot.lane.b32.xlu0 %v2320, 56
      %v3054 = vpop.permute.xlu0 %3053
      %3055 = vrot.lane.b32.xlu0 %v2323, 56
      %v3056 = vpop.permute.xlu0 %3055
      %3057 = vrot.lane.b32.xlu0 %v2325, 56
      %v3058 = vpop.permute.xlu0 %3057
      %3059 = vrot.lane.b32.xlu0 %v2699, 56
      %v3060 = vpop.permute.xlu0 %3059
      %3061 = vrot.lane.b32.xlu0 %v2701, 56
      %v3062 = vpop.permute.xlu0 %3061
      %3063 = vrot.lane.b32.xlu0 %v3000, 56
      %v3064 = vpop.permute.xlu0 %3063
      %3065 = vrot.lane.b32.xlu0 %v3002, 56
      %v3066 = vpop.permute.xlu0 %3065
      %v3099 = vrot.slane %v2195, 2
      %v3100 = vrot.slane %v2196, 2
      %v3101 = vsel %vm669, %v3099, %v3100
      %v3102 = vrot.slane %v2197, 2
      %v3103 = vsel %vm669, %v3100, %v3102
      %3104 = vrot.lane.b32.xlu0 %v2434, 64
      %v3105 = vpop.permute.xlu0 %3104
      %3106 = vrot.lane.b32.xlu0 %v2436, 64
      %v3107 = vpop.permute.xlu0 %3106
      %3108 = vrot.lane.b32.xlu0 %v2439, 64
      %v3109 = vpop.permute.xlu0 %3108
      %3110 = vrot.lane.b32.xlu0 %v2441, 64
      %v3111 = vpop.permute.xlu0 %3110
      %3112 = vrot.lane.b32.xlu0 %v2444, 64
      %v3113 = vpop.permute.xlu0 %3112
      %3114 = vrot.lane.b32.xlu0 %v2446, 64
      %v3115 = vpop.permute.xlu0 %3114
      %3116 = vrot.lane.b32.xlu0 %v2449, 64
      %v3117 = vpop.permute.xlu0 %3116
      %3118 = vrot.lane.b32.xlu0 %v2451, 64
      %v3119 = vpop.permute.xlu0 %3118
      %3120 = vrot.lane.b32.xlu0 %v2454, 64
      %v3121 = vpop.permute.xlu0 %3120
      %3122 = vrot.lane.b32.xlu0 %v2456, 64
      %v3123 = vpop.permute.xlu0 %3122
      %3124 = vrot.lane.b32.xlu0 %v2459, 64
      %v3125 = vpop.permute.xlu0 %3124
      %3126 = vrot.lane.b32.xlu0 %v2461, 64
      %v3127 = vpop.permute.xlu0 %3126
      %3128 = vrot.lane.b32.xlu0 %v2464, 64
      %v3129 = vpop.permute.xlu0 %3128
      %3130 = vrot.lane.b32.xlu0 %v2466, 64
      %v3131 = vpop.permute.xlu0 %3130
      %3132 = vrot.lane.b32.xlu0 %v2469, 64
      %v3133 = vpop.permute.xlu0 %3132
      %3134 = vrot.lane.b32.xlu0 %v2471, 64
      %v3135 = vpop.permute.xlu0 %3134
      %3136 = vrot.lane.b32.xlu0 %v2474, 64
      %v3137 = vpop.permute.xlu0 %3136
      %3138 = vrot.lane.b32.xlu0 %v2476, 64
      %v3139 = vpop.permute.xlu0 %3138
      %3140 = vrot.lane.b32.xlu0 %v2479, 64
      %v3141 = vpop.permute.xlu0 %3140
      %3142 = vrot.lane.b32.xlu0 %v2481, 64
      %v3143 = vpop.permute.xlu0 %3142
      %3144 = vrot.lane.b32.xlu0 %v2484, 64
      %v3145 = vpop.permute.xlu0 %3144
      %3146 = vrot.lane.b32.xlu0 %v2486, 64
      %v3147 = vpop.permute.xlu0 %3146
      %3148 = vrot.lane.b32.xlu0 %v2489, 64
      %v3149 = vpop.permute.xlu0 %3148
      %3150 = vrot.lane.b32.xlu0 %v2491, 64
      %v3151 = vpop.permute.xlu0 %3150
      %3152 = vrot.lane.b32.xlu0 %v2494, 64
      %v3153 = vpop.permute.xlu0 %3152
      %3154 = vrot.lane.b32.xlu0 %v2496, 64
      %v3155 = vpop.permute.xlu0 %3154
      %3156 = vrot.lane.b32.xlu0 %v2499, 64
      %v3157 = vpop.permute.xlu0 %3156
      %3158 = vrot.lane.b32.xlu0 %v2501, 64
      %v3159 = vpop.permute.xlu0 %3158
      %3160 = vrot.lane.b32.xlu0 %v2800, 64
      %v3161 = vpop.permute.xlu0 %3160
      %3162 = vrot.lane.b32.xlu0 %v2802, 64
      %v3163 = vpop.permute.xlu0 %3162
      %3164 = vrot.lane.b32.xlu0 %v3101, 64
      %v3165 = vpop.permute.xlu0 %3164
      %3166 = vrot.lane.b32.xlu0 %v3103, 64
      %v3167 = vpop.permute.xlu0 %3166
      %v3200 = vsel %vm1480, %v2144, %v2327
      %v3201 = vsel %vm1480, %v2145, %v2329
      %v3202 = vsel %vm1480, %v2147, %v2331
      %v3203 = vsel %vm1480, %v2148, %v2333
      %v3204 = vsel %vm1480, %v2150, %v2335
      %v3205 = vsel %vm1480, %v2151, %v2337
      %v3206 = vsel %vm1480, %v2153, %v2339
      %v3207 = vsel %vm1480, %v2154, %v2341
      %v3208 = vsel %vm1480, %v2156, %v2343
      %v3209 = vsel %vm1480, %v2157, %v2345
      %v3210 = vsel %vm1480, %v2159, %v2347
      %v3211 = vsel %vm1480, %v2160, %v2349
      %v3212 = vsel %vm1480, %v2162, %v2351
      %v3213 = vsel %vm1480, %v2163, %v2353
      %v3214 = vsel %vm1480, %v2165, %v2355
      %v3215 = vsel %vm1480, %v2166, %v2357
      %v3216 = vsel %vm1480, %v2168, %v2359
      %v3217 = vsel %vm1480, %v2169, %v2361
      %v3218 = vsel %vm1480, %v2171, %v2363
      %v3219 = vsel %vm1480, %v2172, %v2365
      %v3220 = vsel %vm1480, %v2174, %v2367
      %v3221 = vsel %vm1480, %v2175, %v2369
      %v3222 = vsel %vm1480, %v2177, %v2371
      %v3223 = vsel %vm1480, %v2178, %v2373
      %v3224 = vsel %vm1480, %v2180, %v2375
      %v3225 = vsel %vm1480, %v2181, %v2377
      %v3226 = vsel %vm1480, %v2183, %v2379
      %v3227 = vsel %vm1480, %v2184, %v2381
      %v3228 = vsel %vm1480, %v2186, %v2383
      %v3229 = vsel %vm1480, %v2187, %v2385
      %v3230 = vsel %vm1480, %v2189, %v2387
      %v3231 = vsel %vm1480, %v2190, %v2389
      %v3232 = vsel %vm1546, %v3200, %v2503
      %v3233 = vsel %vm1546, %v3201, %v2505
      %v3234 = vsel %vm1546, %v3202, %v2507
      %v3235 = vsel %vm1546, %v3203, %v2509
      %v3236 = vsel %vm1546, %v3204, %v2511
      %v3237 = vsel %vm1546, %v3205, %v2513
      %v3238 = vsel %vm1546, %v3206, %v2515
      %v3239 = vsel %vm1546, %v3207, %v2517
      %v3240 = vsel %vm1546, %v3208, %v2519
      %v3241 = vsel %vm1546, %v3209, %v2521
      %v3242 = vsel %vm1546, %v3210, %v2523
      %v3243 = vsel %vm1546, %v3211, %v2525
      %v3244 = vsel %vm1546, %v3212, %v2527
      %v3245 = vsel %vm1546, %v3213, %v2529
      %v3246 = vsel %vm1546, %v3214, %v2531
      %v3247 = vsel %vm1546, %v3215, %v2533
      %v3248 = vsel %vm1546, %v3216, %v2535
      %v3249 = vsel %vm1546, %v3217, %v2537
      %v3250 = vsel %vm1546, %v3218, %v2539
      %v3251 = vsel %vm1546, %v3219, %v2541
      %v3252 = vsel %vm1546, %v3220, %v2543
      %v3253 = vsel %vm1546, %v3221, %v2545
      %v3254 = vsel %vm1546, %v3222, %v2547
      %v3255 = vsel %vm1546, %v3223, %v2549
      %v3256 = vsel %vm1546, %v3224, %v2551
      %v3257 = vsel %vm1546, %v3225, %v2553
      %v3258 = vsel %vm1546, %v3226, %v2555
      %v3259 = vsel %vm1546, %v3227, %v2557
      %v3260 = vsel %vm1546, %v3228, %v2559
      %v3261 = vsel %vm1546, %v3229, %v2561
      %v3262 = vsel %vm1546, %v3230, %v2563
      %v3263 = vsel %vm1546, %v3231, %v2565
      %v3264 = vsel %vm1612, %v3232, %v2601
      %v3265 = vsel %vm1612, %v3233, %v2603
      %v3266 = vsel %vm1612, %v3234, %v2605
      %v3267 = vsel %vm1612, %v3235, %v2607
      %v3268 = vsel %vm1612, %v3236, %v2609
      %v3269 = vsel %vm1612, %v3237, %v2611
      %v3270 = vsel %vm1612, %v3238, %v2613
      %v3271 = vsel %vm1612, %v3239, %v2615
      %v3272 = vsel %vm1612, %v3240, %v2617
      %v3273 = vsel %vm1612, %v3241, %v2619
      %v3274 = vsel %vm1612, %v3242, %v2621
      %v3275 = vsel %vm1612, %v3243, %v2623
      %v3276 = vsel %vm1612, %v3244, %v2625
      %v3277 = vsel %vm1612, %v3245, %v2627
      %v3278 = vsel %vm1612, %v3246, %v2629
      %v3279 = vsel %vm1612, %v3247, %v2631
      %v3280 = vsel %vm1612, %v3248, %v2633
      %v3281 = vsel %vm1612, %v3249, %v2635
      %v3282 = vsel %vm1612, %v3250, %v2637
      %v3283 = vsel %vm1612, %v3251, %v2639
      %v3284 = vsel %vm1612, %v3252, %v2641
      %v3285 = vsel %vm1612, %v3253, %v2643
      %v3286 = vsel %vm1612, %v3254, %v2645
      %v3287 = vsel %vm1612, %v3255, %v2647
      %v3288 = vsel %vm1612, %v3256, %v2649
      %v3289 = vsel %vm1612, %v3257, %v2651
      %v3290 = vsel %vm1612, %v3258, %v2653
      %v3291 = vsel %vm1612, %v3259, %v2655
      %v3292 = vsel %vm1612, %v3260, %v2657
      %v3293 = vsel %vm1612, %v3261, %v2659
      %v3294 = vsel %vm1612, %v3262, %v2661
      %v3295 = vsel %vm1612, %v3263, %v2663
      %v3296 = vsel %vm1678, %v3264, %v2703
      %v3297 = vsel %vm1678, %v3265, %v2705
      %v3298 = vsel %vm1678, %v3266, %v2707
      %v3299 = vsel %vm1678, %v3267, %v2709
      %v3300 = vsel %vm1678, %v3268, %v2711
      %v3301 = vsel %vm1678, %v3269, %v2713
      %v3302 = vsel %vm1678, %v3270, %v2715
      %v3303 = vsel %vm1678, %v3271, %v2717
      %v3304 = vsel %vm1678, %v3272, %v2719
      %v3305 = vsel %vm1678, %v3273, %v2721
      %v3306 = vsel %vm1678, %v3274, %v2723
      %v3307 = vsel %vm1678, %v3275, %v2725
      %v3308 = vsel %vm1678, %v3276, %v2727
      %v3309 = vsel %vm1678, %v3277, %v2729
      %v3310 = vsel %vm1678, %v3278, %v2731
      %v3311 = vsel %vm1678, %v3279, %v2733
      %v3312 = vsel %vm1678, %v3280, %v2735
      %v3313 = vsel %vm1678, %v3281, %v2737
      %v3314 = vsel %vm1678, %v3282, %v2739
      %v3315 = vsel %vm1678, %v3283, %v2741
      %v3316 = vsel %vm1678, %v3284, %v2743
      %v3317 = vsel %vm1678, %v3285, %v2745
      %v3318 = vsel %vm1678, %v3286, %v2747
      %v3319 = vsel %vm1678, %v3287, %v2749
      %v3320 = vsel %vm1678, %v3288, %v2751
      %v3321 = vsel %vm1678, %v3289, %v2753
      %v3322 = vsel %vm1678, %v3290, %v2755
      %v3323 = vsel %vm1678, %v3291, %v2757
      %v3324 = vsel %vm1678, %v3292, %v2759
      %v3325 = vsel %vm1678, %v3293, %v2761
      %v3326 = vsel %vm1678, %v3294, %v2763
      %v3327 = vsel %vm1678, %v3295, %v2765
      %vm3328 = vcmask 326656
      %v3329 = vsel %vm3328, %v3296, %v2804
      %v3330 = vsel %vm3328, %v3297, %v2806
      %v3331 = vsel %vm3328, %v3298, %v2808
      %v3332 = vsel %vm3328, %v3299, %v2810
      %v3333 = vsel %vm3328, %v3300, %v2812
      %v3334 = vsel %vm3328, %v3301, %v2814
      %v3335 = vsel %vm3328, %v3302, %v2816
      %v3336 = vsel %vm3328, %v3303, %v2818
      %v3337 = vsel %vm3328, %v3304, %v2820
      %v3338 = vsel %vm3328, %v3305, %v2822
      %v3339 = vsel %vm3328, %v3306, %v2824
      %v3340 = vsel %vm3328, %v3307, %v2826
      %v3341 = vsel %vm3328, %v3308, %v2828
      %v3342 = vsel %vm3328, %v3309, %v2830
      %v3343 = vsel %vm3328, %v3310, %v2832
      %v3344 = vsel %vm3328, %v3311, %v2834
      %v3345 = vsel %vm3328, %v3312, %v2836
      %v3346 = vsel %vm3328, %v3313, %v2838
      %v3347 = vsel %vm3328, %v3314, %v2840
      %v3348 = vsel %vm3328, %v3315, %v2842
      %v3349 = vsel %vm3328, %v3316, %v2844
      %v3350 = vsel %vm3328, %v3317, %v2846
      %v3351 = vsel %vm3328, %v3318, %v2848
      %v3352 = vsel %vm3328, %v3319, %v2850
      %v3353 = vsel %vm3328, %v3320, %v2852
      %v3354 = vsel %vm3328, %v3321, %v2854
      %v3355 = vsel %vm3328, %v3322, %v2856
      %v3356 = vsel %vm3328, %v3323, %v2858
      %v3357 = vsel %vm3328, %v3324, %v2860
      %v3358 = vsel %vm3328, %v3325, %v2862
      %v3359 = vsel %vm3328, %v3326, %v2864
      %v3360 = vsel %vm3328, %v3327, %v2866
      %vm3361 = vcmask 392192
      %v3362 = vsel %vm3361, %v3329, %v2902
      %v3363 = vsel %vm3361, %v3330, %v2904
      %v3364 = vsel %vm3361, %v3331, %v2906
      %v3365 = vsel %vm3361, %v3332, %v2908
      %v3366 = vsel %vm3361, %v3333, %v2910
      %v3367 = vsel %vm3361, %v3334, %v2912
      %v3368 = vsel %vm3361, %v3335, %v2914
      %v3369 = vsel %vm3361, %v3336, %v2916
      %v3370 = vsel %vm3361, %v3337, %v2918
      %v3371 = vsel %vm3361, %v3338, %v2920
      %v3372 = vsel %vm3361, %v3339, %v2922
      %v3373 = vsel %vm3361, %v3340, %v2924
      %v3374 = vsel %vm3361, %v3341, %v2926
      %v3375 = vsel %vm3361, %v3342, %v2928
      %v3376 = vsel %vm3361, %v3343, %v2930
      %v3377 = vsel %vm3361, %v3344, %v2932
      %v3378 = vsel %vm3361, %v3345, %v2934
      %v3379 = vsel %vm3361, %v3346, %v2936
      %v3380 = vsel %vm3361, %v3347, %v2938
      %v3381 = vsel %vm3361, %v3348, %v2940
      %v3382 = vsel %vm3361, %v3349, %v2942
      %v3383 = vsel %vm3361, %v3350, %v2944
      %v3384 = vsel %vm3361, %v3351, %v2946
      %v3385 = vsel %vm3361, %v3352, %v2948
      %v3386 = vsel %vm3361, %v3353, %v2950
      %v3387 = vsel %vm3361, %v3354, %v2952
      %v3388 = vsel %vm3361, %v3355, %v2954
      %v3389 = vsel %vm3361, %v3356, %v2956
      %v3390 = vsel %vm3361, %v3357, %v2958
      %v3391 = vsel %vm3361, %v3358, %v2960
      %v3392 = vsel %vm3361, %v3359, %v2962
      %v3393 = vsel %vm3361, %v3360, %v2964
      %vm3394 = vcmask 457728
      %v3395 = vsel %vm3394, %v3362, %v3004
      %v3396 = vsel %vm3394, %v3363, %v3006
      %v3397 = vsel %vm3394, %v3364, %v3008
      %v3398 = vsel %vm3394, %v3365, %v3010
      %v3399 = vsel %vm3394, %v3366, %v3012
      %v3400 = vsel %vm3394, %v3367, %v3014
      %v3401 = vsel %vm3394, %v3368, %v3016
      %v3402 = vsel %vm3394, %v3369, %v3018
      %v3403 = vsel %vm3394, %v3370, %v3020
      %v3404 = vsel %vm3394, %v3371, %v3022
      %v3405 = vsel %vm3394, %v3372, %v3024
      %v3406 = vsel %vm3394, %v3373, %v3026
      %v3407 = vsel %vm3394, %v3374, %v3028
      %v3408 = vsel %vm3394, %v3375, %v3030
      %v3409 = vsel %vm3394, %v3376, %v3032
      %v3410 = vsel %vm3394, %v3377, %v3034
      %v3411 = vsel %vm3394, %v3378, %v3036
      %v3412 = vsel %vm3394, %v3379, %v3038
      %v3413 = vsel %vm3394, %v3380, %v3040
      %v3414 = vsel %vm3394, %v3381, %v3042
      %v3415 = vsel %vm3394, %v3382, %v3044
      %v3416 = vsel %vm3394, %v3383, %v3046
      %v3417 = vsel %vm3394, %v3384, %v3048
      %v3418 = vsel %vm3394, %v3385, %v3050
      %v3419 = vsel %vm3394, %v3386, %v3052
      %v3420 = vsel %vm3394, %v3387, %v3054
      %v3421 = vsel %vm3394, %v3388, %v3056
      %v3422 = vsel %vm3394, %v3389, %v3058
      %v3423 = vsel %vm3394, %v3390, %v3060
      %v3424 = vsel %vm3394, %v3391, %v3062
      %v3425 = vsel %vm3394, %v3392, %v3064
      %v3426 = vsel %vm3394, %v3393, %v3066
      %vm3427 = vcmask 523264
      %v3428 = vsel %vm3427, %v3395, %v3105
      %v3429 = vsel %vm3427, %v3396, %v3107
      %v3430 = vsel %vm3427, %v3397, %v3109
      %v3431 = vsel %vm3427, %v3398, %v3111
      %v3432 = vsel %vm3427, %v3399, %v3113
      %v3433 = vsel %vm3427, %v3400, %v3115
      %v3434 = vsel %vm3427, %v3401, %v3117
      %v3435 = vsel %vm3427, %v3402, %v3119
      %v3436 = vsel %vm3427, %v3403, %v3121
      %v3437 = vsel %vm3427, %v3404, %v3123
      %v3438 = vsel %vm3427, %v3405, %v3125
      %v3439 = vsel %vm3427, %v3406, %v3127
      %v3440 = vsel %vm3427, %v3407, %v3129
      %v3441 = vsel %vm3427, %v3408, %v3131
      %v3442 = vsel %vm3427, %v3409, %v3133
      %v3443 = vsel %vm3427, %v3410, %v3135
      %v3444 = vsel %vm3427, %v3411, %v3137
      %v3445 = vsel %vm3427, %v3412, %v3139
      %v3446 = vsel %vm3427, %v3413, %v3141
      %v3447 = vsel %vm3427, %v3414, %v3143
      %v3448 = vsel %vm3427, %v3415, %v3145
      %v3449 = vsel %vm3427, %v3416, %v3147
      %v3450 = vsel %vm3427, %v3417, %v3149
      %v3451 = vsel %vm3427, %v3418, %v3151
      %v3452 = vsel %vm3427, %v3419, %v3153
      %v3453 = vsel %vm3427, %v3420, %v3155
      %v3454 = vsel %vm3427, %v3421, %v3157
      %v3455 = vsel %vm3427, %v3422, %v3159
      %v3456 = vsel %vm3427, %v3423, %v3161
      %v3457 = vsel %vm3427, %v3424, %v3163
      %v3458 = vsel %vm3427, %v3425, %v3165
      %v3459 = vsel %vm3427, %v3426, %v3167
      %v3460 = vpack.c.bf16 %v3429, %v3428
      %v3461 = vpack.c.bf16 %v3431, %v3430
      %v3462 = vpack.c.bf16 %v3433, %v3432
      %v3463 = vpack.c.bf16 %v3435, %v3434
      %v3464 = vpack.c.bf16 %v3437, %v3436
      %v3465 = vpack.c.bf16 %v3439, %v3438
      %v3466 = vpack.c.bf16 %v3441, %v3440
      %v3467 = vpack.c.bf16 %v3443, %v3442
      %v3468 = vpack.c.bf16 %v3445, %v3444
      %v3469 = vpack.c.bf16 %v3447, %v3446
      %v3470 = vpack.c.bf16 %v3449, %v3448
      %v3471 = vpack.c.bf16 %v3451, %v3450
      %v3472 = vpack.c.bf16 %v3453, %v3452
      %v3473 = vpack.c.bf16 %v3455, %v3454
      %v3474 = vpack.c.bf16 %v3457, %v3456
      %v3475 = vpack.c.bf16 %v3459, %v3458
      %v3476 = vld [vmem:[%s3] sm:$0xf]
      %v3477 = vld [vmem:[%s3 + $0x4] sm:$0xf]
      %v3478 = vld [vmem:[%s3 + $0x8] sm:$0xf]
      %v3479 = vld [vmem:[%s3 + $0xc] sm:$0xf]
      %v3480 = vld [vmem:[%s3 + $0x10] sm:$0xf]
      %v3481 = vld [vmem:[%s3 + $0x14] sm:$0xf]
      %v3482 = vld [vmem:[%s3 + $0x18] sm:$0xf]
      %v3483 = vld [vmem:[%s3 + $0x1c] sm:$0xf]
      %v3484 = vld [vmem:[%s3 + $0x20] sm:$0xf]
      %v3494 = vunpack.c.l.b16 %v3476
      %v3495 = vunpack.c.l.b16 %v3477
      %v3496 = vunpack.c.l.b16 %v3478
      %v3497 = vunpack.c.l.b16 %v3479
      %v3498 = vunpack.c.l.b16 %v3480
      %v3499 = vunpack.c.l.b16 %v3481
      %v3500 = vunpack.c.l.b16 %v3482
      %v3501 = vunpack.c.l.b16 %v3483
      %v3502 = vunpack.c.l.b16 %v3484
      %v3503 = vpack.c.b16 %v3495, %v3494
      %v3504 = vpack.c.b16 %v3497, %v3496
      %v3505 = vpack.c.b16 %v3499, %v3498
      %v3506 = vpack.c.b16 %v3501, %v3500
      %v3507 = vpack.c.b16 %v3502, %v3502
      %vm3512 = vcmask 588800
      %v3514 = vsel %vm3512, %v3460, 0
      %v3517 = vsel %vm3512, %v3461, 0
      %v3520 = vsel %vm3512, %v3462, 0
      %v3523 = vsel %vm3512, %v3463, 0
      %v3526 = vsel %vm3512, %v3464, 0
      %v3529 = vsel %vm3512, %v3465, 0
      %v3532 = vsel %vm3512, %v3466, 0
      %v3535 = vsel %vm3512, %v3467, 0
      %v3538 = vsel %vm3512, %v3468, 0
      %v3541 = vsel %vm3512, %v3469, 0
      %v3544 = vsel %vm3512, %v3470, 0
      %v3547 = vsel %vm3512, %v3471, 0
      %v3550 = vsel %vm3512, %v3472, 0
      %v3553 = vsel %vm3512, %v3473, 0
      %v3556 = vsel %vm3512, %v3474, 0
      %v3559 = vsel %vm3512, %v3475, 0
      %vm3561 = vcmask 1043456
      %v3563 = vsel %vm3561, %v3507, 0
      %3565 = vmatprep.subr.bf16.mxu0 0
      %3566 = vmatpush1.bf16.msra.mxu0 %v3503
      %3567 = vmatprep.subr.bf16.mxu0 0
      %3568 = vmatpush1.bf16.msra.mxu0 %v3504
      %3569 = vmatprep.subr.bf16.mxu0 0
      %3570 = vmatpush1.bf16.msra.mxu0 %v3505
      %3571 = vmatprep.subr.bf16.mxu0 0
      %3572 = vmatpush1.bf16.msra.mxu0 %v3506
      %3573 = vmatprep.subr.bf16.mxu0 0
      %3574 = vmatpush1.bf16.msra.mxu0 %v3563
      %3575 = vmatprep.subr.bf16.mxu0 0
      %3576 = vmatpush1.bf16.msra.mxu0 0
      %3577 = vmatprep.subr.bf16.mxu0 0
      %3578 = vmatpush1.bf16.msra.mxu0 0
      %3579 = vmatprep.subr.bf16.mxu0 0
      %3580 = vmatpush1.bf16.msra.mxu0 0
      %3581 = vmatprep.subr.bf16.mxu0 0
      %3582 = vmatpush1.bf16.msra.mxu0 0
      %3583 = vmatprep.subr.bf16.mxu0 0
      %3584 = vmatpush1.bf16.msra.mxu0 0
      %3585 = vmatprep.subr.bf16.mxu0 0
      %3586 = vmatpush1.bf16.msra.mxu0 0
      %3587 = vmatprep.subr.bf16.mxu0 0
      %3588 = vmatpush1.bf16.msra.mxu0 0
      %3589 = vmatprep.subr.bf16.mxu0 0
      %3590 = vmatpush1.bf16.msra.mxu0 0
      %3591 = vmatprep.subr.bf16.mxu0 0
      %3592 = vmatpush1.bf16.msra.mxu0 0
      %3593 = vmatprep.subr.bf16.mxu0 0
      %3594 = vmatpush1.bf16.msra.mxu0 0
      %3595 = vmatprep.subr.bf16.mxu0 0
      %3596 = vmatpush1.bf16.msra.mxu0 0
      %3597 = vmatprep.mubr.bf16.mxu0 0
      %3598 = vmatmul.mubr.bf16.gmra.mrb[0].mxu0 %v3514
      %v3599 = vpop.f32.mrb[0].mxu0
      %v3600 = vadd.f32 0.0, %v3599
      %v3601 = vpop.f32.mrb[0].mxu0
      %v3602 = vpop.f32.mrb[0].mxu0
      %v3603 = vadd.f32 0.0, %v3602
      %v3604 = vpop.f32.mrb[0].mxu0
      %3605 = vmatprep.mubr.bf16.mxu0 0
      %3606 = vmatmul.mubr.bf16.gmra.mrb[0].mxu0 %v3517
      %v3607 = vpop.f32.mrb[0].mxu0
      %v3608 = vadd.f32 0.0, %v3607
      %v3609 = vpop.f32.mrb[0].mxu0
      %v3610 = vpop.f32.mrb[0].mxu0
      %v3611 = vadd.f32 0.0, %v3610
      %v3612 = vpop.f32.mrb[0].mxu0
      %3613 = vmatprep.mubr.bf16.mxu0 0
      %3614 = vmatmul.mubr.bf16.gmra.mrb[0].mxu0 %v3520
      %v3615 = vpop.f32.mrb[0].mxu0
      %v3616 = vadd.f32 0.0, %v3615
      %v3617 = vpop.f32.mrb[0].mxu0
      %v3618 = vpop.f32.mrb[0].mxu0
      %v3619 = vadd.f32 0.0, %v3618
      %v3620 = vpop.f32.mrb[0].mxu0
      %3621 = vmatprep.mubr.bf16.mxu0 0
      %3622 = vmatmul.mubr.bf16.gmra.mrb[0].mxu0 %v3523
      %v3623 = vpop.f32.mrb[0].mxu0
      %v3624 = vadd.f32 0.0, %v3623
      %v3625 = vpop.f32.mrb[0].mxu0
      %v3626 = vpop.f32.mrb[0].mxu0
      %v3627 = vadd.f32 0.0, %v3626
      %v3628 = vpop.f32.mrb[0].mxu0
      %3629 = vmatprep.mubr.bf16.mxu0 0
      %3630 = vmatmul.mubr.bf16.gmra.mrb[0].mxu0 %v3526
      %v3631 = vpop.f32.mrb[0].mxu0
      %v3632 = vadd.f32 0.0, %v3631
      %v3633 = vpop.f32.mrb[0].mxu0
      %v3634 = vpop.f32.mrb[0].mxu0
      %v3635 = vadd.f32 0.0, %v3634
      %v3636 = vpop.f32.mrb[0].mxu0
      %3637 = vmatprep.mubr.bf16.mxu0 0
      %3638 = vmatmul.mubr.bf16.gmra.mrb[0].mxu0 %v3529
      %v3639 = vpop.f32.mrb[0].mxu0
      %v3640 = vadd.f32 0.0, %v3639
      %v3641 = vpop.f32.mrb[0].mxu0
      %v3642 = vpop.f32.mrb[0].mxu0
      %v3643 = vadd.f32 0.0, %v3642
      %v3644 = vpop.f32.mrb[0].mxu0
      %3645 = vmatprep.mubr.bf16.mxu0 0
      %3646 = vmatmul.mubr.bf16.gmra.mrb[0].mxu0 %v3532
      %v3647 = vpop.f32.mrb[0].mxu0
      %v3648 = vadd.f32 0.0, %v3647
      %v3649 = vpop.f32.mrb[0].mxu0
      %v3650 = vpop.f32.mrb[0].mxu0
      %v3651 = vadd.f32 0.0, %v3650
      %v3652 = vpop.f32.mrb[0].mxu0
      %3653 = vmatprep.mubr.bf16.mxu0 0
      %3654 = vmatmul.mubr.bf16.gmra.mrb[0].mxu0 %v3535
      %v3655 = vpop.f32.mrb[0].mxu0
      %v3656 = vadd.f32 0.0, %v3655
      %v3657 = vpop.f32.mrb[0].mxu0
      %v3658 = vpop.f32.mrb[0].mxu0
      %v3659 = vadd.f32 0.0, %v3658
      %v3660 = vpop.f32.mrb[0].mxu0
      %3661 = vmatprep.mubr.bf16.mxu0 0
      %3662 = vmatmul.mubr.bf16.gmra.mrb[0].mxu0 %v3538
      %v3663 = vpop.f32.mrb[0].mxu0
      %v3664 = vadd.f32 0.0, %v3663
      %v3665 = vpop.f32.mrb[0].mxu0
      %v3666 = vpop.f32.mrb[0].mxu0
      %v3667 = vadd.f32 0.0, %v3666
      %v3668 = vpop.f32.mrb[0].mxu0
      %3669 = vmatprep.mubr.bf16.mxu0 0
      %3670 = vmatmul.mubr.bf16.gmra.mrb[0].mxu0 %v3541
      %v3671 = vpop.f32.mrb[0].mxu0
      %v3672 = vadd.f32 0.0, %v3671
      %v3673 = vpop.f32.mrb[0].mxu0
      %v3674 = vpop.f32.mrb[0].mxu0
      %v3675 = vadd.f32 0.0, %v3674
      %v3676 = vpop.f32.mrb[0].mxu0
      %3677 = vmatprep.mubr.bf16.mxu0 0
      %3678 = vmatmul.mubr.bf16.gmra.mrb[0].mxu0 %v3544
      %v3679 = vpop.f32.mrb[0].mxu0
      %v3680 = vadd.f32 0.0, %v3679
      %v3681 = vpop.f32.mrb[0].mxu0
      %v3682 = vpop.f32.mrb[0].mxu0
      %v3683 = vadd.f32 0.0, %v3682
      %v3684 = vpop.f32.mrb[0].mxu0
      %3685 = vmatprep.mubr.bf16.mxu0 0
      %3686 = vmatmul.mubr.bf16.gmra.mrb[0].mxu0 %v3547
      %v3687 = vpop.f32.mrb[0].mxu0
      %v3688 = vadd.f32 0.0, %v3687
      %v3689 = vpop.f32.mrb[0].mxu0
      %v3690 = vpop.f32.mrb[0].mxu0
      %v3691 = vadd.f32 0.0, %v3690
      %v3692 = vpop.f32.mrb[0].mxu0
      %3693 = vmatprep.mubr.bf16.mxu0 0
      %3694 = vmatmul.mubr.bf16.gmra.mrb[0].mxu0 %v3550
      %v3695 = vpop.f32.mrb[0].mxu0
      %v3696 = vadd.f32 0.0, %v3695
      %v3697 = vpop.f32.mrb[0].mxu0
      %v3698 = vpop.f32.mrb[0].mxu0
      %v3699 = vadd.f32 0.0, %v3698
      %v3700 = vpop.f32.mrb[0].mxu0
      %3701 = vmatprep.mubr.bf16.mxu0 0
      %3702 = vmatmul.mubr.bf16.gmra.mrb[0].mxu0 %v3553
      %v3703 = vpop.f32.mrb[0].mxu0
      %v3704 = vadd.f32 0.0, %v3703
      %v3705 = vpop.f32.mrb[0].mxu0
      %v3706 = vpop.f32.mrb[0].mxu0
      %v3707 = vadd.f32 0.0, %v3706
      %v3708 = vpop.f32.mrb[0].mxu0
      %3709 = vmatprep.mubr.bf16.mxu0 0
      %3710 = vmatmul.mubr.bf16.gmra.mrb[0].mxu0 %v3556
      %v3711 = vpop.f32.mrb[0].mxu0
      %v3712 = vadd.f32 0.0, %v3711
      %v3713 = vpop.f32.mrb[0].mxu0
      %v3714 = vpop.f32.mrb[0].mxu0
      %v3715 = vadd.f32 0.0, %v3714
      %v3716 = vpop.f32.mrb[0].mxu0
      %3717 = vmatprep.mubr.bf16.mxu0 0
      %3718 = vmatmul.mubr.bf16.gmra.mrb[0].mxu0 %v3559
      %v3719 = vpop.f32.mrb[0].mxu0
      %v3720 = vadd.f32 0.0, %v3719
      %v3721 = vpop.f32.mrb[0].mxu0
      %v3722 = vpop.f32.mrb[0].mxu0
      %v3723 = vadd.f32 0.0, %v3722
      %v3724 = vpop.f32.mrb[0].mxu0
      %3725 = vdwg.mxu0
      %v3726 = vld [vmem:[%s4] sm:$0x1]
      %v3727 = vlaneseq
      %v3728 = vshrl.u32 %v3727, 7
      %v3729 = vsub.s32 0, %v3728
      %v3730 = vrot.slane %v3726, %v3729
      %v3731 = vmul.f32 %v3600, %v3730
      %v3732 = vmul.f32 %v3603, %v3730
      %v3733 = vmul.f32 %v3608, %v3730
      %v3734 = vmul.f32 %v3611, %v3730
      %v3735 = vmul.f32 %v3616, %v3730
      %v3736 = vmul.f32 %v3619, %v3730
      %v3737 = vmul.f32 %v3624, %v3730
      %v3738 = vmul.f32 %v3627, %v3730
      %v3739 = vmul.f32 %v3632, %v3730
      %v3740 = vmul.f32 %v3635, %v3730
      %v3741 = vmul.f32 %v3640, %v3730
      %v3742 = vmul.f32 %v3643, %v3730
      %v3743 = vmul.f32 %v3648, %v3730
      %v3744 = vmul.f32 %v3651, %v3730
      %v3745 = vmul.f32 %v3656, %v3730
      %v3746 = vmul.f32 %v3659, %v3730
      %v3747 = vmul.f32 %v3664, %v3730
      %v3748 = vmul.f32 %v3667, %v3730
      %v3749 = vmul.f32 %v3672, %v3730
      %v3750 = vmul.f32 %v3675, %v3730
      %v3751 = vmul.f32 %v3680, %v3730
      %v3752 = vmul.f32 %v3683, %v3730
      %v3753 = vmul.f32 %v3688, %v3730
      %v3754 = vmul.f32 %v3691, %v3730
      %v3755 = vmul.f32 %v3696, %v3730
      %v3756 = vmul.f32 %v3699, %v3730
      %v3757 = vmul.f32 %v3704, %v3730
      %v3758 = vmul.f32 %v3707, %v3730
      %v3759 = vmul.f32 %v3712, %v3730
      %v3760 = vmul.f32 %v3715, %v3730
      %v3761 = vmul.f32 %v3720, %v3730
      %v3762 = vmul.f32 %v3723, %v3730
      %v3763 = vld [vmem:[%s4 + $0x1] sm:$0x1]
      %v3764 = vlaneseq
      %v3765 = vshrl.u32 %v3764, 7
      %v3766 = vsub.s32 0, %v3765
      %v3767 = vrot.slane %v3763, %v3766
      %v3768 = vadd.f32 %v3731, %v3767
      %v3769 = vadd.f32 %v3732, %v3767
      %v3770 = vadd.f32 %v3733, %v3767
      %v3771 = vadd.f32 %v3734, %v3767
      %v3772 = vadd.f32 %v3735, %v3767
      %v3773 = vadd.f32 %v3736, %v3767
      %v3774 = vadd.f32 %v3737, %v3767
      %v3775 = vadd.f32 %v3738, %v3767
      %v3776 = vadd.f32 %v3739, %v3767
      %v3777 = vadd.f32 %v3740, %v3767
      %v3778 = vadd.f32 %v3741, %v3767
      %v3779 = vadd.f32 %v3742, %v3767
      %v3780 = vadd.f32 %v3743, %v3767
      %v3781 = vadd.f32 %v3744, %v3767
      %v3782 = vadd.f32 %v3745, %v3767
      %v3783 = vadd.f32 %v3746, %v3767
      %v3784 = vadd.f32 %v3747, %v3767
      %v3785 = vadd.f32 %v3748, %v3767
      %v3786 = vadd.f32 %v3749, %v3767
      %v3787 = vadd.f32 %v3750, %v3767
      %v3788 = vadd.f32 %v3751, %v3767
      %v3789 = vadd.f32 %v3752, %v3767
      %v3790 = vadd.f32 %v3753, %v3767
      %v3791 = vadd.f32 %v3754, %v3767
      %v3792 = vadd.f32 %v3755, %v3767
      %v3793 = vadd.f32 %v3756, %v3767
      %v3794 = vadd.f32 %v3757, %v3767
      %v3795 = vadd.f32 %v3758, %v3767
      %v3796 = vadd.f32 %v3759, %v3767
      %v3797 = vadd.f32 %v3760, %v3767
      %v3798 = vadd.f32 %v3761, %v3767
      %v3799 = vadd.f32 %v3762, %v3767
      %v3800 = vpack.c.bf16 %v281, %v280
      %v3801 = vpack.c.bf16 %v283, %v282
      %v3802 = vpack.c.bf16 %v285, %v284
      %v3803 = vpack.c.bf16 %v287, %v286
      %v3804 = vpack.c.bf16 %v289, %v288
      %v3805 = vpack.c.bf16 %v291, %v290
      %v3806 = vpack.c.bf16 %v293, %v292
      %v3807 = vpack.c.bf16 %v295, %v294
      %v3808 = vpack.c.bf16 %v297, %v296
      %v3809 = vpack.c.bf16 %v299, %v298
      %v3810 = vpack.c.bf16 %v301, %v300
      %v3811 = vpack.c.bf16 %v303, %v302
      %v3812 = vpack.c.bf16 %v305, %v304
      %v3813 = vpack.c.bf16 %v307, %v306
      %v3814 = vpack.c.bf16 %v309, %v308
      %v3815 = vpack.c.bf16 %v311, %v310
      %v3816 = vld [vmem:[%s5] sm:$0x3]
      %v3818 = vsel %vm312, %v3800, 0
      %v3821 = vsel %vm312, %v3801, 0
      %v3824 = vsel %vm312, %v3802, 0
      %v3827 = vsel %vm312, %v3803, 0
      %v3830 = vsel %vm312, %v3804, 0
      %v3833 = vsel %vm312, %v3805, 0
      %v3836 = vsel %vm312, %v3806, 0
      %v3839 = vsel %vm312, %v3807, 0
      %v3842 = vsel %vm312, %v3808, 0
      %v3845 = vsel %vm312, %v3809, 0
      %v3848 = vsel %vm312, %v3810, 0
      %v3851 = vsel %vm312, %v3811, 0
      %v3854 = vsel %vm312, %v3812, 0
      %v3857 = vsel %vm312, %v3813, 0
      %v3860 = vsel %vm312, %v3814, 0
      %v3863 = vsel %vm312, %v3815, 0
      %v3866 = vsel %vm1796, %v3816, 0
      %3868 = vmatprep.subr.bf16.mxu0 0
      %3869 = vmatpush1.bf16.msra.mxu0 %v3866
      %3870 = vmatprep.subr.bf16.mxu0 0
      %3871 = vmatpush1.bf16.msra.mxu0 0
      %3872 = vmatprep.subr.bf16.mxu0 0
      %3873 = vmatpush1.bf16.msra.mxu0 0
      %3874 = vmatprep.subr.bf16.mxu0 0
      %3875 = vmatpush1.bf16.msra.mxu0 0
      %3876 = vmatprep.subr.bf16.mxu0 0
      %3877 = vmatpush1.bf16.msra.mxu0 0
      %3878 = vmatprep.subr.bf16.mxu0 0
      %3879 = vmatpush1.bf16.msra.mxu0 0
      %3880 = vmatprep.subr.bf16.mxu0 0
      %3881 = vmatpush1.bf16.msra.mxu0 0
      %3882 = vmatprep.subr.bf16.mxu0 0
      %3883 = vmatpush1.bf16.msra.mxu0 0
      %3884 = vmatprep.subr.bf16.mxu0 0
      %3885 = vmatpush1.bf16.msra.mxu0 0
      %3886 = vmatprep.subr.bf16.mxu0 0
      %3887 = vmatpush1.bf16.msra.mxu0 0
      %3888 = vmatprep.subr.bf16.mxu0 0
      %3889 = vmatpush1.bf16.msra.mxu0 0
      %3890 = vmatprep.subr.bf16.mxu0 0
      %3891 = vmatpush1.bf16.msra.mxu0 0
      %3892 = vmatprep.subr.bf16.mxu0 0
      %3893 = vmatpush1.bf16.msra.mxu0 0
      %3894 = vmatprep.subr.bf16.mxu0 0
      %3895 = vmatpush1.bf16.msra.mxu0 0
      %3896 = vmatprep.subr.bf16.mxu0 0
      %3897 = vmatpush1.bf16.msra.mxu0 0
      %3898 = vmatprep.subr.bf16.mxu0 0
      %3899 = vmatpush1.bf16.msra.mxu0 0
      %3900 = vmatprep.mubr.bf16.mxu0 0
      %3901 = vmatmul.mubr.bf16.gmra.mrb[0].mxu0 %v3818
      %v3902 = vpop.f32.mrb[0].mxu0
      %v3903 = vadd.f32 0.0, %v3902
      %v3904 = vpop.f32.mrb[0].mxu0
      %v3905 = vpop.f32.mrb[0].mxu0
      %v3906 = vadd.f32 0.0, %v3905
      %v3907 = vpop.f32.mrb[0].mxu0
      %3908 = vmatprep.mubr.bf16.mxu0 0
      %3909 = vmatmul.mubr.bf16.gmra.mrb[0].mxu0 %v3821
      %v3910 = vpop.f32.mrb[0].mxu0
      %v3911 = vadd.f32 0.0, %v3910
      %v3912 = vpop.f32.mrb[0].mxu0
      %v3913 = vpop.f32.mrb[0].mxu0
      %v3914 = vadd.f32 0.0, %v3913
      %v3915 = vpop.f32.mrb[0].mxu0
      %3916 = vmatprep.mubr.bf16.mxu0 0
      %3917 = vmatmul.mubr.bf16.gmra.mrb[0].mxu0 %v3824
      %v3918 = vpop.f32.mrb[0].mxu0
      %v3919 = vadd.f32 0.0, %v3918
      %v3920 = vpop.f32.mrb[0].mxu0
      %v3921 = vpop.f32.mrb[0].mxu0
      %v3922 = vadd.f32 0.0, %v3921
      %v3923 = vpop.f32.mrb[0].mxu0
      %3924 = vmatprep.mubr.bf16.mxu0 0
      %3925 = vmatmul.mubr.bf16.gmra.mrb[0].mxu0 %v3827
      %v3926 = vpop.f32.mrb[0].mxu0
      %v3927 = vadd.f32 0.0, %v3926
      %v3928 = vpop.f32.mrb[0].mxu0
      %v3929 = vpop.f32.mrb[0].mxu0
      %v3930 = vadd.f32 0.0, %v3929
      %v3931 = vpop.f32.mrb[0].mxu0
      %3932 = vmatprep.mubr.bf16.mxu0 0
      %3933 = vmatmul.mubr.bf16.gmra.mrb[0].mxu0 %v3830
      %v3934 = vpop.f32.mrb[0].mxu0
      %v3935 = vadd.f32 0.0, %v3934
      %v3936 = vpop.f32.mrb[0].mxu0
      %v3937 = vpop.f32.mrb[0].mxu0
      %v3938 = vadd.f32 0.0, %v3937
      %v3939 = vpop.f32.mrb[0].mxu0
      %3940 = vmatprep.mubr.bf16.mxu0 0
      %3941 = vmatmul.mubr.bf16.gmra.mrb[0].mxu0 %v3833
      %v3942 = vpop.f32.mrb[0].mxu0
      %v3943 = vadd.f32 0.0, %v3942
      %v3944 = vpop.f32.mrb[0].mxu0
      %v3945 = vpop.f32.mrb[0].mxu0
      %v3946 = vadd.f32 0.0, %v3945
      %v3947 = vpop.f32.mrb[0].mxu0
      %3948 = vmatprep.mubr.bf16.mxu0 0
      %3949 = vmatmul.mubr.bf16.gmra.mrb[0].mxu0 %v3836
      %v3950 = vpop.f32.mrb[0].mxu0
      %v3951 = vadd.f32 0.0, %v3950
      %v3952 = vpop.f32.mrb[0].mxu0
      %v3953 = vpop.f32.mrb[0].mxu0
      %v3954 = vadd.f32 0.0, %v3953
      %v3955 = vpop.f32.mrb[0].mxu0
      %3956 = vmatprep.mubr.bf16.mxu0 0
      %3957 = vmatmul.mubr.bf16.gmra.mrb[0].mxu0 %v3839
      %v3958 = vpop.f32.mrb[0].mxu0
      %v3959 = vadd.f32 0.0, %v3958
      %v3960 = vpop.f32.mrb[0].mxu0
      %v3961 = vpop.f32.mrb[0].mxu0
      %v3962 = vadd.f32 0.0, %v3961
      %v3963 = vpop.f32.mrb[0].mxu0
      %3964 = vmatprep.mubr.bf16.mxu0 0
      %3965 = vmatmul.mubr.bf16.gmra.mrb[0].mxu0 %v3842
      %v3966 = vpop.f32.mrb[0].mxu0
      %v3967 = vadd.f32 0.0, %v3966
      %v3968 = vpop.f32.mrb[0].mxu0
      %v3969 = vpop.f32.mrb[0].mxu0
      %v3970 = vadd.f32 0.0, %v3969
      %v3971 = vpop.f32.mrb[0].mxu0
      %3972 = vmatprep.mubr.bf16.mxu0 0
      %3973 = vmatmul.mubr.bf16.gmra.mrb[0].mxu0 %v3845
      %v3974 = vpop.f32.mrb[0].mxu0
      %v3975 = vadd.f32 0.0, %v3974
      %v3976 = vpop.f32.mrb[0].mxu0
      %v3977 = vpop.f32.mrb[0].mxu0
      %v3978 = vadd.f32 0.0, %v3977
      %v3979 = vpop.f32.mrb[0].mxu0
      %3980 = vmatprep.mubr.bf16.mxu0 0
      %3981 = vmatmul.mubr.bf16.gmra.mrb[0].mxu0 %v3848
      %v3982 = vpop.f32.mrb[0].mxu0
      %v3983 = vadd.f32 0.0, %v3982
      %v3984 = vpop.f32.mrb[0].mxu0
      %v3985 = vpop.f32.mrb[0].mxu0
      %v3986 = vadd.f32 0.0, %v3985
      %v3987 = vpop.f32.mrb[0].mxu0
      %3988 = vmatprep.mubr.bf16.mxu0 0
      %3989 = vmatmul.mubr.bf16.gmra.mrb[0].mxu0 %v3851
      %v3990 = vpop.f32.mrb[0].mxu0
      %v3991 = vadd.f32 0.0, %v3990
      %v3992 = vpop.f32.mrb[0].mxu0
      %v3993 = vpop.f32.mrb[0].mxu0
      %v3994 = vadd.f32 0.0, %v3993
      %v3995 = vpop.f32.mrb[0].mxu0
      %3996 = vmatprep.mubr.bf16.mxu0 0
      %3997 = vmatmul.mubr.bf16.gmra.mrb[0].mxu0 %v3854
      %v3998 = vpop.f32.mrb[0].mxu0
      %v3999 = vadd.f32 0.0, %v3998
      %v4000 = vpop.f32.mrb[0].mxu0
      %v4001 = vpop.f32.mrb[0].mxu0
      %v4002 = vadd.f32 0.0, %v4001
      %v4003 = vpop.f32.mrb[0].mxu0
      %4004 = vmatprep.mubr.bf16.mxu0 0
      %4005 = vmatmul.mubr.bf16.gmra.mrb[0].mxu0 %v3857
      %v4006 = vpop.f32.mrb[0].mxu0
      %v4007 = vadd.f32 0.0, %v4006
      %v4008 = vpop.f32.mrb[0].mxu0
      %v4009 = vpop.f32.mrb[0].mxu0
      %v4010 = vadd.f32 0.0, %v4009
      %v4011 = vpop.f32.mrb[0].mxu0
      %4012 = vmatprep.mubr.bf16.mxu0 0
      %4013 = vmatmul.mubr.bf16.gmra.mrb[0].mxu0 %v3860
      %v4014 = vpop.f32.mrb[0].mxu0
      %v4015 = vadd.f32 0.0, %v4014
      %v4016 = vpop.f32.mrb[0].mxu0
      %v4017 = vpop.f32.mrb[0].mxu0
      %v4018 = vadd.f32 0.0, %v4017
      %v4019 = vpop.f32.mrb[0].mxu0
      %4020 = vmatprep.mubr.bf16.mxu0 0
      %4021 = vmatmul.mubr.bf16.gmra.mrb[0].mxu0 %v3863
      %v4022 = vpop.f32.mrb[0].mxu0
      %v4023 = vadd.f32 0.0, %v4022
      %v4024 = vpop.f32.mrb[0].mxu0
      %v4025 = vpop.f32.mrb[0].mxu0
      %v4026 = vadd.f32 0.0, %v4025
      %v4027 = vpop.f32.mrb[0].mxu0
      %4028 = vdwg.mxu0
      %v4029 = vld [vmem:[%s6] sm:$0x1]
      %v4030 = vlaneseq
      %v4031 = vshrl.u32 %v4030, 7
      %v4032 = vsub.s32 0, %v4031
      %v4033 = vrot.slane %v4029, %v4032
      %v4034 = vmul.f32 %v3903, %v4033
      %v4035 = vmul.f32 %v3906, %v4033
      %v4036 = vmul.f32 %v3911, %v4033
      %v4037 = vmul.f32 %v3914, %v4033
      %v4038 = vmul.f32 %v3919, %v4033
      %v4039 = vmul.f32 %v3922, %v4033
      %v4040 = vmul.f32 %v3927, %v4033
      %v4041 = vmul.f32 %v3930, %v4033
      %v4042 = vmul.f32 %v3935, %v4033
      %v4043 = vmul.f32 %v3938, %v4033
      %v4044 = vmul.f32 %v3943, %v4033
      %v4045 = vmul.f32 %v3946, %v4033
      %v4046 = vmul.f32 %v3951, %v4033
      %v4047 = vmul.f32 %v3954, %v4033
      %v4048 = vmul.f32 %v3959, %v4033
      %v4049 = vmul.f32 %v3962, %v4033
      %v4050 = vmul.f32 %v3967, %v4033
      %v4051 = vmul.f32 %v3970, %v4033
      %v4052 = vmul.f32 %v3975, %v4033
      %v4053 = vmul.f32 %v3978, %v4033
      %v4054 = vmul.f32 %v3983, %v4033
      %v4055 = vmul.f32 %v3986, %v4033
      %v4056 = vmul.f32 %v3991, %v4033
      %v4057 = vmul.f32 %v3994, %v4033
      %v4058 = vmul.f32 %v3999, %v4033
      %v4059 = vmul.f32 %v4002, %v4033
      %v4060 = vmul.f32 %v4007, %v4033
      %v4061 = vmul.f32 %v4010, %v4033
      %v4062 = vmul.f32 %v4015, %v4033
      %v4063 = vmul.f32 %v4018, %v4033
      %v4064 = vmul.f32 %v4023, %v4033
      %v4065 = vmul.f32 %v4026, %v4033
      %v4066 = vld [vmem:[%s6 + $0x1] sm:$0x1]
      %v4067 = vlaneseq
      %v4068 = vshrl.u32 %v4067, 7
      %v4069 = vsub.s32 0, %v4068
      %v4070 = vrot.slane %v4066, %v4069
      %v4071 = vadd.f32 %v4034, %v4070
      %v4072 = vadd.f32 %v4035, %v4070
      %v4073 = vadd.f32 %v4036, %v4070
      %v4074 = vadd.f32 %v4037, %v4070
      %v4075 = vadd.f32 %v4038, %v4070
      %v4076 = vadd.f32 %v4039, %v4070
      %v4077 = vadd.f32 %v4040, %v4070
      %v4078 = vadd.f32 %v4041, %v4070
      %v4079 = vadd.f32 %v4042, %v4070
      %v4080 = vadd.f32 %v4043, %v4070
      %v4081 = vadd.f32 %v4044, %v4070
      %v4082 = vadd.f32 %v4045, %v4070
      %v4083 = vadd.f32 %v4046, %v4070
      %v4084 = vadd.f32 %v4047, %v4070
      %v4085 = vadd.f32 %v4048, %v4070
      %v4086 = vadd.f32 %v4049, %v4070
      %v4087 = vadd.f32 %v4050, %v4070
      %v4088 = vadd.f32 %v4051, %v4070
      %v4089 = vadd.f32 %v4052, %v4070
      %v4090 = vadd.f32 %v4053, %v4070
      %v4091 = vadd.f32 %v4054, %v4070
      %v4092 = vadd.f32 %v4055, %v4070
      %v4093 = vadd.f32 %v4056, %v4070
      %v4094 = vadd.f32 %v4057, %v4070
      %v4095 = vadd.f32 %v4058, %v4070
      %v4096 = vadd.f32 %v4059, %v4070
      %v4097 = vadd.f32 %v4060, %v4070
      %v4098 = vadd.f32 %v4061, %v4070
      %v4099 = vadd.f32 %v4062, %v4070
      %v4100 = vadd.f32 %v4063, %v4070
      %v4101 = vadd.f32 %v4064, %v4070
      %v4102 = vadd.f32 %v4065, %v4070
      %v4103 = vadd.f32 %v4071, %v3768
      %v4104 = vadd.f32 %v4072, %v3769
      %v4105 = vadd.f32 %v4073, %v3770
      %v4106 = vadd.f32 %v4074, %v3771
      %v4107 = vadd.f32 %v4075, %v3772
      %v4108 = vadd.f32 %v4076, %v3773
      %v4109 = vadd.f32 %v4077, %v3774
      %v4110 = vadd.f32 %v4078, %v3775
      %v4111 = vadd.f32 %v4079, %v3776
      %v4112 = vadd.f32 %v4080, %v3777
      %v4113 = vadd.f32 %v4081, %v3778
      %v4114 = vadd.f32 %v4082, %v3779
      %v4115 = vadd.f32 %v4083, %v3780
      %v4116 = vadd.f32 %v4084, %v3781
      %v4117 = vadd.f32 %v4085, %v3782
      %v4118 = vadd.f32 %v4086, %v3783
      %v4119 = vadd.f32 %v4087, %v3784
      %v4120 = vadd.f32 %v4088, %v3785
      %v4121 = vadd.f32 %v4089, %v3786
      %v4122 = vadd.f32 %v4090, %v3787
      %v4123 = vadd.f32 %v4091, %v3788
      %v4124 = vadd.f32 %v4092, %v3789
      %v4125 = vadd.f32 %v4093, %v3790
      %v4126 = vadd.f32 %v4094, %v3791
      %v4127 = vadd.f32 %v4095, %v3792
      %v4128 = vadd.f32 %v4096, %v3793
      %v4129 = vadd.f32 %v4097, %v3794
      %v4130 = vadd.f32 %v4098, %v3795
      %v4131 = vadd.f32 %v4099, %v3796
      %v4132 = vadd.f32 %v4100, %v3797
      %v4133 = vadd.f32 %v4101, %v3798
      %v4134 = vadd.f32 %v4102, %v3799
      %4135 = vst.msk [vmem:[%s278] sm:$0xff] %vm1480, %v4103
      %4136 = vst.msk [vmem:[%s278 + $0x8] sm:$0xff] %vm1480, %v4104
      %4137 = vst.msk [vmem:[%s278 + $0x10] sm:$0xff] %vm1480, %v4105
      %4138 = vst.msk [vmem:[%s278 + $0x18] sm:$0xff] %vm1480, %v4106
      %4139 = vst.msk [vmem:[%s278 + $0x20] sm:$0xff] %vm1480, %v4107
      %4140 = vst.msk [vmem:[%s278 + $0x28] sm:$0xff] %vm1480, %v4108
      %4141 = vst.msk [vmem:[%s278 + $0x30] sm:$0xff] %vm1480, %v4109
      %4142 = vst.msk [vmem:[%s278 + $0x38] sm:$0xff] %vm1480, %v4110
      %4143 = vst.msk [vmem:[%s278 + $0x40] sm:$0xff] %vm1480, %v4111
      %4144 = vst.msk [vmem:[%s278 + $0x48] sm:$0xff] %vm1480, %v4112
      %4145 = vst.msk [vmem:[%s278 + $0x50] sm:$0xff] %vm1480, %v4113
      %4146 = vst.msk [vmem:[%s278 + $0x58] sm:$0xff] %vm1480, %v4114
      %4147 = vst.msk [vmem:[%s278 + $0x60] sm:$0xff] %vm1480, %v4115
      %4148 = vst.msk [vmem:[%s278 + $0x68] sm:$0xff] %vm1480, %v4116
      %4149 = vst.msk [vmem:[%s278 + $0x70] sm:$0xff] %vm1480, %v4117
      %4150 = vst.msk [vmem:[%s278 + $0x78] sm:$0xff] %vm1480, %v4118
      %4151 = vst.msk [vmem:[%s278 + $0x80] sm:$0xff] %vm1480, %v4119
      %4152 = vst.msk [vmem:[%s278 + $0x88] sm:$0xff] %vm1480, %v4120
      %4153 = vst.msk [vmem:[%s278 + $0x90] sm:$0xff] %vm1480, %v4121
      %4154 = vst.msk [vmem:[%s278 + $0x98] sm:$0xff] %vm1480, %v4122
      %4155 = vst.msk [vmem:[%s278 + $0xa0] sm:$0xff] %vm1480, %v4123
      %4156 = vst.msk [vmem:[%s278 + $0xa8] sm:$0xff] %vm1480, %v4124
      %4157 = vst.msk [vmem:[%s278 + $0xb0] sm:$0xff] %vm1480, %v4125
      %4158 = vst.msk [vmem:[%s278 + $0xb8] sm:$0xff] %vm1480, %v4126
      %4159 = vst.msk [vmem:[%s278 + $0xc0] sm:$0xff] %vm1480, %v4127
      %4160 = vst.msk [vmem:[%s278 + $0xc8] sm:$0xff] %vm1480, %v4128
      %4161 = vst.msk [vmem:[%s278 + $0xd0] sm:$0xff] %vm1480, %v4129
      %4162 = vst.msk [vmem:[%s278 + $0xd8] sm:$0xff] %vm1480, %v4130
      %4163 = vst.msk [vmem:[%s278 + $0xe0] sm:$0xff] %vm1480, %v4131
      %4164 = vst.msk [vmem:[%s278 + $0xe8] sm:$0xff] %vm1480, %v4132
      %4165 = vst.msk [vmem:[%s278 + $0xf0] sm:$0xff] %vm1480, %v4133
      %4166 = vst.msk [vmem:[%s278 + $0xf8] sm:$0xff] %vm1480, %v4134
      %p4167 = scmp.lt.s32.totalorder %s18, 1
      %s4168 = scalar_select %p4167, %s18, 1
      %s4169 = smul.addr %s4168, 32
      %s4170 = smul.addr %s4169, 8
      %s4171 = scalar_lea.vmem %s7, %s4170
      // Predicated region
      $region49: #{resblk_forward.1} parent=47 // pred_check
        %p4172 = pneg %p188
      $region50: #{resblk_forward.1} parent=47 // pred_check_branch
        %4174 = sbr.rel (%p4172) target = $region52
      $region51: #{resblk_forward.1} parent=47 // pred_region
        _
      $region52: #{resblk_forward.1} parent=47 // pred_fallthru
        _
    $region48: #{resblk_forward.1} parent=5 // pred_fallthru
      _
    %p4175 = scmp.le.s32.totalorder 2, %s13
    // Predicated region
    $region53: #{resblk_forward.1} parent=5 // pred_check
      %p4176 = pneg %p4175
    $region54: #{resblk_forward.1} parent=5 // pred_check_branch
      %4178 = sbr.rel (%p4176) target = $region56
    $region55: #{resblk_forward.1} parent=5 // pred_region
      %s4179 = ssub.s32 %s13, 2
      // Predicated region
      $region57: #{resblk_forward.1} parent=55 // pred_check
        %p4180 = pneg %p194
      $region58: #{resblk_forward.1} parent=55 // pred_check_branch
        %4182 = sbr.rel (%p4180) target = $region60
      $region59: #{resblk_forward.1} parent=55 // pred_region
        %p4183 = scmp.lt.s32.totalorder %s19, 1
        %s4184 = scalar_select %p4183, %s19, 1
        %s4185 = smul.addr %s4184, 32
        %s4186 = smul.addr %s4185, 8
        %s4187 = scalar_lea.vmem %s7, %s4186
      $region60: #{resblk_forward.1} parent=55 // pred_fallthru
        _
    $region56: #{resblk_forward.1} parent=5 // pred_fallthru
      _
  $region6: #{resblk_forward.1} parent=0 // loop_footer
    %s17 = sadd.s32 1, %s13
  $region7: #{resblk_forward.1} parent=0 // loop_footer_branch
    %12 = sbr.rel target = $region3
  $region8: #{resblk_forward.1} parent=0 // loop_exit
    _

</llo_original>
